<compile_context>
chip_gen: v7x
topology: tpu7x:2x2x1
jax: 0.10.0
libtpu: 0.0.40
codegen_flags: <defaults>
</compile_context>

<pallas_src>
import numpy as np

import jax
import jax.numpy as jnp
from jax.experimental import pallas as pl
from jax.experimental.pallas import tpu as pltpu


TB_MAX = 256   # batch rows per grid step (multiple of 16); ~16 MB peak VMEM/step


# ---------------------------------------------------------------------------
# Fused kernel: whole network for one batch tile
# ---------------------------------------------------------------------------
def _cnn_fused_kernel(x_ref, c1w_ref, c1b_ref, c2w_ref, c2b_ref,
                      f1w_ref, f1b_ref, f2w_ref, f2b_ref, o_ref):
    tb = x_ref.shape[1]

    # ---- conv1 (1->10, k=5) + 2x2 max-pool + bias + ReLU --------------------
    # acc1 rows are (y, n); lanes are dx*128 + (pooled_x*10 + oc).
    acc1 = None
    for kh in range(5):
        rows = x_ref[pl.ds(kh, 24), :, :].reshape(24 * tb, 28)
        part = jnp.dot(rows, c1w_ref[kh], preferred_element_type=jnp.float32)
        acc1 = part if acc1 is None else acc1 + part
    acc1 = acc1.reshape(12, 2, tb, 256)
    ymax = jnp.maximum(acc1[:, 0], acc1[:, 1])                    # pool over dy
    xmax = jnp.maximum(ymax[:, :, 0:128], ymax[:, :, 128:256])    # pool over dx
    # bias commutes with max; padded lanes stay exactly 0 after ReLU.
    pool1 = jnp.maximum(xmax + c1b_ref[...], 0.0).astype(jnp.bfloat16)  # (12, tb, 128)

    # ---- conv2 (10->20, k=5) [Dropout2d = identity] + pool + bias + ReLU ----
    acc2 = None
    for kh in range(5):
        rows = pool1[kh:kh + 8].reshape(8 * tb, 128)
        part = jnp.dot(rows, c2w_ref[kh], preferred_element_type=jnp.float32)
        acc2 = part if acc2 is None else acc2 + part
    acc2 = acc2.reshape(4, 2, tb, 256)
    ymax2 = jnp.maximum(acc2[:, 0], acc2[:, 1])
    xmax2 = jnp.maximum(ymax2[:, :, 0:128], ymax2[:, :, 128:256])
    pool2 = jnp.maximum(xmax2 + c2b_ref[...], 0.0).astype(jnp.bfloat16)  # (4, tb, 128)

    # ---- fc1 + ReLU (+dropout identity) + fc2 + log_softmax -----------------
    # The NCHW .view(-1,320) permutation is folded into f1w (one slab per h).
    h = None
    for r in range(4):
        part = jnp.dot(pool2[r], f1w_ref[r], preferred_element_type=jnp.float32)
        h = part if h is None else h + part
    h = jnp.maximum(h + f1b_ref[...], 0.0)
    # fc2 bias is -1e9 on the 118 padded class lanes -> exp() underflows to 0,
    # so log_softmax over the 128-wide lane-dense block is exact for classes 0..9.
    logits = jnp.dot(h.astype(jnp.bfloat16), f2w_ref[...],
                     preferred_element_type=jnp.float32) + f2b_ref[...]
    m = jnp.max(logits, axis=-1, keepdims=True)
    s = logits - m
    lse = jnp.log(jnp.sum(jnp.exp(s), axis=-1, keepdims=True))
    o_ref[...] = (s - lse).astype(o_ref.dtype)


# ---------------------------------------------------------------------------
# Forward wrapper
# ---------------------------------------------------------------------------
def _round_up(x, m):
    return (x + m - 1) // m * m


def cnn_forward(x, packed_params):
    """x: (N, 1, 28, 28) float32 -> (N, 10) float32 log-probabilities (eval mode)."""
    (c1w, c1b, c2w, c2b, f1w, f1b, f2w, f2b) = packed_params
    N = x.shape[0]
    assert x.shape[1:] == (1, 28, 28), "CNN expects 1x28x28 inputs (MNIST)"
    tb = TB_MAX if N >= TB_MAX else _round_up(N, 16)
    npad = _round_up(N, tb)

    # Layout plumbing (tiny): (N,1,28,28) -> (H=28, N, W=28) bf16, batch padded,
    # so conv kh shifts and 2x2 y-pooling are free major-axis slices in-kernel.
    xt = jnp.transpose(x[:, 0], (1, 0, 2)).astype(jnp.bfloat16)
    if npad != N:
        xt = jnp.pad(xt, ((0, 0), (0, npad - N), (0, 0)))

    out = pl.pallas_call(
        _cnn_fused_kernel,
        out_shape=jax.ShapeDtypeStruct((npad, 128), jnp.float32),
        grid=(npad // tb,),
        in_specs=[
            pl.BlockSpec((28, tb, 28), lambda i: (0, i, 0)),    # images (H, N, W)
            pl.BlockSpec((5, 28, 256), lambda i: (0, 0, 0)),    # conv1 banded weight
            pl.BlockSpec((1, 128), lambda i: (0, 0)),           # conv1 bias (padded)
            pl.BlockSpec((5, 128, 256), lambda i: (0, 0, 0)),   # conv2 banded weight
            pl.BlockSpec((1, 128), lambda i: (0, 0)),           # conv2 bias (padded)
            pl.BlockSpec((4, 128, 128), lambda i: (0, 0, 0)),   # fc1 (flatten folded)
            pl.BlockSpec((1, 128), lambda i: (0, 0)),           # fc1 bias (padded)
            pl.BlockSpec((128, 128), lambda i: (0, 0)),         # fc2 (padded)
            pl.BlockSpec((1, 128), lambda i: (0, 0)),           # fc2 bias (-1e9 pad)
        ],
        out_specs=pl.BlockSpec((tb, 128), lambda i: (i, 0)),
        compiler_params=pltpu.CompilerParams(
            dimension_semantics=("parallel",),
            vmem_limit_bytes=48 * 1024 * 1024,
        ),
    )(xt, c1w, c1b, c2w, c2b, f1w, f1b, f2w, f2b)
    return out[:N, :10]


# ---------------------------------------------------------------------------
# One-time parameter packing (hoisted out of the jitted forward)
# ---------------------------------------------------------------------------
def pack_params(params):
    """Pack torch-layout parameters into the kernel's banded / padded operands."""
    w1, b1, w2, b2, fw1, fb1, fw2, fb2 = [np.asarray(p, dtype=np.float32) for p in params]

    # conv1 band: B1[kh][w, dx*128 + i*10 + oc] = w1[oc, 0, kh, w - 2i - dx]
    B1 = np.zeros((5, 28, 256), np.float32)
    for kh in range(5):
        for dx in range(2):
            for i in range(12):
                for kw in range(5):
                    w = 2 * i + dx + kw
                    B1[kh, w, dx * 128 + i * 10: dx * 128 + i * 10 + 10] = w1[:, 0, kh, kw]
    b1p = np.zeros((1, 128), np.float32)
    b1p[0, :120] = np.tile(b1, 12)

    # conv2 band: B2[kh][w*10 + c, dx*128 + i*20 + oc] = w2[oc, c, kh, w - 2i - dx]
    B2 = np.zeros((5, 128, 256), np.float32)
    for kh in range(5):
        for dx in range(2):
            for i in range(4):
                for kw in range(5):
                    wpos = 2 * i + dx + kw                       # pool1 column, < 12
                    for c in range(10):
                        B2[kh, wpos * 10 + c,
                           dx * 128 + i * 20: dx * 128 + i * 20 + 20] = w2[:, c, kh, kw]
    b2p = np.zeros((1, 128), np.float32)
    b2p[0, :80] = np.tile(b2, 4)

    # fc1: fold the NCHW flatten (col = c*16 + h*4 + w) onto pool2's layout
    # (row slab = h, lanes = w*20 + c):  F1[h][w*20 + c, hid] = fw1[hid, c*16 + h*4 + w]
    F1 = np.zeros((4, 128, 128), np.float32)
    for h in range(4):
        for w in range(4):
            for c in range(20):
                F1[h, w * 20 + c, :50] = fw1[:, c * 16 + h * 4 + w]
    f1bp = np.zeros((1, 128), np.float32)
    f1bp[0, :50] = fb1

    # fc2: (10, 50) -> (128, 128); padded class lanes get bias -1e9.
    F2 = np.zeros((128, 128), np.float32)
    F2[:50, :10] = fw2.T
    f2bp = np.full((1, 128), -1e9, np.float32)
    f2bp[0, :10] = fb2

    bf = lambda a: jnp.asarray(a, jnp.bfloat16)
    f32 = lambda a: jnp.asarray(a, jnp.float32)
    return (bf(B1), f32(b1p), bf(B2), f32(b2p), bf(F1), f32(f1bp), bf(F2), f32(f2bp))


# ---------------------------------------------------------------------------
# Pure-JAX f32 reference (matches torch CNN.forward, eval mode)
# ---------------------------------------------------------------------------
def _conv2d_valid(x, w, b):
    k = w.shape[-1]
    oh, ow = x.shape[2] - k + 1, x.shape[3] - k + 1
    out = jnp.zeros((x.shape[0], w.shape[0], oh, ow), jnp.float32)
    for kh in range(k):
        for kw in range(k):
            patch = x[:, :, kh:kh + oh, kw:kw + ow]
            out = out + jnp.einsum("nchw,oc->nohw", patch, w[:, :, kh, kw],
                                   precision=jax.lax.Precision.HIGHEST)
    return out + b[None, :, None, None]


def _pool2x2(x):
    n, c, h, w = x.shape
    return x.reshape(n, c, h // 2, 2, w // 2, 2).max(axis=(3, 5))


def cnn_reference(x, params):
    w1, b1, w2, b2, fw1, fb1, fw2, fb2 = params
    y = jnp.maximum(_pool2x2(_conv2d_valid(x, w1, b1)), 0.0)
    y = jnp.maximum(_pool2x2(_conv2d_valid(y, w2, b2)), 0.0)
    y = y.reshape(y.shape[0], -1)                      # NCHW flatten == .view(-1, 320)
    y = jnp.maximum(jnp.dot(y, fw1.T, precision=jax.lax.Precision.HIGHEST) + fb1, 0.0)
    y = jnp.dot(y, fw2.T, precision=jax.lax.Precision.HIGHEST) + fb2
    return jax.nn.log_softmax(y, axis=-1)


# ---------------------------------------------------------------------------
# Parameter init (torch default-style uniform init)
# ---------------------------------------------------------------------------
def init_params(key):
    ks = jax.random.split(key, 8)

    def u(k, shape, fan_in):
        bound = 1.0 / jnp.sqrt(fan_in)
        return jax.random.uniform(k, shape, jnp.float32, -bound, bound)

    w1 = u(ks[0], (10, 1, 5, 5), 1 * 5 * 5)
    b1 = u(ks[1], (10,), 1 * 5 * 5)
    w2 = u(ks[2], (20, 10, 5, 5), 10 * 5 * 5)
    b2 = u(ks[3], (20,), 10 * 5 * 5)
    fw1 = u(ks[4], (50, 320), 320)
    fb1 = u(ks[5], (50,), 320)
    fw2 = u(ks[6], (10, 50), 50)
    fb2 = u(ks[7], (10,), 50)
    return (w1, b1, w2, b2, fw1, fb1, fw2, fb2)


if __name__ == "__main__":
    key = jax.random.PRNGKey(0)
    k_x, k_p = jax.random.split(key)
    # MNIST-shaped input: batch=2, 1x28x28 (spatial size fixed by the 320-wide flatten).
    x = jax.random.normal(k_x, (2, 1, 28, 28), jnp.float32)
    params = init_params(k_p)

    packed = pack_params(params)                 # one-time packing, outside the jit
    fwd = jax.jit(cnn_forward)
    out = jax.block_until_ready(fwd(x, packed))

    assert out.shape == (2, 10)
    # log_softmax rows exp-sum to ~1
    assert jnp.allclose(jnp.exp(out).sum(axis=1), 1.0, atol=1e-3)
    # numerical check against the pure-JAX f32 reference (bf16 matmul tolerance)
    ref = cnn_reference(x, params)
    max_err = float(jnp.max(jnp.abs(out - ref)))
    assert max_err < 0.1, f"mismatch vs reference forward: max |err| = {max_err}"
    print("KERNEL_OK")
</pallas_src>

<mosaic_0001>
module attributes {stable_mosaic.version = 11 : i64} {
  func.func @_cnn_fused_kernel(%arg0: i32, %arg1: memref<28x16x28xbf16, #tpu.memory_space<vmem>>, %arg2: memref<5x28x256xbf16, #tpu.memory_space<vmem>>, %arg3: memref<1x128xf32, #tpu.memory_space<vmem>>, %arg4: memref<5x128x256xbf16, #tpu.memory_space<vmem>>, %arg5: memref<1x128xf32, #tpu.memory_space<vmem>>, %arg6: memref<4x128x128xbf16, #tpu.memory_space<vmem>>, %arg7: memref<1x128xf32, #tpu.memory_space<vmem>>, %arg8: memref<128x128xbf16, #tpu.memory_space<vmem>>, %arg9: memref<1x128xf32, #tpu.memory_space<vmem>>, %arg10: memref<16x128xf32, #tpu.memory_space<vmem>>) attributes {dimension_semantics = [#tpu.dimension_semantics<parallel>], iteration_bounds = array<i64: 1>, scalar_prefetch = 0 : i64, scratch_operands = 0 : i64, tpu.core_type = #tpu.core_type<tc>, window_params = [{transform_indices = @transform_0, window_bounds = array<i64: 28, 16, 28>}, {pipeline_mode = #tpu.pipeline_mode<synchronous>, transform_indices = @transform_1, window_bounds = array<i64: 5, 28, 256>}, {pipeline_mode = #tpu.pipeline_mode<synchronous>, transform_indices = @transform_2, window_bounds = array<i64: 1, 128>}, {pipeline_mode = #tpu.pipeline_mode<synchronous>, transform_indices = @transform_3, window_bounds = array<i64: 5, 128, 256>}, {pipeline_mode = #tpu.pipeline_mode<synchronous>, transform_indices = @transform_4, window_bounds = array<i64: 1, 128>}, {pipeline_mode = #tpu.pipeline_mode<synchronous>, transform_indices = @transform_5, window_bounds = array<i64: 4, 128, 128>}, {pipeline_mode = #tpu.pipeline_mode<synchronous>, transform_indices = @transform_6, window_bounds = array<i64: 1, 128>}, {pipeline_mode = #tpu.pipeline_mode<synchronous>, transform_indices = @transform_7, window_bounds = array<i64: 128, 128>}, {pipeline_mode = #tpu.pipeline_mode<synchronous>, transform_indices = @transform_8, window_bounds = array<i64: 1, 128>}, {transform_indices = @transform_9, window_bounds = array<i64: 16, 128>}]} {
    %c0 = arith.constant 0 : index
    %c0_0 = arith.constant 0 : index
    %c0_1 = arith.constant 0 : index
    %0 = vector.load %arg1[%c0, %c0_0, %c0_1] : memref<28x16x28xbf16, #tpu.memory_space<vmem>>, vector<24x16x28xbf16>
    %1 = vector.shape_cast %0 : vector<24x16x28xbf16> to vector<384x28xbf16>
    %c0_2 = arith.constant 0 : index
    %c0_3 = arith.constant 0 : index
    %c0_4 = arith.constant 0 : index
    %2 = vector.load %arg2[%c0_2, %c0_3, %c0_4] : memref<5x28x256xbf16, #tpu.memory_space<vmem>>, vector<1x28x256xbf16>
    %3 = vector.shape_cast %2 : vector<1x28x256xbf16> to vector<28x256xbf16>
    %cst = arith.constant dense<0.000000e+00> : vector<384x256xf32>
    %4 = tpu.matmul %1, %3, %cst {dimension_numbers = #tpu.dot_dimension_numbers<[1], [0], [0], [1], [0, 0, 1, 1], [], []>} : vector<384x28xbf16>, vector<28x256xbf16>, vector<384x256xf32> -> vector<384x256xf32>
    %c1 = arith.constant 1 : index
    %c0_5 = arith.constant 0 : index
    %c0_6 = arith.constant 0 : index
    %5 = vector.load %arg1[%c1, %c0_5, %c0_6] : memref<28x16x28xbf16, #tpu.memory_space<vmem>>, vector<24x16x28xbf16>
    %6 = vector.shape_cast %5 : vector<24x16x28xbf16> to vector<384x28xbf16>
    %c1_7 = arith.constant 1 : index
    %c0_8 = arith.constant 0 : index
    %c0_9 = arith.constant 0 : index
    %7 = vector.load %arg2[%c1_7, %c0_8, %c0_9] : memref<5x28x256xbf16, #tpu.memory_space<vmem>>, vector<1x28x256xbf16>
    %8 = vector.shape_cast %7 : vector<1x28x256xbf16> to vector<28x256xbf16>
    %cst_10 = arith.constant dense<0.000000e+00> : vector<384x256xf32>
    %9 = tpu.matmul %6, %8, %cst_10 {dimension_numbers = #tpu.dot_dimension_numbers<[1], [0], [0], [1], [0, 0, 1, 1], [], []>} : vector<384x28xbf16>, vector<28x256xbf16>, vector<384x256xf32> -> vector<384x256xf32>
    %10 = arith.addf %4, %9 : vector<384x256xf32>
    %c2 = arith.constant 2 : index
    %c0_11 = arith.constant 0 : index
    %c0_12 = arith.constant 0 : index
    %11 = vector.load %arg1[%c2, %c0_11, %c0_12] : memref<28x16x28xbf16, #tpu.memory_space<vmem>>, vector<24x16x28xbf16>
    %12 = vector.shape_cast %11 : vector<24x16x28xbf16> to vector<384x28xbf16>
    %c2_13 = arith.constant 2 : index
    %c0_14 = arith.constant 0 : index
    %c0_15 = arith.constant 0 : index
    %13 = vector.load %arg2[%c2_13, %c0_14, %c0_15] : memref<5x28x256xbf16, #tpu.memory_space<vmem>>, vector<1x28x256xbf16>
    %14 = vector.shape_cast %13 : vector<1x28x256xbf16> to vector<28x256xbf16>
    %cst_16 = arith.constant dense<0.000000e+00> : vector<384x256xf32>
    %15 = tpu.matmul %12, %14, %cst_16 {dimension_numbers = #tpu.dot_dimension_numbers<[1], [0], [0], [1], [0, 0, 1, 1], [], []>} : vector<384x28xbf16>, vector<28x256xbf16>, vector<384x256xf32> -> vector<384x256xf32>
    %16 = arith.addf %10, %15 : vector<384x256xf32>
    %c3 = arith.constant 3 : index
    %c0_17 = arith.constant 0 : index
    %c0_18 = arith.constant 0 : index
    %17 = vector.load %arg1[%c3, %c0_17, %c0_18] : memref<28x16x28xbf16, #tpu.memory_space<vmem>>, vector<24x16x28xbf16>
    %18 = vector.shape_cast %17 : vector<24x16x28xbf16> to vector<384x28xbf16>
    %c3_19 = arith.constant 3 : index
    %c0_20 = arith.constant 0 : index
    %c0_21 = arith.constant 0 : index
    %19 = vector.load %arg2[%c3_19, %c0_20, %c0_21] : memref<5x28x256xbf16, #tpu.memory_space<vmem>>, vector<1x28x256xbf16>
    %20 = vector.shape_cast %19 : vector<1x28x256xbf16> to vector<28x256xbf16>
    %cst_22 = arith.constant dense<0.000000e+00> : vector<384x256xf32>
    %21 = tpu.matmul %18, %20, %cst_22 {dimension_numbers = #tpu.dot_dimension_numbers<[1], [0], [0], [1], [0, 0, 1, 1], [], []>} : vector<384x28xbf16>, vector<28x256xbf16>, vector<384x256xf32> -> vector<384x256xf32>
    %22 = arith.addf %16, %21 : vector<384x256xf32>
    %c4 = arith.constant 4 : index
    %c0_23 = arith.constant 0 : index
    %c0_24 = arith.constant 0 : index
    %23 = vector.load %arg1[%c4, %c0_23, %c0_24] : memref<28x16x28xbf16, #tpu.memory_space<vmem>>, vector<24x16x28xbf16>
    %24 = vector.shape_cast %23 : vector<24x16x28xbf16> to vector<384x28xbf16>
    %c4_25 = arith.constant 4 : index
    %c0_26 = arith.constant 0 : index
    %c0_27 = arith.constant 0 : index
    %25 = vector.load %arg2[%c4_25, %c0_26, %c0_27] : memref<5x28x256xbf16, #tpu.memory_space<vmem>>, vector<1x28x256xbf16>
    %26 = vector.shape_cast %25 : vector<1x28x256xbf16> to vector<28x256xbf16>
    %cst_28 = arith.constant dense<0.000000e+00> : vector<384x256xf32>
    %27 = tpu.matmul %24, %26, %cst_28 {dimension_numbers = #tpu.dot_dimension_numbers<[1], [0], [0], [1], [0, 0, 1, 1], [], []>} : vector<384x28xbf16>, vector<28x256xbf16>, vector<384x256xf32> -> vector<384x256xf32>
    %28 = arith.addf %22, %27 : vector<384x256xf32>
    %29 = vector.shape_cast %28 : vector<384x256xf32> to vector<12x2x16x256xf32>
    %30 = vector.extract_strided_slice %29 {offsets = [0, 0, 0, 0], sizes = [12, 1, 16, 256], strides = [1, 1, 1, 1]} : vector<12x2x16x256xf32> to vector<12x1x16x256xf32>
    %31 = vector.shape_cast %30 : vector<12x1x16x256xf32> to vector<12x16x256xf32>
    %32 = vector.extract_strided_slice %29 {offsets = [0, 1, 0, 0], sizes = [12, 1, 16, 256], strides = [1, 1, 1, 1]} : vector<12x2x16x256xf32> to vector<12x1x16x256xf32>
    %33 = vector.shape_cast %32 : vector<12x1x16x256xf32> to vector<12x16x256xf32>
    %34 = arith.maximumf %31, %33 : vector<12x16x256xf32>
    %35 = vector.extract_strided_slice %34 {offsets = [0, 0, 0], sizes = [12, 16, 128], strides = [1, 1, 1]} : vector<12x16x256xf32> to vector<12x16x128xf32>
    %36 = vector.extract_strided_slice %34 {offsets = [0, 0, 128], sizes = [12, 16, 128], strides = [1, 1, 1]} : vector<12x16x256xf32> to vector<12x16x128xf32>
    %37 = arith.maximumf %35, %36 : vector<12x16x128xf32>
    %c0_29 = arith.constant 0 : index
    %c0_30 = arith.constant 0 : index
    %38 = vector.load %arg3[%c0_29, %c0_30] : memref<1x128xf32, #tpu.memory_space<vmem>>, vector<1x128xf32>
    %39 = vector.shape_cast %38 : vector<1x128xf32> to vector<1x1x128xf32>
    %40 = vector.broadcast %39 : vector<1x1x128xf32> to vector<12x16x128xf32>
    %41 = arith.addf %37, %40 : vector<12x16x128xf32>
    %cst_31 = arith.constant 0.000000e+00 : f32
    %42 = vector.broadcast %cst_31 : f32 to vector<12x16x128xf32>
    %43 = arith.maximumf %41, %42 : vector<12x16x128xf32>
    %44 = arith.truncf %43 : vector<12x16x128xf32> to vector<12x16x128xbf16>
    %45 = vector.extract_strided_slice %44 {offsets = [0, 0, 0], sizes = [8, 16, 128], strides = [1, 1, 1]} : vector<12x16x128xbf16> to vector<8x16x128xbf16>
    %46 = vector.shape_cast %45 : vector<8x16x128xbf16> to vector<128x128xbf16>
    %c0_32 = arith.constant 0 : index
    %c0_33 = arith.constant 0 : index
    %c0_34 = arith.constant 0 : index
    %47 = vector.load %arg4[%c0_32, %c0_33, %c0_34] : memref<5x128x256xbf16, #tpu.memory_space<vmem>>, vector<1x128x256xbf16>
    %48 = vector.shape_cast %47 : vector<1x128x256xbf16> to vector<128x256xbf16>
    %cst_35 = arith.constant dense<0.000000e+00> : vector<128x256xf32>
    %49 = tpu.matmul %46, %48, %cst_35 {dimension_numbers = #tpu.dot_dimension_numbers<[1], [0], [0], [1], [0, 0, 1, 1], [], []>} : vector<128x128xbf16>, vector<128x256xbf16>, vector<128x256xf32> -> vector<128x256xf32>
    %50 = vector.extract_strided_slice %44 {offsets = [1, 0, 0], sizes = [8, 16, 128], strides = [1, 1, 1]} : vector<12x16x128xbf16> to vector<8x16x128xbf16>
    %51 = vector.shape_cast %50 : vector<8x16x128xbf16> to vector<128x128xbf16>
    %c1_36 = arith.constant 1 : index
    %c0_37 = arith.constant 0 : index
    %c0_38 = arith.constant 0 : index
    %52 = vector.load %arg4[%c1_36, %c0_37, %c0_38] : memref<5x128x256xbf16, #tpu.memory_space<vmem>>, vector<1x128x256xbf16>
    %53 = vector.shape_cast %52 : vector<1x128x256xbf16> to vector<128x256xbf16>
    %cst_39 = arith.constant dense<0.000000e+00> : vector<128x256xf32>
    %54 = tpu.matmul %51, %53, %cst_39 {dimension_numbers = #tpu.dot_dimension_numbers<[1], [0], [0], [1], [0, 0, 1, 1], [], []>} : vector<128x128xbf16>, vector<128x256xbf16>, vector<128x256xf32> -> vector<128x256xf32>
    %55 = arith.addf %49, %54 : vector<128x256xf32>
    %56 = vector.extract_strided_slice %44 {offsets = [2, 0, 0], sizes = [8, 16, 128], strides = [1, 1, 1]} : vector<12x16x128xbf16> to vector<8x16x128xbf16>
    %57 = vector.shape_cast %56 : vector<8x16x128xbf16> to vector<128x128xbf16>
    %c2_40 = arith.constant 2 : index
    %c0_41 = arith.constant 0 : index
    %c0_42 = arith.constant 0 : index
    %58 = vector.load %arg4[%c2_40, %c0_41, %c0_42] : memref<5x128x256xbf16, #tpu.memory_space<vmem>>, vector<1x128x256xbf16>
    %59 = vector.shape_cast %58 : vector<1x128x256xbf16> to vector<128x256xbf16>
    %cst_43 = arith.constant dense<0.000000e+00> : vector<128x256xf32>
    %60 = tpu.matmul %57, %59, %cst_43 {dimension_numbers = #tpu.dot_dimension_numbers<[1], [0], [0], [1], [0, 0, 1, 1], [], []>} : vector<128x128xbf16>, vector<128x256xbf16>, vector<128x256xf32> -> vector<128x256xf32>
    %61 = arith.addf %55, %60 : vector<128x256xf32>
    %62 = vector.extract_strided_slice %44 {offsets = [3, 0, 0], sizes = [8, 16, 128], strides = [1, 1, 1]} : vector<12x16x128xbf16> to vector<8x16x128xbf16>
    %63 = vector.shape_cast %62 : vector<8x16x128xbf16> to vector<128x128xbf16>
    %c3_44 = arith.constant 3 : index
    %c0_45 = arith.constant 0 : index
    %c0_46 = arith.constant 0 : index
    %64 = vector.load %arg4[%c3_44, %c0_45, %c0_46] : memref<5x128x256xbf16, #tpu.memory_space<vmem>>, vector<1x128x256xbf16>
    %65 = vector.shape_cast %64 : vector<1x128x256xbf16> to vector<128x256xbf16>
    %cst_47 = arith.constant dense<0.000000e+00> : vector<128x256xf32>
    %66 = tpu.matmul %63, %65, %cst_47 {dimension_numbers = #tpu.dot_dimension_numbers<[1], [0], [0], [1], [0, 0, 1, 1], [], []>} : vector<128x128xbf16>, vector<128x256xbf16>, vector<128x256xf32> -> vector<128x256xf32>
    %67 = arith.addf %61, %66 : vector<128x256xf32>
    %68 = vector.extract_strided_slice %44 {offsets = [4, 0, 0], sizes = [8, 16, 128], strides = [1, 1, 1]} : vector<12x16x128xbf16> to vector<8x16x128xbf16>
    %69 = vector.shape_cast %68 : vector<8x16x128xbf16> to vector<128x128xbf16>
    %c4_48 = arith.constant 4 : index
    %c0_49 = arith.constant 0 : index
    %c0_50 = arith.constant 0 : index
    %70 = vector.load %arg4[%c4_48, %c0_49, %c0_50] : memref<5x128x256xbf16, #tpu.memory_space<vmem>>, vector<1x128x256xbf16>
    %71 = vector.shape_cast %70 : vector<1x128x256xbf16> to vector<128x256xbf16>
    %cst_51 = arith.constant dense<0.000000e+00> : vector<128x256xf32>
    %72 = tpu.matmul %69, %71, %cst_51 {dimension_numbers = #tpu.dot_dimension_numbers<[1], [0], [0], [1], [0, 0, 1, 1], [], []>} : vector<128x128xbf16>, vector<128x256xbf16>, vector<128x256xf32> -> vector<128x256xf32>
    %73 = arith.addf %67, %72 : vector<128x256xf32>
    %74 = vector.shape_cast %73 : vector<128x256xf32> to vector<4x2x16x256xf32>
    %75 = vector.extract_strided_slice %74 {offsets = [0, 0, 0, 0], sizes = [4, 1, 16, 256], strides = [1, 1, 1, 1]} : vector<4x2x16x256xf32> to vector<4x1x16x256xf32>
    %76 = vector.shape_cast %75 : vector<4x1x16x256xf32> to vector<4x16x256xf32>
    %77 = vector.extract_strided_slice %74 {offsets = [0, 1, 0, 0], sizes = [4, 1, 16, 256], strides = [1, 1, 1, 1]} : vector<4x2x16x256xf32> to vector<4x1x16x256xf32>
    %78 = vector.shape_cast %77 : vector<4x1x16x256xf32> to vector<4x16x256xf32>
    %79 = arith.maximumf %76, %78 : vector<4x16x256xf32>
    %80 = vector.extract_strided_slice %79 {offsets = [0, 0, 0], sizes = [4, 16, 128], strides = [1, 1, 1]} : vector<4x16x256xf32> to vector<4x16x128xf32>
    %81 = vector.extract_strided_slice %79 {offsets = [0, 0, 128], sizes = [4, 16, 128], strides = [1, 1, 1]} : vector<4x16x256xf32> to vector<4x16x128xf32>
    %82 = arith.maximumf %80, %81 : vector<4x16x128xf32>
    %c0_52 = arith.constant 0 : index
    %c0_53 = arith.constant 0 : index
    %83 = vector.load %arg5[%c0_52, %c0_53] : memref<1x128xf32, #tpu.memory_space<vmem>>, vector<1x128xf32>
    %84 = vector.shape_cast %83 : vector<1x128xf32> to vector<1x1x128xf32>
    %85 = vector.broadcast %84 : vector<1x1x128xf32> to vector<4x16x128xf32>
    %86 = arith.addf %82, %85 : vector<4x16x128xf32>
    %cst_54 = arith.constant 0.000000e+00 : f32
    %87 = vector.broadcast %cst_54 : f32 to vector<4x16x128xf32>
    %88 = arith.maximumf %86, %87 : vector<4x16x128xf32>
    %89 = arith.truncf %88 : vector<4x16x128xf32> to vector<4x16x128xbf16>
    %90 = vector.extract_strided_slice %89 {offsets = [0, 0, 0], sizes = [1, 16, 128], strides = [1, 1, 1]} : vector<4x16x128xbf16> to vector<1x16x128xbf16>
    %91 = vector.shape_cast %90 : vector<1x16x128xbf16> to vector<16x128xbf16>
    %c0_55 = arith.constant 0 : index
    %c0_56 = arith.constant 0 : index
    %c0_57 = arith.constant 0 : index
    %92 = vector.load %arg6[%c0_55, %c0_56, %c0_57] : memref<4x128x128xbf16, #tpu.memory_space<vmem>>, vector<1x128x128xbf16>
    %93 = vector.shape_cast %92 : vector<1x128x128xbf16> to vector<128x128xbf16>
    %cst_58 = arith.constant dense<0.000000e+00> : vector<16x128xf32>
    %94 = tpu.matmul %91, %93, %cst_58 {dimension_numbers = #tpu.dot_dimension_numbers<[1], [0], [0], [1], [0, 0, 1, 1], [], []>} : vector<16x128xbf16>, vector<128x128xbf16>, vector<16x128xf32> -> vector<16x128xf32>
    %95 = vector.extract_strided_slice %89 {offsets = [1, 0, 0], sizes = [1, 16, 128], strides = [1, 1, 1]} : vector<4x16x128xbf16> to vector<1x16x128xbf16>
    %96 = vector.shape_cast %95 : vector<1x16x128xbf16> to vector<16x128xbf16>
    %c1_59 = arith.constant 1 : index
    %c0_60 = arith.constant 0 : index
    %c0_61 = arith.constant 0 : index
    %97 = vector.load %arg6[%c1_59, %c0_60, %c0_61] : memref<4x128x128xbf16, #tpu.memory_space<vmem>>, vector<1x128x128xbf16>
    %98 = vector.shape_cast %97 : vector<1x128x128xbf16> to vector<128x128xbf16>
    %cst_62 = arith.constant dense<0.000000e+00> : vector<16x128xf32>
    %99 = tpu.matmul %96, %98, %cst_62 {dimension_numbers = #tpu.dot_dimension_numbers<[1], [0], [0], [1], [0, 0, 1, 1], [], []>} : vector<16x128xbf16>, vector<128x128xbf16>, vector<16x128xf32> -> vector<16x128xf32>
    %100 = arith.addf %94, %99 : vector<16x128xf32>
    %101 = vector.extract_strided_slice %89 {offsets = [2, 0, 0], sizes = [1, 16, 128], strides = [1, 1, 1]} : vector<4x16x128xbf16> to vector<1x16x128xbf16>
    %102 = vector.shape_cast %101 : vector<1x16x128xbf16> to vector<16x128xbf16>
    %c2_63 = arith.constant 2 : index
    %c0_64 = arith.constant 0 : index
    %c0_65 = arith.constant 0 : index
    %103 = vector.load %arg6[%c2_63, %c0_64, %c0_65] : memref<4x128x128xbf16, #tpu.memory_space<vmem>>, vector<1x128x128xbf16>
    %104 = vector.shape_cast %103 : vector<1x128x128xbf16> to vector<128x128xbf16>
    %cst_66 = arith.constant dense<0.000000e+00> : vector<16x128xf32>
    %105 = tpu.matmul %102, %104, %cst_66 {dimension_numbers = #tpu.dot_dimension_numbers<[1], [0], [0], [1], [0, 0, 1, 1], [], []>} : vector<16x128xbf16>, vector<128x128xbf16>, vector<16x128xf32> -> vector<16x128xf32>
    %106 = arith.addf %100, %105 : vector<16x128xf32>
    %107 = vector.extract_strided_slice %89 {offsets = [3, 0, 0], sizes = [1, 16, 128], strides = [1, 1, 1]} : vector<4x16x128xbf16> to vector<1x16x128xbf16>
    %108 = vector.shape_cast %107 : vector<1x16x128xbf16> to vector<16x128xbf16>
    %c3_67 = arith.constant 3 : index
    %c0_68 = arith.constant 0 : index
    %c0_69 = arith.constant 0 : index
    %109 = vector.load %arg6[%c3_67, %c0_68, %c0_69] : memref<4x128x128xbf16, #tpu.memory_space<vmem>>, vector<1x128x128xbf16>
    %110 = vector.shape_cast %109 : vector<1x128x128xbf16> to vector<128x128xbf16>
    %cst_70 = arith.constant dense<0.000000e+00> : vector<16x128xf32>
    %111 = tpu.matmul %108, %110, %cst_70 {dimension_numbers = #tpu.dot_dimension_numbers<[1], [0], [0], [1], [0, 0, 1, 1], [], []>} : vector<16x128xbf16>, vector<128x128xbf16>, vector<16x128xf32> -> vector<16x128xf32>
    %112 = arith.addf %106, %111 : vector<16x128xf32>
    %c0_71 = arith.constant 0 : index
    %c0_72 = arith.constant 0 : index
    %113 = vector.load %arg7[%c0_71, %c0_72] : memref<1x128xf32, #tpu.memory_space<vmem>>, vector<1x128xf32>
    %114 = vector.broadcast %113 : vector<1x128xf32> to vector<16x128xf32>
    %115 = arith.addf %112, %114 : vector<16x128xf32>
    %cst_73 = arith.constant 0.000000e+00 : f32
    %116 = vector.broadcast %cst_73 : f32 to vector<16x128xf32>
    %117 = arith.maximumf %115, %116 : vector<16x128xf32>
    %118 = arith.truncf %117 : vector<16x128xf32> to vector<16x128xbf16>
    %c0_74 = arith.constant 0 : index
    %c0_75 = arith.constant 0 : index
    %119 = vector.load %arg8[%c0_74, %c0_75] : memref<128x128xbf16, #tpu.memory_space<vmem>>, vector<128x128xbf16>
    %cst_76 = arith.constant dense<0.000000e+00> : vector<16x128xf32>
    %120 = tpu.matmul %118, %119, %cst_76 {dimension_numbers = #tpu.dot_dimension_numbers<[1], [0], [0], [1], [0, 0, 1, 1], [], []>} : vector<16x128xbf16>, vector<128x128xbf16>, vector<16x128xf32> -> vector<16x128xf32>
    %c0_77 = arith.constant 0 : index
    %c0_78 = arith.constant 0 : index
    %121 = vector.load %arg9[%c0_77, %c0_78] : memref<1x128xf32, #tpu.memory_space<vmem>>, vector<1x128xf32>
    %122 = vector.broadcast %121 : vector<1x128xf32> to vector<16x128xf32>
    %123 = arith.addf %120, %122 : vector<16x128xf32>
    %cst_79 = arith.constant dense<0xFF800000> : vector<16xf32>
    %124 = vector.multi_reduction <maximumf>, %123, %cst_79 [1] : vector<16x128xf32> to vector<16xf32>
    %125 = vector.shape_cast %124 : vector<16xf32> to vector<16x1xf32>
    %126 = vector.broadcast %125 : vector<16x1xf32> to vector<16x128xf32>
    %127 = arith.subf %123, %126 : vector<16x128xf32>
    %128 = math.exp %127 : vector<16x128xf32>
    %cst_80 = arith.constant dense<0.000000e+00> : vector<16xf32>
    %129 = vector.multi_reduction <add>, %128, %cst_80 [1] : vector<16x128xf32> to vector<16xf32>
    %130 = vector.shape_cast %129 : vector<16xf32> to vector<16x1xf32>
    %131 = math.log %130 : vector<16x1xf32>
    %132 = vector.broadcast %131 : vector<16x1xf32> to vector<16x128xf32>
    %133 = arith.subf %127, %132 : vector<16x128xf32>
    %c0_81 = arith.constant 0 : index
    %c0_82 = arith.constant 0 : index
    %134 = vector.load %arg10[%c0_81, %c0_82] : memref<16x128xf32, #tpu.memory_space<vmem>>, vector<16x128xf32>
    tpu.vector_store %arg10[%c0_81, %c0_82], %133 {strides = array<i32>} : memref<16x128xf32, #tpu.memory_space<vmem>>, vector<16x128xf32>,
    return
  }
  func.func @transform_0(%arg0: i32) -> (i32, i32, i32) {
    %c0_i32 = arith.constant 0 : i32
    %c0_i32_0 = arith.constant 0 : i32
    %c0_i32_1 = arith.constant 0 : i32
    return %c0_i32, %arg0, %c0_i32_0 : i32, i32, i32
  }
  func.func @transform_1(%arg0: i32) -> (i32, i32, i32) {
    %c0_i32 = arith.constant 0 : i32
    %c0_i32_0 = arith.constant 0 : i32
    %c0_i32_1 = arith.constant 0 : i32
    %c0_i32_2 = arith.constant 0 : i32
    return %c0_i32, %c0_i32_0, %c0_i32_1 : i32, i32, i32
  }
  func.func @transform_2(%arg0: i32) -> (i32, i32) {
    %c0_i32 = arith.constant 0 : i32
    %c0_i32_0 = arith.constant 0 : i32
    %c0_i32_1 = arith.constant 0 : i32
    return %c0_i32, %c0_i32_0 : i32, i32
  }
  func.func @transform_3(%arg0: i32) -> (i32, i32, i32) {
    %c0_i32 = arith.constant 0 : i32
    %c0_i32_0 = arith.constant 0 : i32
    %c0_i32_1 = arith.constant 0 : i32
    %c0_i32_2 = arith.constant 0 : i32
    return %c0_i32, %c0_i32_0, %c0_i32_1 : i32, i32, i32
  }
  func.func @transform_4(%arg0: i32) -> (i32, i32) {
    %c0_i32 = arith.constant 0 : i32
    %c0_i32_0 = arith.constant 0 : i32
    %c0_i32_1 = arith.constant 0 : i32
    return %c0_i32, %c0_i32_0 : i32, i32
  }
  func.func @transform_5(%arg0: i32) -> (i32, i32, i32) {
    %c0_i32 = arith.constant 0 : i32
    %c0_i32_0 = arith.constant 0 : i32
    %c0_i32_1 = arith.constant 0 : i32
    %c0_i32_2 = arith.constant 0 : i32
    return %c0_i32, %c0_i32_0, %c0_i32_1 : i32, i32, i32
  }
  func.func @transform_6(%arg0: i32) -> (i32, i32) {
    %c0_i32 = arith.constant 0 : i32
    %c0_i32_0 = arith.constant 0 : i32
    %c0_i32_1 = arith.constant 0 : i32
    return %c0_i32, %c0_i32_0 : i32, i32
  }
  func.func @transform_7(%arg0: i32) -> (i32, i32) {
    %c0_i32 = arith.constant 0 : i32
    %c0_i32_0 = arith.constant 0 : i32
    %c0_i32_1 = arith.constant 0 : i32
    return %c0_i32, %c0_i32_0 : i32, i32
  }
  func.func @transform_8(%arg0: i32) -> (i32, i32) {
    %c0_i32 = arith.constant 0 : i32
    %c0_i32_0 = arith.constant 0 : i32
    %c0_i32_1 = arith.constant 0 : i32
    return %c0_i32, %c0_i32_0 : i32, i32
  }
  func.func @transform_9(%arg0: i32) -> (i32, i32) {
    %c0_i32 = arith.constant 0 : i32
    %c0_i32_0 = arith.constant 0 : i32
    return %arg0, %c0_i32 : i32, i32
  }
}

</mosaic_0001>

<llo_original>
// kernel: cnn_forward.1
$region0: #{cnn_forward.1}
  #allocation0 [shape = 'u32[]', space=smem, size = 0x4, offset = 0x4, fixed_abs, tag = 'smem constant byte address 0x4 - core index']
  #allocation1 [shape = 'u32[144,128]{1,0:T(1,128)}', space=vmem, size = 0x12000, scoped, tag = 'internal scratch']
  %s0 = inlined_call_operand.vmem [shape: bf16[28,16,28], index: 0, kind: input, shape index: {}]
  %s1 = inlined_call_operand.hbm [shape: bf16[5,28,256], index: 1, kind: input, shape index: {}]
  %s2 = inlined_call_operand.vmem [shape: f32[1,128], index: 2, kind: input, shape index: {}]
  %s3 = inlined_call_operand.hbm [shape: bf16[5,128,256], index: 3, kind: input, shape index: {}]
  %s4 = inlined_call_operand.vmem [shape: f32[1,128], index: 4, kind: input, shape index: {}]
  %s5 = inlined_call_operand.vmem [shape: bf16[4,128,128], index: 5, kind: input, shape index: {}]
  %s6 = inlined_call_operand.vmem [shape: f32[1,128], index: 6, kind: input, shape index: {}]
  %s7 = inlined_call_operand.vmem [shape: bf16[128,128], index: 7, kind: input, shape index: {}]
  %s8 = inlined_call_operand.vmem [shape: f32[1,128], index: 8, kind: input, shape index: {}]
  %s9 = inlined_call_operand.vmem [shape: f32[16,128], index: 9, kind: output, shape index: {}]
  %s10 = sld [smem:[#allocation0]]
  $region54: #{cnn_forward.1} parent=0
    _
  %s12 = ssub.s32 1, %s10
  %s13 = scalar_select 0, %s12, %s10
  $region1: #{cnn_forward.1} parent=0
    #allocation2 [shape = 'u8[81920]{0}', space=vmem, size = 0x14000, scoped, tag = 'input window, operand 1, single buffered']
    #allocation3 [shape = 's32[1]{0}', space=sflag, size = 0x4, scoped, tag = 'scoped memory for cnn_forward.1']
    #allocation4 [shape = 'u8[327680]{0}', space=vmem, size = 0x50000, scoped, tag = 'input window, operand 3, single buffered']
    #allocation5 [shape = 's32[1]{0}', space=sflag, size = 0x4, scoped, tag = 'scoped memory for cnn_forward.1']
    %14 = vsyncpa [#allocation3], 0
    %15 = vsyncpa [#allocation5], 0
    // Predicated region
    $region2: #{cnn_forward.1} parent=1 // pred_check
      _
    $region3: #{cnn_forward.1} parent=1 // pred_check_branch
      %17 = sbr.rel (0) target = $region5
    $region4: #{cnn_forward.1} parent=1 // pred_region
      _
    $region5: #{cnn_forward.1} parent=1 // pred_fallthru
      _
    // Predicated region
    $region6: #{cnn_forward.1} parent=1 // pred_check
      _
    $region7: #{cnn_forward.1} parent=1 // pred_check_branch
      %19 = sbr.rel (0) target = $region9
    $region8: #{cnn_forward.1} parent=1 // pred_region
      %s21 = ssub.s32 2560, 2560
      %22 = vsyncadd [#allocation3], %s21
      %s23 = sshll.u32 [#allocation2], 4
      %s24 = int_to_ptr.vmem [resolvable:$true] %s23
      %29 = dma.hbm_to_vmem [thread:$0]  %s1, 2560, %s24, [#allocation3], 128, 128, 8
    $region9: #{cnn_forward.1} parent=1 // pred_fallthru
      _
    // Predicated region
    $region10: #{cnn_forward.1} parent=1 // pred_check
      _
    $region11: #{cnn_forward.1} parent=1 // pred_check_branch
      %31 = sbr.rel (0) target = $region13
    $region12: #{cnn_forward.1} parent=1 // pred_region
      _
    $region13: #{cnn_forward.1} parent=1 // pred_fallthru
      _
    // Predicated region
    $region14: #{cnn_forward.1} parent=1 // pred_check
      _
    $region15: #{cnn_forward.1} parent=1 // pred_check_branch
      %33 = sbr.rel (0) target = $region17
    $region16: #{cnn_forward.1} parent=1 // pred_region
      %s35 = ssub.s32 10240, 10240
      %36 = vsyncadd [#allocation5], %s35
      %s37 = sshll.u32 [#allocation4], 4
      %s38 = int_to_ptr.vmem [resolvable:$true] %s37
      %43 = dma.hbm_to_vmem [thread:$0]  %s3, 10240, %s38, [#allocation5], 128, 128, 8
    $region17: #{cnn_forward.1} parent=1 // pred_fallthru
      _
    // Predicated region
    $region18: #{cnn_forward.1} parent=1 // pred_check
      _
    $region19: #{cnn_forward.1} parent=1 // pred_check_branch
      %45 = sbr.rel (0) target = $region21
    $region20: #{cnn_forward.1} parent=1 // pred_region
      _
    $region21: #{cnn_forward.1} parent=1 // pred_fallthru
      _
    // Predicated region
    $region22: #{cnn_forward.1} parent=1 // pred_check
      _
    $region23: #{cnn_forward.1} parent=1 // pred_check_branch
      %47 = sbr.rel (0) target = $region25
    $region24: #{cnn_forward.1} parent=1 // pred_region
      _
    $region25: #{cnn_forward.1} parent=1 // pred_fallthru
      _
    // Predicated region
    $region26: #{cnn_forward.1} parent=1 // pred_check
      _
    $region27: #{cnn_forward.1} parent=1 // pred_check_branch
      %49 = sbr.rel (0) target = $region29
    $region28: #{cnn_forward.1} parent=1 // pred_region
      _
    $region29: #{cnn_forward.1} parent=1 // pred_fallthru
      _
    // Predicated region
    $region30: #{cnn_forward.1} parent=1 // pred_check
      _
    $region31: #{cnn_forward.1} parent=1 // pred_check_branch
      %51 = sbr.rel (0) target = $region33
    $region32: #{cnn_forward.1} parent=1 // pred_region
      _
    $region33: #{cnn_forward.1} parent=1 // pred_fallthru
      _
    // Predicated region
    $region34: #{cnn_forward.1} parent=1 // pred_check
      _
    $region35: #{cnn_forward.1} parent=1 // pred_check_branch
      %53 = sbr.rel (0) target = $region37
    $region36: #{cnn_forward.1} parent=1 // pred_region
      _
    $region37: #{cnn_forward.1} parent=1 // pred_fallthru
      _
    // Predicated region
    $region38: #{cnn_forward.1} parent=1 // pred_check
      _
    $region39: #{cnn_forward.1} parent=1 // pred_check_branch
      %55 = sbr.rel (0) target = $region41
    $region40: #{cnn_forward.1} parent=1 // pred_region
      %56 = dma.done [#allocation3], 2560
    $region41: #{cnn_forward.1} parent=1 // pred_fallthru
      _
    // Predicated region
    $region42: #{cnn_forward.1} parent=1 // pred_check
      _
    $region43: #{cnn_forward.1} parent=1 // pred_check_branch
      %58 = sbr.rel (0) target = $region45
    $region44: #{cnn_forward.1} parent=1 // pred_region
      %59 = dma.done [#allocation5], 10240
    $region45: #{cnn_forward.1} parent=1 // pred_fallthru
      _
    %v61 = vld [vmem:[%s0] sm:$0xf]
    %v62 = vld [vmem:[%s0 + $0x4] sm:$0xf]
    %v63 = vld [vmem:[%s0 + $0x8] sm:$0xf]
    %v64 = vld [vmem:[%s0 + $0xc] sm:$0xf]
    %v65 = vld [vmem:[%s0 + $0x10] sm:$0xf]
    %v66 = vld [vmem:[%s0 + $0x14] sm:$0xf]
    %v67 = vld [vmem:[%s0 + $0x18] sm:$0xf]
    %v68 = vld [vmem:[%s0 + $0x1c] sm:$0xf]
    %v69 = vld [vmem:[%s0 + $0x20] sm:$0xf]
    %v70 = vld [vmem:[%s0 + $0x24] sm:$0xf]
    %v71 = vld [vmem:[%s0 + $0x28] sm:$0xf]
    %v72 = vld [vmem:[%s0 + $0x2c] sm:$0xf]
    %v73 = vld [vmem:[%s0 + $0x30] sm:$0xf]
    %v74 = vld [vmem:[%s0 + $0x34] sm:$0xf]
    %v75 = vld [vmem:[%s0 + $0x38] sm:$0xf]
    %v76 = vld [vmem:[%s0 + $0x3c] sm:$0xf]
    %v77 = vld [vmem:[%s0 + $0x40] sm:$0xf]
    %v78 = vld [vmem:[%s0 + $0x44] sm:$0xf]
    %v79 = vld [vmem:[%s0 + $0x48] sm:$0xf]
    %v80 = vld [vmem:[%s0 + $0x4c] sm:$0xf]
    %v81 = vld [vmem:[%s0 + $0x50] sm:$0xf]
    %v82 = vld [vmem:[%s0 + $0x54] sm:$0xf]
    %v83 = vld [vmem:[%s0 + $0x58] sm:$0xf]
    %v84 = vld [vmem:[%s0 + $0x5c] sm:$0xf]
    %v85 = vld [vmem:[%s0 + $0x60] sm:$0xf]
    %v86 = vld [vmem:[%s0 + $0x64] sm:$0xf]
    %v87 = vld [vmem:[%s0 + $0x68] sm:$0xf]
    %v88 = vld [vmem:[%s0 + $0x6c] sm:$0xf]
    %v89 = vld [vmem:[%s0 + $0x70] sm:$0xf]
    %v90 = vld [vmem:[%s0 + $0x74] sm:$0xf]
    %v91 = vld [vmem:[%s0 + $0x78] sm:$0xf]
    %v92 = vld [vmem:[%s0 + $0x7c] sm:$0xf]
    %v93 = vld [vmem:[%s0 + $0x80] sm:$0xf]
    %v94 = vld [vmem:[%s0 + $0x84] sm:$0xf]
    %v95 = vld [vmem:[%s0 + $0x88] sm:$0xf]
    %v96 = vld [vmem:[%s0 + $0x8c] sm:$0xf]
    %v97 = vld [vmem:[%s0 + $0x90] sm:$0xf]
    %v98 = vld [vmem:[%s0 + $0x94] sm:$0xf]
    %v99 = vld [vmem:[%s0 + $0x98] sm:$0xf]
    %v100 = vld [vmem:[%s0 + $0x9c] sm:$0xf]
    %v101 = vld [vmem:[%s0 + $0xa0] sm:$0xf]
    %v102 = vld [vmem:[%s0 + $0xa4] sm:$0xf]
    %v103 = vld [vmem:[%s0 + $0xa8] sm:$0xf]
    %v104 = vld [vmem:[%s0 + $0xac] sm:$0xf]
    %v105 = vld [vmem:[%s0 + $0xb0] sm:$0xf]
    %v106 = vld [vmem:[%s0 + $0xb4] sm:$0xf]
    %v107 = vld [vmem:[%s0 + $0xb8] sm:$0xf]
    %v108 = vld [vmem:[%s0 + $0xbc] sm:$0xf]
    %v109 = vld [vmem:[#allocation2] sm:$0xff]
    %v110 = vld [vmem:[#allocation2 + $0x8] sm:$0xff]
    %v111 = vld [vmem:[#allocation2 + $0x10] sm:$0xff]
    %v112 = vld [vmem:[#allocation2 + $0x18] sm:$0x33]
    %s113 = scalar_lea.vmem %s0, 8
    %v114 = vld [vmem:[%s113] sm:$0xf]
    %v115 = vld [vmem:[%s113 + $0x4] sm:$0xf]
    %v116 = vld [vmem:[%s113 + $0x8] sm:$0xf]
    %v117 = vld [vmem:[%s113 + $0xc] sm:$0xf]
    %v118 = vld [vmem:[%s113 + $0x10] sm:$0xf]
    %v119 = vld [vmem:[%s113 + $0x14] sm:$0xf]
    %v120 = vld [vmem:[%s113 + $0x18] sm:$0xf]
    %v121 = vld [vmem:[%s113 + $0x1c] sm:$0xf]
    %v122 = vld [vmem:[%s113 + $0x20] sm:$0xf]
    %v123 = vld [vmem:[%s113 + $0x24] sm:$0xf]
    %v124 = vld [vmem:[%s113 + $0x28] sm:$0xf]
    %v125 = vld [vmem:[%s113 + $0x2c] sm:$0xf]
    %v126 = vld [vmem:[%s113 + $0x30] sm:$0xf]
    %v127 = vld [vmem:[%s113 + $0x34] sm:$0xf]
    %v128 = vld [vmem:[%s113 + $0x38] sm:$0xf]
    %v129 = vld [vmem:[%s113 + $0x3c] sm:$0xf]
    %v130 = vld [vmem:[%s113 + $0x40] sm:$0xf]
    %v131 = vld [vmem:[%s113 + $0x44] sm:$0xf]
    %v132 = vld [vmem:[%s113 + $0x48] sm:$0xf]
    %v133 = vld [vmem:[%s113 + $0x4c] sm:$0xf]
    %v134 = vld [vmem:[%s113 + $0x50] sm:$0xf]
    %v135 = vld [vmem:[%s113 + $0x54] sm:$0xf]
    %v136 = vld [vmem:[%s113 + $0x58] sm:$0xf]
    %v137 = vld [vmem:[%s113 + $0x5c] sm:$0xf]
    %v138 = vld [vmem:[%s113 + $0x60] sm:$0xf]
    %v139 = vld [vmem:[%s113 + $0x64] sm:$0xf]
    %v140 = vld [vmem:[%s113 + $0x68] sm:$0xf]
    %v141 = vld [vmem:[%s113 + $0x6c] sm:$0xf]
    %v142 = vld [vmem:[%s113 + $0x70] sm:$0xf]
    %v143 = vld [vmem:[%s113 + $0x74] sm:$0xf]
    %v144 = vld [vmem:[%s113 + $0x78] sm:$0xf]
    %v145 = vld [vmem:[%s113 + $0x7c] sm:$0xf]
    %v146 = vld [vmem:[%s113 + $0x80] sm:$0xf]
    %v147 = vld [vmem:[%s113 + $0x84] sm:$0xf]
    %v148 = vld [vmem:[%s113 + $0x88] sm:$0xf]
    %v149 = vld [vmem:[%s113 + $0x8c] sm:$0xf]
    %v150 = vld [vmem:[%s113 + $0x90] sm:$0xf]
    %v151 = vld [vmem:[%s113 + $0x94] sm:$0xf]
    %v152 = vld [vmem:[%s113 + $0x98] sm:$0xf]
    %v153 = vld [vmem:[%s113 + $0x9c] sm:$0xf]
    %v154 = vld [vmem:[%s113 + $0xa0] sm:$0xf]
    %v155 = vld [vmem:[%s113 + $0xa4] sm:$0xf]
    %v156 = vld [vmem:[%s113 + $0xa8] sm:$0xf]
    %v157 = vld [vmem:[%s113 + $0xac] sm:$0xf]
    %v158 = vld [vmem:[%s113 + $0xb0] sm:$0xf]
    %v159 = vld [vmem:[%s113 + $0xb4] sm:$0xf]
    %v160 = vld [vmem:[%s113 + $0xb8] sm:$0xf]
    %v161 = vld [vmem:[%s113 + $0xbc] sm:$0xf]
    %s162 = scalar_lea.vmem [#allocation2], 32
    %v163 = vld [vmem:[%s162] sm:$0xff]
    %v164 = vld [vmem:[%s162 + $0x8] sm:$0xff]
    %v165 = vld [vmem:[%s162 + $0x10] sm:$0xff]
    %v166 = vld [vmem:[%s162 + $0x18] sm:$0x33]
    %v215 = vunpack.c.l.b16 %v114
    %v216 = vunpack.c.l.b16 %v115
    %v217 = vunpack.c.l.b16 %v116
    %v218 = vunpack.c.l.b16 %v117
    %v219 = vunpack.c.l.b16 %v118
    %v220 = vunpack.c.l.b16 %v119
    %v221 = vunpack.c.l.b16 %v120
    %v222 = vunpack.c.l.b16 %v121
    %v223 = vunpack.c.l.b16 %v122
    %v224 = vunpack.c.l.b16 %v123
    %v225 = vunpack.c.l.b16 %v124
    %v226 = vunpack.c.l.b16 %v125
    %v227 = vunpack.c.l.b16 %v126
    %v228 = vunpack.c.l.b16 %v127
    %v229 = vunpack.c.l.b16 %v128
    %v230 = vunpack.c.l.b16 %v129
    %v231 = vunpack.c.l.b16 %v130
    %v232 = vunpack.c.l.b16 %v131
    %v233 = vunpack.c.l.b16 %v132
    %v234 = vunpack.c.l.b16 %v133
    %v235 = vunpack.c.l.b16 %v134
    %v236 = vunpack.c.l.b16 %v135
    %v237 = vunpack.c.l.b16 %v136
    %v238 = vunpack.c.l.b16 %v137
    %v239 = vunpack.c.l.b16 %v138
    %v240 = vunpack.c.l.b16 %v139
    %v241 = vunpack.c.l.b16 %v140
    %v242 = vunpack.c.l.b16 %v141
    %v243 = vunpack.c.l.b16 %v142
    %v244 = vunpack.c.l.b16 %v143
    %v245 = vunpack.c.l.b16 %v144
    %v246 = vunpack.c.l.b16 %v145
    %v247 = vunpack.c.l.b16 %v146
    %v248 = vunpack.c.l.b16 %v147
    %v249 = vunpack.c.l.b16 %v148
    %v250 = vunpack.c.l.b16 %v149
    %v251 = vunpack.c.l.b16 %v150
    %v252 = vunpack.c.l.b16 %v151
    %v253 = vunpack.c.l.b16 %v152
    %v254 = vunpack.c.l.b16 %v153
    %v255 = vunpack.c.l.b16 %v154
    %v256 = vunpack.c.l.b16 %v155
    %v257 = vunpack.c.l.b16 %v156
    %v258 = vunpack.c.l.b16 %v157
    %v259 = vunpack.c.l.b16 %v158
    %v260 = vunpack.c.l.b16 %v159
    %v261 = vunpack.c.l.b16 %v160
    %v262 = vunpack.c.l.b16 %v161
    %v263 = vpack.c.b16 %v216, %v215
    %v264 = vpack.c.b16 %v218, %v217
    %v265 = vpack.c.b16 %v220, %v219
    %v266 = vpack.c.b16 %v222, %v221
    %v267 = vpack.c.b16 %v224, %v223
    %v268 = vpack.c.b16 %v226, %v225
    %v269 = vpack.c.b16 %v228, %v227
    %v270 = vpack.c.b16 %v230, %v229
    %v271 = vpack.c.b16 %v232, %v231
    %v272 = vpack.c.b16 %v234, %v233
    %v273 = vpack.c.b16 %v236, %v235
    %v274 = vpack.c.b16 %v238, %v237
    %v275 = vpack.c.b16 %v240, %v239
    %v276 = vpack.c.b16 %v242, %v241
    %v277 = vpack.c.b16 %v244, %v243
    %v278 = vpack.c.b16 %v246, %v245
    %v279 = vpack.c.b16 %v248, %v247
    %v280 = vpack.c.b16 %v250, %v249
    %v281 = vpack.c.b16 %v252, %v251
    %v282 = vpack.c.b16 %v254, %v253
    %v283 = vpack.c.b16 %v256, %v255
    %v284 = vpack.c.b16 %v258, %v257
    %v285 = vpack.c.b16 %v260, %v259
    %v286 = vpack.c.b16 %v262, %v261
    %v291 = vunpack.c.l.b16 %v163
    %v292 = vunpack.c.h.b16 %v163
    %v293 = vunpack.c.l.b16 %v164
    %v294 = vunpack.c.h.b16 %v164
    %v295 = vunpack.c.l.b16 %v165
    %v296 = vunpack.c.h.b16 %v165
    %v297 = vunpack.c.l.b16 %v166
    %v298 = vunpack.c.h.b16 %v166
    %v299 = vpack.c.b16 %v293, %v291
    %v300 = vpack.c.b16 %v294, %v292
    %v301 = vpack.c.b16 %v297, %v295
    %v302 = vpack.c.b16 %v298, %v296
    %vm305 = vcmask 228352
    %v307 = vsel %vm305, %v263, 0
    %v310 = vsel %vm305, %v264, 0
    %v313 = vsel %vm305, %v265, 0
    %v316 = vsel %vm305, %v266, 0
    %v319 = vsel %vm305, %v267, 0
    %v322 = vsel %vm305, %v268, 0
    %v325 = vsel %vm305, %v269, 0
    %v328 = vsel %vm305, %v270, 0
    %v331 = vsel %vm305, %v271, 0
    %v334 = vsel %vm305, %v272, 0
    %v337 = vsel %vm305, %v273, 0
    %v340 = vsel %vm305, %v274, 0
    %v343 = vsel %vm305, %v275, 0
    %v346 = vsel %vm305, %v276, 0
    %v349 = vsel %vm305, %v277, 0
    %v352 = vsel %vm305, %v278, 0
    %v355 = vsel %vm305, %v279, 0
    %v358 = vsel %vm305, %v280, 0
    %v361 = vsel %vm305, %v281, 0
    %v364 = vsel %vm305, %v282, 0
    %v367 = vsel %vm305, %v283, 0
    %v370 = vsel %vm305, %v284, 0
    %v373 = vsel %vm305, %v285, 0
    %v376 = vsel %vm305, %v286, 0
    %vm378 = vcmask 1045504
    %v380 = vsel %vm378, %v301, 0
    %v383 = vsel %vm378, %v302, 0
    %385 = vmatprep.subr.bf16.mxu0 %v300
    %386 = vmatpush1.bf16.msra.mxu0 %v299
    %387 = vmatprep.subr.bf16.mxu0 %v383
    %388 = vmatpush1.bf16.msra.mxu0 %v380
    %389 = vmatprep.subr.bf16.mxu0 0
    %390 = vmatpush1.bf16.msra.mxu0 0
    %391 = vmatprep.subr.bf16.mxu0 0
    %392 = vmatpush1.bf16.msra.mxu0 0
    %393 = vmatprep.subr.bf16.mxu0 0
    %394 = vmatpush1.bf16.msra.mxu0 0
    %395 = vmatprep.subr.bf16.mxu0 0
    %396 = vmatpush1.bf16.msra.mxu0 0
    %397 = vmatprep.subr.bf16.mxu0 0
    %398 = vmatpush1.bf16.msra.mxu0 0
    %399 = vmatprep.subr.bf16.mxu0 0
    %400 = vmatpush1.bf16.msra.mxu0 0
    %401 = vmatprep.subr.bf16.mxu0 0
    %402 = vmatpush1.bf16.msra.mxu0 0
    %403 = vmatprep.subr.bf16.mxu0 0
    %404 = vmatpush1.bf16.msra.mxu0 0
    %405 = vmatprep.subr.bf16.mxu0 0
    %406 = vmatpush1.bf16.msra.mxu0 0
    %407 = vmatprep.subr.bf16.mxu0 0
    %408 = vmatpush1.bf16.msra.mxu0 0
    %409 = vmatprep.subr.bf16.mxu0 0
    %410 = vmatpush1.bf16.msra.mxu0 0
    %411 = vmatprep.subr.bf16.mxu0 0
    %412 = vmatpush1.bf16.msra.mxu0 0
    %413 = vmatprep.subr.bf16.mxu0 0
    %414 = vmatpush1.bf16.msra.mxu0 0
    %415 = vmatprep.subr.bf16.mxu0 0
    %416 = vmatpush1.bf16.msra.mxu0 0
    %417 = vmatprep.mubr.bf16.mxu0 0
    %418 = vmatmul.mubr.bf16.gmra.mrb[0].mxu0 %v307
    %v419 = vpop.f32.mrb[0].mxu0
    %v420 = vadd.f32 0.0, %v419
    %v421 = vpop.f32.mrb[0].mxu0
    %v422 = vadd.f32 0.0, %v421
    %v423 = vpop.f32.mrb[0].mxu0
    %v424 = vadd.f32 0.0, %v423
    %v425 = vpop.f32.mrb[0].mxu0
    %v426 = vadd.f32 0.0, %v425
    %427 = vmatprep.mubr.bf16.mxu0 0
    %428 = vmatmul.mubr.bf16.gmra.mrb[0].mxu0 %v310
    %v429 = vpop.f32.mrb[0].mxu0
    %v430 = vadd.f32 0.0, %v429
    %v431 = vpop.f32.mrb[0].mxu0
    %v432 = vadd.f32 0.0, %v431
    %v433 = vpop.f32.mrb[0].mxu0
    %v434 = vadd.f32 0.0, %v433
    %v435 = vpop.f32.mrb[0].mxu0
    %v436 = vadd.f32 0.0, %v435
    %437 = vmatprep.mubr.bf16.mxu0 0
    %438 = vmatmul.mubr.bf16.gmra.mrb[0].mxu0 %v313
    %v439 = vpop.f32.mrb[0].mxu0
    %v440 = vadd.f32 0.0, %v439
    %v441 = vpop.f32.mrb[0].mxu0
    %v442 = vadd.f32 0.0, %v441
    %v443 = vpop.f32.mrb[0].mxu0
    %v444 = vadd.f32 0.0, %v443
    %v445 = vpop.f32.mrb[0].mxu0
    %v446 = vadd.f32 0.0, %v445
    %447 = vmatprep.mubr.bf16.mxu0 0
    %448 = vmatmul.mubr.bf16.gmra.mrb[0].mxu0 %v316
    %v449 = vpop.f32.mrb[0].mxu0
    %v450 = vadd.f32 0.0, %v449
    %v451 = vpop.f32.mrb[0].mxu0
    %v452 = vadd.f32 0.0, %v451
    %v453 = vpop.f32.mrb[0].mxu0
    %v454 = vadd.f32 0.0, %v453
    %v455 = vpop.f32.mrb[0].mxu0
    %v456 = vadd.f32 0.0, %v455
    %457 = vmatprep.mubr.bf16.mxu0 0
    %458 = vmatmul.mubr.bf16.gmra.mrb[0].mxu0 %v319
    %v459 = vpop.f32.mrb[0].mxu0
    %v460 = vadd.f32 0.0, %v459
    %v461 = vpop.f32.mrb[0].mxu0
    %v462 = vadd.f32 0.0, %v461
    %v463 = vpop.f32.mrb[0].mxu0
    %v464 = vadd.f32 0.0, %v463
    %v465 = vpop.f32.mrb[0].mxu0
    %v466 = vadd.f32 0.0, %v465
    %467 = vmatprep.mubr.bf16.mxu0 0
    %468 = vmatmul.mubr.bf16.gmra.mrb[0].mxu0 %v322
    %v469 = vpop.f32.mrb[0].mxu0
    %v470 = vadd.f32 0.0, %v469
    %v471 = vpop.f32.mrb[0].mxu0
    %v472 = vadd.f32 0.0, %v471
    %v473 = vpop.f32.mrb[0].mxu0
    %v474 = vadd.f32 0.0, %v473
    %v475 = vpop.f32.mrb[0].mxu0
    %v476 = vadd.f32 0.0, %v475
    %477 = vmatprep.mubr.bf16.mxu0 0
    %478 = vmatmul.mubr.bf16.gmra.mrb[0].mxu0 %v325
    %v479 = vpop.f32.mrb[0].mxu0
    %v480 = vadd.f32 0.0, %v479
    %v481 = vpop.f32.mrb[0].mxu0
    %v482 = vadd.f32 0.0, %v481
    %v483 = vpop.f32.mrb[0].mxu0
    %v484 = vadd.f32 0.0, %v483
    %v485 = vpop.f32.mrb[0].mxu0
    %v486 = vadd.f32 0.0, %v485
    %487 = vmatprep.mubr.bf16.mxu0 0
    %488 = vmatmul.mubr.bf16.gmra.mrb[0].mxu0 %v328
    %v489 = vpop.f32.mrb[0].mxu0
    %v490 = vadd.f32 0.0, %v489
    %v491 = vpop.f32.mrb[0].mxu0
    %v492 = vadd.f32 0.0, %v491
    %v493 = vpop.f32.mrb[0].mxu0
    %v494 = vadd.f32 0.0, %v493
    %v495 = vpop.f32.mrb[0].mxu0
    %v496 = vadd.f32 0.0, %v495
    %497 = vmatprep.mubr.bf16.mxu0 0
    %498 = vmatmul.mubr.bf16.gmra.mrb[0].mxu0 %v331
    %v499 = vpop.f32.mrb[0].mxu0
    %v500 = vadd.f32 0.0, %v499
    %v501 = vpop.f32.mrb[0].mxu0
    %v502 = vadd.f32 0.0, %v501
    %v503 = vpop.f32.mrb[0].mxu0
    %v504 = vadd.f32 0.0, %v503
    %v505 = vpop.f32.mrb[0].mxu0
    %v506 = vadd.f32 0.0, %v505
    %507 = vmatprep.mubr.bf16.mxu0 0
    %508 = vmatmul.mubr.bf16.gmra.mrb[0].mxu0 %v334
    %v509 = vpop.f32.mrb[0].mxu0
    %v510 = vadd.f32 0.0, %v509
    %v511 = vpop.f32.mrb[0].mxu0
    %v512 = vadd.f32 0.0, %v511
    %v513 = vpop.f32.mrb[0].mxu0
    %v514 = vadd.f32 0.0, %v513
    %v515 = vpop.f32.mrb[0].mxu0
    %v516 = vadd.f32 0.0, %v515
    %517 = vmatprep.mubr.bf16.mxu0 0
    %518 = vmatmul.mubr.bf16.gmra.mrb[0].mxu0 %v337
    %v519 = vpop.f32.mrb[0].mxu0
    %v520 = vadd.f32 0.0, %v519
    %v521 = vpop.f32.mrb[0].mxu0
    %v522 = vadd.f32 0.0, %v521
    %v523 = vpop.f32.mrb[0].mxu0
    %v524 = vadd.f32 0.0, %v523
    %v525 = vpop.f32.mrb[0].mxu0
    %v526 = vadd.f32 0.0, %v525
    %527 = vmatprep.mubr.bf16.mxu0 0
    %528 = vmatmul.mubr.bf16.gmra.mrb[0].mxu0 %v340
    %v529 = vpop.f32.mrb[0].mxu0
    %v530 = vadd.f32 0.0, %v529
    %v531 = vpop.f32.mrb[0].mxu0
    %v532 = vadd.f32 0.0, %v531
    %v533 = vpop.f32.mrb[0].mxu0
    %v534 = vadd.f32 0.0, %v533
    %v535 = vpop.f32.mrb[0].mxu0
    %v536 = vadd.f32 0.0, %v535
    %537 = vmatprep.mubr.bf16.mxu0 0
    %538 = vmatmul.mubr.bf16.gmra.mrb[0].mxu0 %v343
    %v539 = vpop.f32.mrb[0].mxu0
    %v540 = vadd.f32 0.0, %v539
    %v541 = vpop.f32.mrb[0].mxu0
    %v542 = vadd.f32 0.0, %v541
    %v543 = vpop.f32.mrb[0].mxu0
    %v544 = vadd.f32 0.0, %v543
    %v545 = vpop.f32.mrb[0].mxu0
    %v546 = vadd.f32 0.0, %v545
    %547 = vmatprep.mubr.bf16.mxu0 0
    %548 = vmatmul.mubr.bf16.gmra.mrb[0].mxu0 %v346
    %v549 = vpop.f32.mrb[0].mxu0
    %v550 = vadd.f32 0.0, %v549
    %v551 = vpop.f32.mrb[0].mxu0
    %v552 = vadd.f32 0.0, %v551
    %v553 = vpop.f32.mrb[0].mxu0
    %v554 = vadd.f32 0.0, %v553
    %v555 = vpop.f32.mrb[0].mxu0
    %v556 = vadd.f32 0.0, %v555
    %557 = vmatprep.mubr.bf16.mxu0 0
    %558 = vmatmul.mubr.bf16.gmra.mrb[0].mxu0 %v349
    %v559 = vpop.f32.mrb[0].mxu0
    %v560 = vadd.f32 0.0, %v559
    %v561 = vpop.f32.mrb[0].mxu0
    %v562 = vadd.f32 0.0, %v561
    %v563 = vpop.f32.mrb[0].mxu0
    %v564 = vadd.f32 0.0, %v563
    %v565 = vpop.f32.mrb[0].mxu0
    %v566 = vadd.f32 0.0, %v565
    %567 = vmatprep.mubr.bf16.mxu0 0
    %568 = vmatmul.mubr.bf16.gmra.mrb[0].mxu0 %v352
    %v569 = vpop.f32.mrb[0].mxu0
    %v570 = vadd.f32 0.0, %v569
    %v571 = vpop.f32.mrb[0].mxu0
    %v572 = vadd.f32 0.0, %v571
    %v573 = vpop.f32.mrb[0].mxu0
    %v574 = vadd.f32 0.0, %v573
    %v575 = vpop.f32.mrb[0].mxu0
    %v576 = vadd.f32 0.0, %v575
    %577 = vmatprep.mubr.bf16.mxu0 0
    %578 = vmatmul.mubr.bf16.gmra.mrb[0].mxu0 %v355
    %v579 = vpop.f32.mrb[0].mxu0
    %v580 = vadd.f32 0.0, %v579
    %v581 = vpop.f32.mrb[0].mxu0
    %v582 = vadd.f32 0.0, %v581
    %v583 = vpop.f32.mrb[0].mxu0
    %v584 = vadd.f32 0.0, %v583
    %v585 = vpop.f32.mrb[0].mxu0
    %v586 = vadd.f32 0.0, %v585
    %587 = vmatprep.mubr.bf16.mxu0 0
    %588 = vmatmul.mubr.bf16.gmra.mrb[0].mxu0 %v358
    %v589 = vpop.f32.mrb[0].mxu0
    %v590 = vadd.f32 0.0, %v589
    %v591 = vpop.f32.mrb[0].mxu0
    %v592 = vadd.f32 0.0, %v591
    %v593 = vpop.f32.mrb[0].mxu0
    %v594 = vadd.f32 0.0, %v593
    %v595 = vpop.f32.mrb[0].mxu0
    %v596 = vadd.f32 0.0, %v595
    %597 = vmatprep.mubr.bf16.mxu0 0
    %598 = vmatmul.mubr.bf16.gmra.mrb[0].mxu0 %v361
    %v599 = vpop.f32.mrb[0].mxu0
    %v600 = vadd.f32 0.0, %v599
    %v601 = vpop.f32.mrb[0].mxu0
    %v602 = vadd.f32 0.0, %v601
    %v603 = vpop.f32.mrb[0].mxu0
    %v604 = vadd.f32 0.0, %v603
    %v605 = vpop.f32.mrb[0].mxu0
    %v606 = vadd.f32 0.0, %v605
    %607 = vmatprep.mubr.bf16.mxu0 0
    %608 = vmatmul.mubr.bf16.gmra.mrb[0].mxu0 %v364
    %v609 = vpop.f32.mrb[0].mxu0
    %v610 = vadd.f32 0.0, %v609
    %v611 = vpop.f32.mrb[0].mxu0
    %v612 = vadd.f32 0.0, %v611
    %v613 = vpop.f32.mrb[0].mxu0
    %v614 = vadd.f32 0.0, %v613
    %v615 = vpop.f32.mrb[0].mxu0
    %v616 = vadd.f32 0.0, %v615
    %617 = vmatprep.mubr.bf16.mxu0 0
    %618 = vmatmul.mubr.bf16.gmra.mrb[0].mxu0 %v367
    %v619 = vpop.f32.mrb[0].mxu0
    %v620 = vadd.f32 0.0, %v619
    %v621 = vpop.f32.mrb[0].mxu0
    %v622 = vadd.f32 0.0, %v621
    %v623 = vpop.f32.mrb[0].mxu0
    %v624 = vadd.f32 0.0, %v623
    %v625 = vpop.f32.mrb[0].mxu0
    %v626 = vadd.f32 0.0, %v625
    %627 = vmatprep.mubr.bf16.mxu0 0
    %628 = vmatmul.mubr.bf16.gmra.mrb[0].mxu0 %v370
    %v629 = vpop.f32.mrb[0].mxu0
    %v630 = vadd.f32 0.0, %v629
    %v631 = vpop.f32.mrb[0].mxu0
    %v632 = vadd.f32 0.0, %v631
    %v633 = vpop.f32.mrb[0].mxu0
    %v634 = vadd.f32 0.0, %v633
    %v635 = vpop.f32.mrb[0].mxu0
    %v636 = vadd.f32 0.0, %v635
    %637 = vmatprep.mubr.bf16.mxu0 0
    %638 = vmatmul.mubr.bf16.gmra.mrb[0].mxu0 %v373
    %v639 = vpop.f32.mrb[0].mxu0
    %v640 = vadd.f32 0.0, %v639
    %v641 = vpop.f32.mrb[0].mxu0
    %v642 = vadd.f32 0.0, %v641
    %v643 = vpop.f32.mrb[0].mxu0
    %v644 = vadd.f32 0.0, %v643
    %v645 = vpop.f32.mrb[0].mxu0
    %v646 = vadd.f32 0.0, %v645
    %647 = vmatprep.mubr.bf16.mxu0 0
    %648 = vmatmul.mubr.bf16.gmra.mrb[0].mxu0 %v376
    %v649 = vpop.f32.mrb[0].mxu0
    %v650 = vadd.f32 0.0, %v649
    %v651 = vpop.f32.mrb[0].mxu0
    %v652 = vadd.f32 0.0, %v651
    %v653 = vpop.f32.mrb[0].mxu0
    %v654 = vadd.f32 0.0, %v653
    %v655 = vpop.f32.mrb[0].mxu0
    %v656 = vadd.f32 0.0, %v655
    %657 = vdwg.mxu0
    %v706 = vunpack.c.l.b16 %v61
    %v707 = vunpack.c.l.b16 %v62
    %v708 = vunpack.c.l.b16 %v63
    %v709 = vunpack.c.l.b16 %v64
    %v710 = vunpack.c.l.b16 %v65
    %v711 = vunpack.c.l.b16 %v66
    %v712 = vunpack.c.l.b16 %v67
    %v713 = vunpack.c.l.b16 %v68
    %v714 = vunpack.c.l.b16 %v69
    %v715 = vunpack.c.l.b16 %v70
    %v716 = vunpack.c.l.b16 %v71
    %v717 = vunpack.c.l.b16 %v72
    %v718 = vunpack.c.l.b16 %v73
    %v719 = vunpack.c.l.b16 %v74
    %v720 = vunpack.c.l.b16 %v75
    %v721 = vunpack.c.l.b16 %v76
    %v722 = vunpack.c.l.b16 %v77
    %v723 = vunpack.c.l.b16 %v78
    %v724 = vunpack.c.l.b16 %v79
    %v725 = vunpack.c.l.b16 %v80
    %v726 = vunpack.c.l.b16 %v81
    %v727 = vunpack.c.l.b16 %v82
    %v728 = vunpack.c.l.b16 %v83
    %v729 = vunpack.c.l.b16 %v84
    %v730 = vunpack.c.l.b16 %v85
    %v731 = vunpack.c.l.b16 %v86
    %v732 = vunpack.c.l.b16 %v87
    %v733 = vunpack.c.l.b16 %v88
    %v734 = vunpack.c.l.b16 %v89
    %v735 = vunpack.c.l.b16 %v90
    %v736 = vunpack.c.l.b16 %v91
    %v737 = vunpack.c.l.b16 %v92
    %v738 = vunpack.c.l.b16 %v93
    %v739 = vunpack.c.l.b16 %v94
    %v740 = vunpack.c.l.b16 %v95
    %v741 = vunpack.c.l.b16 %v96
    %v742 = vunpack.c.l.b16 %v97
    %v743 = vunpack.c.l.b16 %v98
    %v744 = vunpack.c.l.b16 %v99
    %v745 = vunpack.c.l.b16 %v100
    %v746 = vunpack.c.l.b16 %v101
    %v747 = vunpack.c.l.b16 %v102
    %v748 = vunpack.c.l.b16 %v103
    %v749 = vunpack.c.l.b16 %v104
    %v750 = vunpack.c.l.b16 %v105
    %v751 = vunpack.c.l.b16 %v106
    %v752 = vunpack.c.l.b16 %v107
    %v753 = vunpack.c.l.b16 %v108
    %v754 = vpack.c.b16 %v707, %v706
    %v755 = vpack.c.b16 %v709, %v708
    %v756 = vpack.c.b16 %v711, %v710
    %v757 = vpack.c.b16 %v713, %v712
    %v758 = vpack.c.b16 %v715, %v714
    %v759 = vpack.c.b16 %v717, %v716
    %v760 = vpack.c.b16 %v719, %v718
    %v761 = vpack.c.b16 %v721, %v720
    %v762 = vpack.c.b16 %v723, %v722
    %v763 = vpack.c.b16 %v725, %v724
    %v764 = vpack.c.b16 %v727, %v726
    %v765 = vpack.c.b16 %v729, %v728
    %v766 = vpack.c.b16 %v731, %v730
    %v767 = vpack.c.b16 %v733, %v732
    %v768 = vpack.c.b16 %v735, %v734
    %v769 = vpack.c.b16 %v737, %v736
    %v770 = vpack.c.b16 %v739, %v738
    %v771 = vpack.c.b16 %v741, %v740
    %v772 = vpack.c.b16 %v743, %v742
    %v773 = vpack.c.b16 %v745, %v744
    %v774 = vpack.c.b16 %v747, %v746
    %v775 = vpack.c.b16 %v749, %v748
    %v776 = vpack.c.b16 %v751, %v750
    %v777 = vpack.c.b16 %v753, %v752
    %v782 = vunpack.c.l.b16 %v109
    %v783 = vunpack.c.h.b16 %v109
    %v784 = vunpack.c.l.b16 %v110
    %v785 = vunpack.c.h.b16 %v110
    %v786 = vunpack.c.l.b16 %v111
    %v787 = vunpack.c.h.b16 %v111
    %v788 = vunpack.c.l.b16 %v112
    %v789 = vunpack.c.h.b16 %v112
    %v790 = vpack.c.b16 %v784, %v782
    %v791 = vpack.c.b16 %v785, %v783
    %v792 = vpack.c.b16 %v788, %v786
    %v793 = vpack.c.b16 %v789, %v787
    %v797 = vsel %vm305, %v754, 0
    %v800 = vsel %vm305, %v755, 0
    %v803 = vsel %vm305, %v756, 0
    %v806 = vsel %vm305, %v757, 0
    %v809 = vsel %vm305, %v758, 0
    %v812 = vsel %vm305, %v759, 0
    %v815 = vsel %vm305, %v760, 0
    %v818 = vsel %vm305, %v761, 0
    %v821 = vsel %vm305, %v762, 0
    %v824 = vsel %vm305, %v763, 0
    %v827 = vsel %vm305, %v764, 0
    %v830 = vsel %vm305, %v765, 0
    %v833 = vsel %vm305, %v766, 0
    %v836 = vsel %vm305, %v767, 0
    %v839 = vsel %vm305, %v768, 0
    %v842 = vsel %vm305, %v769, 0
    %v845 = vsel %vm305, %v770, 0
    %v848 = vsel %vm305, %v771, 0
    %v851 = vsel %vm305, %v772, 0
    %v854 = vsel %vm305, %v773, 0
    %v857 = vsel %vm305, %v774, 0
    %v860 = vsel %vm305, %v775, 0
    %v863 = vsel %vm305, %v776, 0
    %v866 = vsel %vm305, %v777, 0
    %v869 = vsel %vm378, %v792, 0
    %v872 = vsel %vm378, %v793, 0
    %874 = vmatprep.subr.bf16.mxu0 %v791
    %875 = vmatpush1.bf16.msra.mxu0 %v790
    %876 = vmatprep.subr.bf16.mxu0 %v872
    %877 = vmatpush1.bf16.msra.mxu0 %v869
    %878 = vmatprep.subr.bf16.mxu0 0
    %879 = vmatpush1.bf16.msra.mxu0 0
    %880 = vmatprep.subr.bf16.mxu0 0
    %881 = vmatpush1.bf16.msra.mxu0 0
    %882 = vmatprep.subr.bf16.mxu0 0
    %883 = vmatpush1.bf16.msra.mxu0 0
    %884 = vmatprep.subr.bf16.mxu0 0
    %885 = vmatpush1.bf16.msra.mxu0 0
    %886 = vmatprep.subr.bf16.mxu0 0
    %887 = vmatpush1.bf16.msra.mxu0 0
    %888 = vmatprep.subr.bf16.mxu0 0
    %889 = vmatpush1.bf16.msra.mxu0 0
    %890 = vmatprep.subr.bf16.mxu0 0
    %891 = vmatpush1.bf16.msra.mxu0 0
    %892 = vmatprep.subr.bf16.mxu0 0
    %893 = vmatpush1.bf16.msra.mxu0 0
    %894 = vmatprep.subr.bf16.mxu0 0
    %895 = vmatpush1.bf16.msra.mxu0 0
    %896 = vmatprep.subr.bf16.mxu0 0
    %897 = vmatpush1.bf16.msra.mxu0 0
    %898 = vmatprep.subr.bf16.mxu0 0
    %899 = vmatpush1.bf16.msra.mxu0 0
    %900 = vmatprep.subr.bf16.mxu0 0
    %901 = vmatpush1.bf16.msra.mxu0 0
    %902 = vmatprep.subr.bf16.mxu0 0
    %903 = vmatpush1.bf16.msra.mxu0 0
    %904 = vmatprep.subr.bf16.mxu0 0
    %905 = vmatpush1.bf16.msra.mxu0 0
    %906 = vmatprep.mubr.bf16.mxu0 0
    %907 = vmatmul.mubr.bf16.gmra.mrb[0].mxu0 %v797
    %v908 = vpop.f32.mrb[0].mxu0
    %v909 = vadd.f32 %v420, %v908
    %v910 = vpop.f32.mrb[0].mxu0
    %v911 = vadd.f32 %v422, %v910
    %v912 = vpop.f32.mrb[0].mxu0
    %v913 = vadd.f32 %v424, %v912
    %v914 = vpop.f32.mrb[0].mxu0
    %v915 = vadd.f32 %v426, %v914
    %916 = vmatprep.mubr.bf16.mxu0 0
    %917 = vmatmul.mubr.bf16.gmra.mrb[0].mxu0 %v800
    %v918 = vpop.f32.mrb[0].mxu0
    %v919 = vadd.f32 %v430, %v918
    %v920 = vpop.f32.mrb[0].mxu0
    %v921 = vadd.f32 %v432, %v920
    %v922 = vpop.f32.mrb[0].mxu0
    %v923 = vadd.f32 %v434, %v922
    %v924 = vpop.f32.mrb[0].mxu0
    %v925 = vadd.f32 %v436, %v924
    %926 = vmatprep.mubr.bf16.mxu0 0
    %927 = vmatmul.mubr.bf16.gmra.mrb[0].mxu0 %v803
    %v928 = vpop.f32.mrb[0].mxu0
    %v929 = vadd.f32 %v440, %v928
    %v930 = vpop.f32.mrb[0].mxu0
    %v931 = vadd.f32 %v442, %v930
    %v932 = vpop.f32.mrb[0].mxu0
    %v933 = vadd.f32 %v444, %v932
    %v934 = vpop.f32.mrb[0].mxu0
    %v935 = vadd.f32 %v446, %v934
    %936 = vmatprep.mubr.bf16.mxu0 0
    %937 = vmatmul.mubr.bf16.gmra.mrb[0].mxu0 %v806
    %v938 = vpop.f32.mrb[0].mxu0
    %v939 = vadd.f32 %v450, %v938
    %v940 = vpop.f32.mrb[0].mxu0
    %v941 = vadd.f32 %v452, %v940
    %v942 = vpop.f32.mrb[0].mxu0
    %v943 = vadd.f32 %v454, %v942
    %v944 = vpop.f32.mrb[0].mxu0
    %v945 = vadd.f32 %v456, %v944
    %946 = vmatprep.mubr.bf16.mxu0 0
    %947 = vmatmul.mubr.bf16.gmra.mrb[0].mxu0 %v809
    %v948 = vpop.f32.mrb[0].mxu0
    %v949 = vadd.f32 %v460, %v948
    %v950 = vpop.f32.mrb[0].mxu0
    %v951 = vadd.f32 %v462, %v950
    %v952 = vpop.f32.mrb[0].mxu0
    %v953 = vadd.f32 %v464, %v952
    %v954 = vpop.f32.mrb[0].mxu0
    %v955 = vadd.f32 %v466, %v954
    %956 = vmatprep.mubr.bf16.mxu0 0
    %957 = vmatmul.mubr.bf16.gmra.mrb[0].mxu0 %v812
    %v958 = vpop.f32.mrb[0].mxu0
    %v959 = vadd.f32 %v470, %v958
    %v960 = vpop.f32.mrb[0].mxu0
    %v961 = vadd.f32 %v472, %v960
    %v962 = vpop.f32.mrb[0].mxu0
    %v963 = vadd.f32 %v474, %v962
    %v964 = vpop.f32.mrb[0].mxu0
    %v965 = vadd.f32 %v476, %v964
    %966 = vmatprep.mubr.bf16.mxu0 0
    %967 = vmatmul.mubr.bf16.gmra.mrb[0].mxu0 %v815
    %v968 = vpop.f32.mrb[0].mxu0
    %v969 = vadd.f32 %v480, %v968
    %v970 = vpop.f32.mrb[0].mxu0
    %v971 = vadd.f32 %v482, %v970
    %v972 = vpop.f32.mrb[0].mxu0
    %v973 = vadd.f32 %v484, %v972
    %v974 = vpop.f32.mrb[0].mxu0
    %v975 = vadd.f32 %v486, %v974
    %976 = vmatprep.mubr.bf16.mxu0 0
    %977 = vmatmul.mubr.bf16.gmra.mrb[0].mxu0 %v818
    %v978 = vpop.f32.mrb[0].mxu0
    %v979 = vadd.f32 %v490, %v978
    %v980 = vpop.f32.mrb[0].mxu0
    %v981 = vadd.f32 %v492, %v980
    %v982 = vpop.f32.mrb[0].mxu0
    %v983 = vadd.f32 %v494, %v982
    %v984 = vpop.f32.mrb[0].mxu0
    %v985 = vadd.f32 %v496, %v984
    %986 = vmatprep.mubr.bf16.mxu0 0
    %987 = vmatmul.mubr.bf16.gmra.mrb[0].mxu0 %v821
    %v988 = vpop.f32.mrb[0].mxu0
    %v989 = vadd.f32 %v500, %v988
    %v990 = vpop.f32.mrb[0].mxu0
    %v991 = vadd.f32 %v502, %v990
    %v992 = vpop.f32.mrb[0].mxu0
    %v993 = vadd.f32 %v504, %v992
    %v994 = vpop.f32.mrb[0].mxu0
    %v995 = vadd.f32 %v506, %v994
    %996 = vmatprep.mubr.bf16.mxu0 0
    %997 = vmatmul.mubr.bf16.gmra.mrb[0].mxu0 %v824
    %v998 = vpop.f32.mrb[0].mxu0
    %v999 = vadd.f32 %v510, %v998
    %v1000 = vpop.f32.mrb[0].mxu0
    %v1001 = vadd.f32 %v512, %v1000
    %v1002 = vpop.f32.mrb[0].mxu0
    %v1003 = vadd.f32 %v514, %v1002
    %v1004 = vpop.f32.mrb[0].mxu0
    %v1005 = vadd.f32 %v516, %v1004
    %1006 = vmatprep.mubr.bf16.mxu0 0
    %1007 = vmatmul.mubr.bf16.gmra.mrb[0].mxu0 %v827
    %v1008 = vpop.f32.mrb[0].mxu0
    %v1009 = vadd.f32 %v520, %v1008
    %v1010 = vpop.f32.mrb[0].mxu0
    %v1011 = vadd.f32 %v522, %v1010
    %v1012 = vpop.f32.mrb[0].mxu0
    %v1013 = vadd.f32 %v524, %v1012
    %v1014 = vpop.f32.mrb[0].mxu0
    %v1015 = vadd.f32 %v526, %v1014
    %1016 = vmatprep.mubr.bf16.mxu0 0
    %1017 = vmatmul.mubr.bf16.gmra.mrb[0].mxu0 %v830
    %v1018 = vpop.f32.mrb[0].mxu0
    %v1019 = vadd.f32 %v530, %v1018
    %v1020 = vpop.f32.mrb[0].mxu0
    %v1021 = vadd.f32 %v532, %v1020
    %v1022 = vpop.f32.mrb[0].mxu0
    %v1023 = vadd.f32 %v534, %v1022
    %v1024 = vpop.f32.mrb[0].mxu0
    %v1025 = vadd.f32 %v536, %v1024
    %1026 = vmatprep.mubr.bf16.mxu0 0
    %1027 = vmatmul.mubr.bf16.gmra.mrb[0].mxu0 %v833
    %v1028 = vpop.f32.mrb[0].mxu0
    %v1029 = vadd.f32 %v540, %v1028
    %v1030 = vpop.f32.mrb[0].mxu0
    %v1031 = vadd.f32 %v542, %v1030
    %v1032 = vpop.f32.mrb[0].mxu0
    %v1033 = vadd.f32 %v544, %v1032
    %v1034 = vpop.f32.mrb[0].mxu0
    %v1035 = vadd.f32 %v546, %v1034
    %1036 = vmatprep.mubr.bf16.mxu0 0
    %1037 = vmatmul.mubr.bf16.gmra.mrb[0].mxu0 %v836
    %v1038 = vpop.f32.mrb[0].mxu0
    %v1039 = vadd.f32 %v550, %v1038
    %v1040 = vpop.f32.mrb[0].mxu0
    %v1041 = vadd.f32 %v552, %v1040
    %v1042 = vpop.f32.mrb[0].mxu0
    %v1043 = vadd.f32 %v554, %v1042
    %v1044 = vpop.f32.mrb[0].mxu0
    %v1045 = vadd.f32 %v556, %v1044
    %1046 = vmatprep.mubr.bf16.mxu0 0
    %1047 = vmatmul.mubr.bf16.gmra.mrb[0].mxu0 %v839
    %v1048 = vpop.f32.mrb[0].mxu0
    %v1049 = vadd.f32 %v560, %v1048
    %v1050 = vpop.f32.mrb[0].mxu0
    %v1051 = vadd.f32 %v562, %v1050
    %v1052 = vpop.f32.mrb[0].mxu0
    %v1053 = vadd.f32 %v564, %v1052
    %v1054 = vpop.f32.mrb[0].mxu0
    %v1055 = vadd.f32 %v566, %v1054
    %1056 = vmatprep.mubr.bf16.mxu0 0
    %1057 = vmatmul.mubr.bf16.gmra.mrb[0].mxu0 %v842
    %v1058 = vpop.f32.mrb[0].mxu0
    %v1059 = vadd.f32 %v570, %v1058
    %v1060 = vpop.f32.mrb[0].mxu0
    %v1061 = vadd.f32 %v572, %v1060
    %v1062 = vpop.f32.mrb[0].mxu0
    %v1063 = vadd.f32 %v574, %v1062
    %v1064 = vpop.f32.mrb[0].mxu0
    %v1065 = vadd.f32 %v576, %v1064
    %1066 = vmatprep.mubr.bf16.mxu0 0
    %1067 = vmatmul.mubr.bf16.gmra.mrb[0].mxu0 %v845
    %v1068 = vpop.f32.mrb[0].mxu0
    %v1069 = vadd.f32 %v580, %v1068
    %v1070 = vpop.f32.mrb[0].mxu0
    %v1071 = vadd.f32 %v582, %v1070
    %v1072 = vpop.f32.mrb[0].mxu0
    %v1073 = vadd.f32 %v584, %v1072
    %v1074 = vpop.f32.mrb[0].mxu0
    %v1075 = vadd.f32 %v586, %v1074
    %1076 = vmatprep.mubr.bf16.mxu0 0
    %1077 = vmatmul.mubr.bf16.gmra.mrb[0].mxu0 %v848
    %v1078 = vpop.f32.mrb[0].mxu0
    %v1079 = vadd.f32 %v590, %v1078
    %v1080 = vpop.f32.mrb[0].mxu0
    %v1081 = vadd.f32 %v592, %v1080
    %v1082 = vpop.f32.mrb[0].mxu0
    %v1083 = vadd.f32 %v594, %v1082
    %v1084 = vpop.f32.mrb[0].mxu0
    %v1085 = vadd.f32 %v596, %v1084
    %1086 = vmatprep.mubr.bf16.mxu0 0
    %1087 = vmatmul.mubr.bf16.gmra.mrb[0].mxu0 %v851
    %v1088 = vpop.f32.mrb[0].mxu0
    %v1089 = vadd.f32 %v600, %v1088
    %v1090 = vpop.f32.mrb[0].mxu0
    %v1091 = vadd.f32 %v602, %v1090
    %v1092 = vpop.f32.mrb[0].mxu0
    %v1093 = vadd.f32 %v604, %v1092
    %v1094 = vpop.f32.mrb[0].mxu0
    %v1095 = vadd.f32 %v606, %v1094
    %1096 = vmatprep.mubr.bf16.mxu0 0
    %1097 = vmatmul.mubr.bf16.gmra.mrb[0].mxu0 %v854
    %v1098 = vpop.f32.mrb[0].mxu0
    %v1099 = vadd.f32 %v610, %v1098
    %v1100 = vpop.f32.mrb[0].mxu0
    %v1101 = vadd.f32 %v612, %v1100
    %v1102 = vpop.f32.mrb[0].mxu0
    %v1103 = vadd.f32 %v614, %v1102
    %v1104 = vpop.f32.mrb[0].mxu0
    %v1105 = vadd.f32 %v616, %v1104
    %1106 = vmatprep.mubr.bf16.mxu0 0
    %1107 = vmatmul.mubr.bf16.gmra.mrb[0].mxu0 %v857
    %v1108 = vpop.f32.mrb[0].mxu0
    %v1109 = vadd.f32 %v620, %v1108
    %v1110 = vpop.f32.mrb[0].mxu0
    %v1111 = vadd.f32 %v622, %v1110
    %v1112 = vpop.f32.mrb[0].mxu0
    %v1113 = vadd.f32 %v624, %v1112
    %v1114 = vpop.f32.mrb[0].mxu0
    %v1115 = vadd.f32 %v626, %v1114
    %1116 = vmatprep.mubr.bf16.mxu0 0
    %1117 = vmatmul.mubr.bf16.gmra.mrb[0].mxu0 %v860
    %v1118 = vpop.f32.mrb[0].mxu0
    %v1119 = vadd.f32 %v630, %v1118
    %v1120 = vpop.f32.mrb[0].mxu0
    %v1121 = vadd.f32 %v632, %v1120
    %v1122 = vpop.f32.mrb[0].mxu0
    %v1123 = vadd.f32 %v634, %v1122
    %v1124 = vpop.f32.mrb[0].mxu0
    %v1125 = vadd.f32 %v636, %v1124
    %1126 = vmatprep.mubr.bf16.mxu0 0
    %1127 = vmatmul.mubr.bf16.gmra.mrb[0].mxu0 %v863
    %v1128 = vpop.f32.mrb[0].mxu0
    %v1129 = vadd.f32 %v640, %v1128
    %v1130 = vpop.f32.mrb[0].mxu0
    %v1131 = vadd.f32 %v642, %v1130
    %v1132 = vpop.f32.mrb[0].mxu0
    %v1133 = vadd.f32 %v644, %v1132
    %v1134 = vpop.f32.mrb[0].mxu0
    %v1135 = vadd.f32 %v646, %v1134
    %1136 = vmatprep.mubr.bf16.mxu0 0
    %1137 = vmatmul.mubr.bf16.gmra.mrb[0].mxu0 %v866
    %v1138 = vpop.f32.mrb[0].mxu0
    %v1139 = vadd.f32 %v650, %v1138
    %v1140 = vpop.f32.mrb[0].mxu0
    %v1141 = vadd.f32 %v652, %v1140
    %v1142 = vpop.f32.mrb[0].mxu0
    %v1143 = vadd.f32 %v654, %v1142
    %v1144 = vpop.f32.mrb[0].mxu0
    %v1145 = vadd.f32 %v656, %v1144
    %1146 = vdwg.mxu0
    %s1147 = scalar_lea.vmem %s0, 16
    %v1148 = vld [vmem:[%s1147] sm:$0xf]
    %v1149 = vld [vmem:[%s1147 + $0x4] sm:$0xf]
    %v1150 = vld [vmem:[%s1147 + $0x8] sm:$0xf]
    %v1151 = vld [vmem:[%s1147 + $0xc] sm:$0xf]
    %v1152 = vld [vmem:[%s1147 + $0x10] sm:$0xf]
    %v1153 = vld [vmem:[%s1147 + $0x14] sm:$0xf]
    %v1154 = vld [vmem:[%s1147 + $0x18] sm:$0xf]
    %v1155 = vld [vmem:[%s1147 + $0x1c] sm:$0xf]
    %v1156 = vld [vmem:[%s1147 + $0x20] sm:$0xf]
    %v1157 = vld [vmem:[%s1147 + $0x24] sm:$0xf]
    %v1158 = vld [vmem:[%s1147 + $0x28] sm:$0xf]
    %v1159 = vld [vmem:[%s1147 + $0x2c] sm:$0xf]
    %v1160 = vld [vmem:[%s1147 + $0x30] sm:$0xf]
    %v1161 = vld [vmem:[%s1147 + $0x34] sm:$0xf]
    %v1162 = vld [vmem:[%s1147 + $0x38] sm:$0xf]
    %v1163 = vld [vmem:[%s1147 + $0x3c] sm:$0xf]
    %v1164 = vld [vmem:[%s1147 + $0x40] sm:$0xf]
    %v1165 = vld [vmem:[%s1147 + $0x44] sm:$0xf]
    %v1166 = vld [vmem:[%s1147 + $0x48] sm:$0xf]
    %v1167 = vld [vmem:[%s1147 + $0x4c] sm:$0xf]
    %v1168 = vld [vmem:[%s1147 + $0x50] sm:$0xf]
    %v1169 = vld [vmem:[%s1147 + $0x54] sm:$0xf]
    %v1170 = vld [vmem:[%s1147 + $0x58] sm:$0xf]
    %v1171 = vld [vmem:[%s1147 + $0x5c] sm:$0xf]
    %v1172 = vld [vmem:[%s1147 + $0x60] sm:$0xf]
    %v1173 = vld [vmem:[%s1147 + $0x64] sm:$0xf]
    %v1174 = vld [vmem:[%s1147 + $0x68] sm:$0xf]
    %v1175 = vld [vmem:[%s1147 + $0x6c] sm:$0xf]
    %v1176 = vld [vmem:[%s1147 + $0x70] sm:$0xf]
    %v1177 = vld [vmem:[%s1147 + $0x74] sm:$0xf]
    %v1178 = vld [vmem:[%s1147 + $0x78] sm:$0xf]
    %v1179 = vld [vmem:[%s1147 + $0x7c] sm:$0xf]
    %v1180 = vld [vmem:[%s1147 + $0x80] sm:$0xf]
    %v1181 = vld [vmem:[%s1147 + $0x84] sm:$0xf]
    %v1182 = vld [vmem:[%s1147 + $0x88] sm:$0xf]
    %v1183 = vld [vmem:[%s1147 + $0x8c] sm:$0xf]
    %v1184 = vld [vmem:[%s1147 + $0x90] sm:$0xf]
    %v1185 = vld [vmem:[%s1147 + $0x94] sm:$0xf]
    %v1186 = vld [vmem:[%s1147 + $0x98] sm:$0xf]
    %v1187 = vld [vmem:[%s1147 + $0x9c] sm:$0xf]
    %v1188 = vld [vmem:[%s1147 + $0xa0] sm:$0xf]
    %v1189 = vld [vmem:[%s1147 + $0xa4] sm:$0xf]
    %v1190 = vld [vmem:[%s1147 + $0xa8] sm:$0xf]
    %v1191 = vld [vmem:[%s1147 + $0xac] sm:$0xf]
    %v1192 = vld [vmem:[%s1147 + $0xb0] sm:$0xf]
    %v1193 = vld [vmem:[%s1147 + $0xb4] sm:$0xf]
    %v1194 = vld [vmem:[%s1147 + $0xb8] sm:$0xf]
    %v1195 = vld [vmem:[%s1147 + $0xbc] sm:$0xf]
    %s1196 = scalar_lea.vmem [#allocation2], 64
    %v1197 = vld [vmem:[%s1196] sm:$0xff]
    %v1198 = vld [vmem:[%s1196 + $0x8] sm:$0xff]
    %v1199 = vld [vmem:[%s1196 + $0x10] sm:$0xff]
    %v1200 = vld [vmem:[%s1196 + $0x18] sm:$0x33]
    %v1249 = vunpack.c.l.b16 %v1148
    %v1250 = vunpack.c.l.b16 %v1149
    %v1251 = vunpack.c.l.b16 %v1150
    %v1252 = vunpack.c.l.b16 %v1151
    %v1253 = vunpack.c.l.b16 %v1152
    %v1254 = vunpack.c.l.b16 %v1153
    %v1255 = vunpack.c.l.b16 %v1154
    %v1256 = vunpack.c.l.b16 %v1155
    %v1257 = vunpack.c.l.b16 %v1156
    %v1258 = vunpack.c.l.b16 %v1157
    %v1259 = vunpack.c.l.b16 %v1158
    %v1260 = vunpack.c.l.b16 %v1159
    %v1261 = vunpack.c.l.b16 %v1160
    %v1262 = vunpack.c.l.b16 %v1161
    %v1263 = vunpack.c.l.b16 %v1162
    %v1264 = vunpack.c.l.b16 %v1163
    %v1265 = vunpack.c.l.b16 %v1164
    %v1266 = vunpack.c.l.b16 %v1165
    %v1267 = vunpack.c.l.b16 %v1166
    %v1268 = vunpack.c.l.b16 %v1167
    %v1269 = vunpack.c.l.b16 %v1168
    %v1270 = vunpack.c.l.b16 %v1169
    %v1271 = vunpack.c.l.b16 %v1170
    %v1272 = vunpack.c.l.b16 %v1171
    %v1273 = vunpack.c.l.b16 %v1172
    %v1274 = vunpack.c.l.b16 %v1173
    %v1275 = vunpack.c.l.b16 %v1174
    %v1276 = vunpack.c.l.b16 %v1175
    %v1277 = vunpack.c.l.b16 %v1176
    %v1278 = vunpack.c.l.b16 %v1177
    %v1279 = vunpack.c.l.b16 %v1178
    %v1280 = vunpack.c.l.b16 %v1179
    %v1281 = vunpack.c.l.b16 %v1180
    %v1282 = vunpack.c.l.b16 %v1181
    %v1283 = vunpack.c.l.b16 %v1182
    %v1284 = vunpack.c.l.b16 %v1183
    %v1285 = vunpack.c.l.b16 %v1184
    %v1286 = vunpack.c.l.b16 %v1185
    %v1287 = vunpack.c.l.b16 %v1186
    %v1288 = vunpack.c.l.b16 %v1187
    %v1289 = vunpack.c.l.b16 %v1188
    %v1290 = vunpack.c.l.b16 %v1189
    %v1291 = vunpack.c.l.b16 %v1190
    %v1292 = vunpack.c.l.b16 %v1191
    %v1293 = vunpack.c.l.b16 %v1192
    %v1294 = vunpack.c.l.b16 %v1193
    %v1295 = vunpack.c.l.b16 %v1194
    %v1296 = vunpack.c.l.b16 %v1195
    %v1297 = vpack.c.b16 %v1250, %v1249
    %v1298 = vpack.c.b16 %v1252, %v1251
    %v1299 = vpack.c.b16 %v1254, %v1253
    %v1300 = vpack.c.b16 %v1256, %v1255
    %v1301 = vpack.c.b16 %v1258, %v1257
    %v1302 = vpack.c.b16 %v1260, %v1259
    %v1303 = vpack.c.b16 %v1262, %v1261
    %v1304 = vpack.c.b16 %v1264, %v1263
    %v1305 = vpack.c.b16 %v1266, %v1265
    %v1306 = vpack.c.b16 %v1268, %v1267
    %v1307 = vpack.c.b16 %v1270, %v1269
    %v1308 = vpack.c.b16 %v1272, %v1271
    %v1309 = vpack.c.b16 %v1274, %v1273
    %v1310 = vpack.c.b16 %v1276, %v1275
    %v1311 = vpack.c.b16 %v1278, %v1277
    %v1312 = vpack.c.b16 %v1280, %v1279
    %v1313 = vpack.c.b16 %v1282, %v1281
    %v1314 = vpack.c.b16 %v1284, %v1283
    %v1315 = vpack.c.b16 %v1286, %v1285
    %v1316 = vpack.c.b16 %v1288, %v1287
    %v1317 = vpack.c.b16 %v1290, %v1289
    %v1318 = vpack.c.b16 %v1292, %v1291
    %v1319 = vpack.c.b16 %v1294, %v1293
    %v1320 = vpack.c.b16 %v1296, %v1295
    %v1325 = vunpack.c.l.b16 %v1197
    %v1326 = vunpack.c.h.b16 %v1197
    %v1327 = vunpack.c.l.b16 %v1198
    %v1328 = vunpack.c.h.b16 %v1198
    %v1329 = vunpack.c.l.b16 %v1199
    %v1330 = vunpack.c.h.b16 %v1199
    %v1331 = vunpack.c.l.b16 %v1200
    %v1332 = vunpack.c.h.b16 %v1200
    %v1333 = vpack.c.b16 %v1327, %v1325
    %v1334 = vpack.c.b16 %v1328, %v1326
    %v1335 = vpack.c.b16 %v1331, %v1329
    %v1336 = vpack.c.b16 %v1332, %v1330
    %v1340 = vsel %vm305, %v1297, 0
    %v1343 = vsel %vm305, %v1298, 0
    %v1346 = vsel %vm305, %v1299, 0
    %v1349 = vsel %vm305, %v1300, 0
    %v1352 = vsel %vm305, %v1301, 0
    %v1355 = vsel %vm305, %v1302, 0
    %v1358 = vsel %vm305, %v1303, 0
    %v1361 = vsel %vm305, %v1304, 0
    %v1364 = vsel %vm305, %v1305, 0
    %v1367 = vsel %vm305, %v1306, 0
    %v1370 = vsel %vm305, %v1307, 0
    %v1373 = vsel %vm305, %v1308, 0
    %v1376 = vsel %vm305, %v1309, 0
    %v1379 = vsel %vm305, %v1310, 0
    %v1382 = vsel %vm305, %v1311, 0
    %v1385 = vsel %vm305, %v1312, 0
    %v1388 = vsel %vm305, %v1313, 0
    %v1391 = vsel %vm305, %v1314, 0
    %v1394 = vsel %vm305, %v1315, 0
    %v1397 = vsel %vm305, %v1316, 0
    %v1400 = vsel %vm305, %v1317, 0
    %v1403 = vsel %vm305, %v1318, 0
    %v1406 = vsel %vm305, %v1319, 0
    %v1409 = vsel %vm305, %v1320, 0
    %v1412 = vsel %vm378, %v1335, 0
    %v1415 = vsel %vm378, %v1336, 0
    %1417 = vmatprep.subr.bf16.mxu0 %v1334
    %1418 = vmatpush1.bf16.msra.mxu0 %v1333
    %1419 = vmatprep.subr.bf16.mxu0 %v1415
    %1420 = vmatpush1.bf16.msra.mxu0 %v1412
    %1421 = vmatprep.subr.bf16.mxu0 0
    %1422 = vmatpush1.bf16.msra.mxu0 0
    %1423 = vmatprep.subr.bf16.mxu0 0
    %1424 = vmatpush1.bf16.msra.mxu0 0
    %1425 = vmatprep.subr.bf16.mxu0 0
    %1426 = vmatpush1.bf16.msra.mxu0 0
    %1427 = vmatprep.subr.bf16.mxu0 0
    %1428 = vmatpush1.bf16.msra.mxu0 0
    %1429 = vmatprep.subr.bf16.mxu0 0
    %1430 = vmatpush1.bf16.msra.mxu0 0
    %1431 = vmatprep.subr.bf16.mxu0 0
    %1432 = vmatpush1.bf16.msra.mxu0 0
    %1433 = vmatprep.subr.bf16.mxu0 0
    %1434 = vmatpush1.bf16.msra.mxu0 0
    %1435 = vmatprep.subr.bf16.mxu0 0
    %1436 = vmatpush1.bf16.msra.mxu0 0
    %1437 = vmatprep.subr.bf16.mxu0 0
    %1438 = vmatpush1.bf16.msra.mxu0 0
    %1439 = vmatprep.subr.bf16.mxu0 0
    %1440 = vmatpush1.bf16.msra.mxu0 0
    %1441 = vmatprep.subr.bf16.mxu0 0
    %1442 = vmatpush1.bf16.msra.mxu0 0
    %1443 = vmatprep.subr.bf16.mxu0 0
    %1444 = vmatpush1.bf16.msra.mxu0 0
    %1445 = vmatprep.subr.bf16.mxu0 0
    %1446 = vmatpush1.bf16.msra.mxu0 0
    %1447 = vmatprep.subr.bf16.mxu0 0
    %1448 = vmatpush1.bf16.msra.mxu0 0
    %1449 = vmatprep.mubr.bf16.mxu0 0
    %1450 = vmatmul.mubr.bf16.gmra.mrb[0].mxu0 %v1340
    %v1451 = vpop.f32.mrb[0].mxu0
    %v1452 = vadd.f32 0.0, %v1451
    %v1453 = vpop.f32.mrb[0].mxu0
    %v1454 = vadd.f32 0.0, %v1453
    %v1455 = vpop.f32.mrb[0].mxu0
    %v1456 = vadd.f32 0.0, %v1455
    %v1457 = vpop.f32.mrb[0].mxu0
    %v1458 = vadd.f32 0.0, %v1457
    %1459 = vmatprep.mubr.bf16.mxu0 0
    %1460 = vmatmul.mubr.bf16.gmra.mrb[0].mxu0 %v1343
    %v1461 = vpop.f32.mrb[0].mxu0
    %v1462 = vadd.f32 0.0, %v1461
    %v1463 = vpop.f32.mrb[0].mxu0
    %v1464 = vadd.f32 0.0, %v1463
    %v1465 = vpop.f32.mrb[0].mxu0
    %v1466 = vadd.f32 0.0, %v1465
    %v1467 = vpop.f32.mrb[0].mxu0
    %v1468 = vadd.f32 0.0, %v1467
    %1469 = vmatprep.mubr.bf16.mxu0 0
    %1470 = vmatmul.mubr.bf16.gmra.mrb[0].mxu0 %v1346
    %v1471 = vpop.f32.mrb[0].mxu0
    %v1472 = vadd.f32 0.0, %v1471
    %v1473 = vpop.f32.mrb[0].mxu0
    %v1474 = vadd.f32 0.0, %v1473
    %v1475 = vpop.f32.mrb[0].mxu0
    %v1476 = vadd.f32 0.0, %v1475
    %v1477 = vpop.f32.mrb[0].mxu0
    %v1478 = vadd.f32 0.0, %v1477
    %1479 = vmatprep.mubr.bf16.mxu0 0
    %1480 = vmatmul.mubr.bf16.gmra.mrb[0].mxu0 %v1349
    %v1481 = vpop.f32.mrb[0].mxu0
    %v1482 = vadd.f32 0.0, %v1481
    %v1483 = vpop.f32.mrb[0].mxu0
    %v1484 = vadd.f32 0.0, %v1483
    %v1485 = vpop.f32.mrb[0].mxu0
    %v1486 = vadd.f32 0.0, %v1485
    %v1487 = vpop.f32.mrb[0].mxu0
    %v1488 = vadd.f32 0.0, %v1487
    %1489 = vmatprep.mubr.bf16.mxu0 0
    %1490 = vmatmul.mubr.bf16.gmra.mrb[0].mxu0 %v1352
    %v1491 = vpop.f32.mrb[0].mxu0
    %v1492 = vadd.f32 0.0, %v1491
    %v1493 = vpop.f32.mrb[0].mxu0
    %v1494 = vadd.f32 0.0, %v1493
    %v1495 = vpop.f32.mrb[0].mxu0
    %v1496 = vadd.f32 0.0, %v1495
    %v1497 = vpop.f32.mrb[0].mxu0
    %v1498 = vadd.f32 0.0, %v1497
    %1499 = vmatprep.mubr.bf16.mxu0 0
    %1500 = vmatmul.mubr.bf16.gmra.mrb[0].mxu0 %v1355
    %v1501 = vpop.f32.mrb[0].mxu0
    %v1502 = vadd.f32 0.0, %v1501
    %v1503 = vpop.f32.mrb[0].mxu0
    %v1504 = vadd.f32 0.0, %v1503
    %v1505 = vpop.f32.mrb[0].mxu0
    %v1506 = vadd.f32 0.0, %v1505
    %v1507 = vpop.f32.mrb[0].mxu0
    %v1508 = vadd.f32 0.0, %v1507
    %1509 = vmatprep.mubr.bf16.mxu0 0
    %1510 = vmatmul.mubr.bf16.gmra.mrb[0].mxu0 %v1358
    %v1511 = vpop.f32.mrb[0].mxu0
    %v1512 = vadd.f32 0.0, %v1511
    %v1513 = vpop.f32.mrb[0].mxu0
    %v1514 = vadd.f32 0.0, %v1513
    %v1515 = vpop.f32.mrb[0].mxu0
    %v1516 = vadd.f32 0.0, %v1515
    %v1517 = vpop.f32.mrb[0].mxu0
    %v1518 = vadd.f32 0.0, %v1517
    %1519 = vmatprep.mubr.bf16.mxu0 0
    %1520 = vmatmul.mubr.bf16.gmra.mrb[0].mxu0 %v1361
    %v1521 = vpop.f32.mrb[0].mxu0
    %v1522 = vadd.f32 0.0, %v1521
    %v1523 = vpop.f32.mrb[0].mxu0
    %v1524 = vadd.f32 0.0, %v1523
    %v1525 = vpop.f32.mrb[0].mxu0
    %v1526 = vadd.f32 0.0, %v1525
    %v1527 = vpop.f32.mrb[0].mxu0
    %v1528 = vadd.f32 0.0, %v1527
    %1529 = vmatprep.mubr.bf16.mxu0 0
    %1530 = vmatmul.mubr.bf16.gmra.mrb[0].mxu0 %v1364
    %v1531 = vpop.f32.mrb[0].mxu0
    %v1532 = vadd.f32 0.0, %v1531
    %v1533 = vpop.f32.mrb[0].mxu0
    %v1534 = vadd.f32 0.0, %v1533
    %v1535 = vpop.f32.mrb[0].mxu0
    %v1536 = vadd.f32 0.0, %v1535
    %v1537 = vpop.f32.mrb[0].mxu0
    %v1538 = vadd.f32 0.0, %v1537
    %1539 = vmatprep.mubr.bf16.mxu0 0
    %1540 = vmatmul.mubr.bf16.gmra.mrb[0].mxu0 %v1367
    %v1541 = vpop.f32.mrb[0].mxu0
    %v1542 = vadd.f32 0.0, %v1541
    %v1543 = vpop.f32.mrb[0].mxu0
    %v1544 = vadd.f32 0.0, %v1543
    %v1545 = vpop.f32.mrb[0].mxu0
    %v1546 = vadd.f32 0.0, %v1545
    %v1547 = vpop.f32.mrb[0].mxu0
    %v1548 = vadd.f32 0.0, %v1547
    %1549 = vmatprep.mubr.bf16.mxu0 0
    %1550 = vmatmul.mubr.bf16.gmra.mrb[0].mxu0 %v1370
    %v1551 = vpop.f32.mrb[0].mxu0
    %v1552 = vadd.f32 0.0, %v1551
    %v1553 = vpop.f32.mrb[0].mxu0
    %v1554 = vadd.f32 0.0, %v1553
    %v1555 = vpop.f32.mrb[0].mxu0
    %v1556 = vadd.f32 0.0, %v1555
    %v1557 = vpop.f32.mrb[0].mxu0
    %v1558 = vadd.f32 0.0, %v1557
    %1559 = vmatprep.mubr.bf16.mxu0 0
    %1560 = vmatmul.mubr.bf16.gmra.mrb[0].mxu0 %v1373
    %v1561 = vpop.f32.mrb[0].mxu0
    %v1562 = vadd.f32 0.0, %v1561
    %v1563 = vpop.f32.mrb[0].mxu0
    %v1564 = vadd.f32 0.0, %v1563
    %v1565 = vpop.f32.mrb[0].mxu0
    %v1566 = vadd.f32 0.0, %v1565
    %v1567 = vpop.f32.mrb[0].mxu0
    %v1568 = vadd.f32 0.0, %v1567
    %1569 = vmatprep.mubr.bf16.mxu0 0
    %1570 = vmatmul.mubr.bf16.gmra.mrb[0].mxu0 %v1376
    %v1571 = vpop.f32.mrb[0].mxu0
    %v1572 = vadd.f32 0.0, %v1571
    %v1573 = vpop.f32.mrb[0].mxu0
    %v1574 = vadd.f32 0.0, %v1573
    %v1575 = vpop.f32.mrb[0].mxu0
    %v1576 = vadd.f32 0.0, %v1575
    %v1577 = vpop.f32.mrb[0].mxu0
    %v1578 = vadd.f32 0.0, %v1577
    %1579 = vmatprep.mubr.bf16.mxu0 0
    %1580 = vmatmul.mubr.bf16.gmra.mrb[0].mxu0 %v1379
    %v1581 = vpop.f32.mrb[0].mxu0
    %v1582 = vadd.f32 0.0, %v1581
    %v1583 = vpop.f32.mrb[0].mxu0
    %v1584 = vadd.f32 0.0, %v1583
    %v1585 = vpop.f32.mrb[0].mxu0
    %v1586 = vadd.f32 0.0, %v1585
    %v1587 = vpop.f32.mrb[0].mxu0
    %v1588 = vadd.f32 0.0, %v1587
    %1589 = vmatprep.mubr.bf16.mxu0 0
    %1590 = vmatmul.mubr.bf16.gmra.mrb[0].mxu0 %v1382
    %v1591 = vpop.f32.mrb[0].mxu0
    %v1592 = vadd.f32 0.0, %v1591
    %v1593 = vpop.f32.mrb[0].mxu0
    %v1594 = vadd.f32 0.0, %v1593
    %v1595 = vpop.f32.mrb[0].mxu0
    %v1596 = vadd.f32 0.0, %v1595
    %v1597 = vpop.f32.mrb[0].mxu0
    %v1598 = vadd.f32 0.0, %v1597
    %1599 = vmatprep.mubr.bf16.mxu0 0
    %1600 = vmatmul.mubr.bf16.gmra.mrb[0].mxu0 %v1385
    %v1601 = vpop.f32.mrb[0].mxu0
    %v1602 = vadd.f32 0.0, %v1601
    %v1603 = vpop.f32.mrb[0].mxu0
    %v1604 = vadd.f32 0.0, %v1603
    %v1605 = vpop.f32.mrb[0].mxu0
    %v1606 = vadd.f32 0.0, %v1605
    %v1607 = vpop.f32.mrb[0].mxu0
    %v1608 = vadd.f32 0.0, %v1607
    %1609 = vmatprep.mubr.bf16.mxu0 0
    %1610 = vmatmul.mubr.bf16.gmra.mrb[0].mxu0 %v1388
    %v1611 = vpop.f32.mrb[0].mxu0
    %v1612 = vadd.f32 0.0, %v1611
    %v1613 = vpop.f32.mrb[0].mxu0
    %v1614 = vadd.f32 0.0, %v1613
    %v1615 = vpop.f32.mrb[0].mxu0
    %v1616 = vadd.f32 0.0, %v1615
    %v1617 = vpop.f32.mrb[0].mxu0
    %v1618 = vadd.f32 0.0, %v1617
    %1619 = vmatprep.mubr.bf16.mxu0 0
    %1620 = vmatmul.mubr.bf16.gmra.mrb[0].mxu0 %v1391
    %v1621 = vpop.f32.mrb[0].mxu0
    %v1622 = vadd.f32 0.0, %v1621
    %v1623 = vpop.f32.mrb[0].mxu0
    %v1624 = vadd.f32 0.0, %v1623
    %v1625 = vpop.f32.mrb[0].mxu0
    %v1626 = vadd.f32 0.0, %v1625
    %v1627 = vpop.f32.mrb[0].mxu0
    %v1628 = vadd.f32 0.0, %v1627
    %1629 = vmatprep.mubr.bf16.mxu0 0
    %1630 = vmatmul.mubr.bf16.gmra.mrb[0].mxu0 %v1394
    %v1631 = vpop.f32.mrb[0].mxu0
    %v1632 = vadd.f32 0.0, %v1631
    %v1633 = vpop.f32.mrb[0].mxu0
    %v1634 = vadd.f32 0.0, %v1633
    %v1635 = vpop.f32.mrb[0].mxu0
    %v1636 = vadd.f32 0.0, %v1635
    %v1637 = vpop.f32.mrb[0].mxu0
    %v1638 = vadd.f32 0.0, %v1637
    %1639 = vmatprep.mubr.bf16.mxu0 0
    %1640 = vmatmul.mubr.bf16.gmra.mrb[0].mxu0 %v1397
    %v1641 = vpop.f32.mrb[0].mxu0
    %v1642 = vadd.f32 0.0, %v1641
    %v1643 = vpop.f32.mrb[0].mxu0
    %v1644 = vadd.f32 0.0, %v1643
    %v1645 = vpop.f32.mrb[0].mxu0
    %v1646 = vadd.f32 0.0, %v1645
    %v1647 = vpop.f32.mrb[0].mxu0
    %v1648 = vadd.f32 0.0, %v1647
    %1649 = vmatprep.mubr.bf16.mxu0 0
    %1650 = vmatmul.mubr.bf16.gmra.mrb[0].mxu0 %v1400
    %v1651 = vpop.f32.mrb[0].mxu0
    %v1652 = vadd.f32 0.0, %v1651
    %v1653 = vpop.f32.mrb[0].mxu0
    %v1654 = vadd.f32 0.0, %v1653
    %v1655 = vpop.f32.mrb[0].mxu0
    %v1656 = vadd.f32 0.0, %v1655
    %v1657 = vpop.f32.mrb[0].mxu0
    %v1658 = vadd.f32 0.0, %v1657
    %1659 = vmatprep.mubr.bf16.mxu0 0
    %1660 = vmatmul.mubr.bf16.gmra.mrb[0].mxu0 %v1403
    %v1661 = vpop.f32.mrb[0].mxu0
    %v1662 = vadd.f32 0.0, %v1661
    %v1663 = vpop.f32.mrb[0].mxu0
    %v1664 = vadd.f32 0.0, %v1663
    %v1665 = vpop.f32.mrb[0].mxu0
    %v1666 = vadd.f32 0.0, %v1665
    %v1667 = vpop.f32.mrb[0].mxu0
    %v1668 = vadd.f32 0.0, %v1667
    %1669 = vmatprep.mubr.bf16.mxu0 0
    %1670 = vmatmul.mubr.bf16.gmra.mrb[0].mxu0 %v1406
    %v1671 = vpop.f32.mrb[0].mxu0
    %v1672 = vadd.f32 0.0, %v1671
    %v1673 = vpop.f32.mrb[0].mxu0
    %v1674 = vadd.f32 0.0, %v1673
    %v1675 = vpop.f32.mrb[0].mxu0
    %v1676 = vadd.f32 0.0, %v1675
    %v1677 = vpop.f32.mrb[0].mxu0
    %v1678 = vadd.f32 0.0, %v1677
    %1679 = vmatprep.mubr.bf16.mxu0 0
    %1680 = vmatmul.mubr.bf16.gmra.mrb[0].mxu0 %v1409
    %v1681 = vpop.f32.mrb[0].mxu0
    %v1682 = vadd.f32 0.0, %v1681
    %v1683 = vpop.f32.mrb[0].mxu0
    %v1684 = vadd.f32 0.0, %v1683
    %v1685 = vpop.f32.mrb[0].mxu0
    %v1686 = vadd.f32 0.0, %v1685
    %v1687 = vpop.f32.mrb[0].mxu0
    %v1688 = vadd.f32 0.0, %v1687
    %1689 = vdwg.mxu0
    %v1690 = vadd.f32 %v909, %v1452
    %v1691 = vadd.f32 %v911, %v1454
    %v1692 = vadd.f32 %v913, %v1456
    %v1693 = vadd.f32 %v915, %v1458
    %v1694 = vadd.f32 %v919, %v1462
    %v1695 = vadd.f32 %v921, %v1464
    %v1696 = vadd.f32 %v923, %v1466
    %v1697 = vadd.f32 %v925, %v1468
    %v1698 = vadd.f32 %v929, %v1472
    %v1699 = vadd.f32 %v931, %v1474
    %v1700 = vadd.f32 %v933, %v1476
    %v1701 = vadd.f32 %v935, %v1478
    %v1702 = vadd.f32 %v939, %v1482
    %v1703 = vadd.f32 %v941, %v1484
    %v1704 = vadd.f32 %v943, %v1486
    %v1705 = vadd.f32 %v945, %v1488
    %v1706 = vadd.f32 %v949, %v1492
    %v1707 = vadd.f32 %v951, %v1494
    %v1708 = vadd.f32 %v953, %v1496
    %v1709 = vadd.f32 %v955, %v1498
    %v1710 = vadd.f32 %v959, %v1502
    %v1711 = vadd.f32 %v961, %v1504
    %v1712 = vadd.f32 %v963, %v1506
    %v1713 = vadd.f32 %v965, %v1508
    %v1714 = vadd.f32 %v969, %v1512
    %v1715 = vadd.f32 %v971, %v1514
    %v1716 = vadd.f32 %v973, %v1516
    %v1717 = vadd.f32 %v975, %v1518
    %v1718 = vadd.f32 %v979, %v1522
    %v1719 = vadd.f32 %v981, %v1524
    %v1720 = vadd.f32 %v983, %v1526
    %v1721 = vadd.f32 %v985, %v1528
    %v1722 = vadd.f32 %v989, %v1532
    %v1723 = vadd.f32 %v991, %v1534
    %v1724 = vadd.f32 %v993, %v1536
    %v1725 = vadd.f32 %v995, %v1538
    %v1726 = vadd.f32 %v999, %v1542
    %v1727 = vadd.f32 %v1001, %v1544
    %v1728 = vadd.f32 %v1003, %v1546
    %v1729 = vadd.f32 %v1005, %v1548
    %v1730 = vadd.f32 %v1009, %v1552
    %v1731 = vadd.f32 %v1011, %v1554
    %v1732 = vadd.f32 %v1013, %v1556
    %v1733 = vadd.f32 %v1015, %v1558
    %v1734 = vadd.f32 %v1019, %v1562
    %v1735 = vadd.f32 %v1021, %v1564
    %v1736 = vadd.f32 %v1023, %v1566
    %v1737 = vadd.f32 %v1025, %v1568
    %v1738 = vadd.f32 %v1029, %v1572
    %v1739 = vadd.f32 %v1031, %v1574
    %v1740 = vadd.f32 %v1033, %v1576
    %v1741 = vadd.f32 %v1035, %v1578
    %v1742 = vadd.f32 %v1039, %v1582
    %v1743 = vadd.f32 %v1041, %v1584
    %v1744 = vadd.f32 %v1043, %v1586
    %v1745 = vadd.f32 %v1045, %v1588
    %v1746 = vadd.f32 %v1049, %v1592
    %v1747 = vadd.f32 %v1051, %v1594
    %v1748 = vadd.f32 %v1053, %v1596
    %v1749 = vadd.f32 %v1055, %v1598
    %v1750 = vadd.f32 %v1059, %v1602
    %v1751 = vadd.f32 %v1061, %v1604
    %v1752 = vadd.f32 %v1063, %v1606
    %v1753 = vadd.f32 %v1065, %v1608
    %v1754 = vadd.f32 %v1069, %v1612
    %v1755 = vadd.f32 %v1071, %v1614
    %v1756 = vadd.f32 %v1073, %v1616
    %v1757 = vadd.f32 %v1075, %v1618
    %v1758 = vadd.f32 %v1079, %v1622
    %v1759 = vadd.f32 %v1081, %v1624
    %v1760 = vadd.f32 %v1083, %v1626
    %v1761 = vadd.f32 %v1085, %v1628
    %v1762 = vadd.f32 %v1089, %v1632
    %v1763 = vadd.f32 %v1091, %v1634
    %v1764 = vadd.f32 %v1093, %v1636
    %v1765 = vadd.f32 %v1095, %v1638
    %v1766 = vadd.f32 %v1099, %v1642
    %v1767 = vadd.f32 %v1101, %v1644
    %v1768 = vadd.f32 %v1103, %v1646
    %v1769 = vadd.f32 %v1105, %v1648
    %v1770 = vadd.f32 %v1109, %v1652
    %v1771 = vadd.f32 %v1111, %v1654
    %v1772 = vadd.f32 %v1113, %v1656
    %v1773 = vadd.f32 %v1115, %v1658
    %v1774 = vadd.f32 %v1119, %v1662
    %v1775 = vadd.f32 %v1121, %v1664
    %v1776 = vadd.f32 %v1123, %v1666
    %v1777 = vadd.f32 %v1125, %v1668
    %v1778 = vadd.f32 %v1129, %v1672
    %v1779 = vadd.f32 %v1131, %v1674
    %v1780 = vadd.f32 %v1133, %v1676
    %v1781 = vadd.f32 %v1135, %v1678
    %v1782 = vadd.f32 %v1139, %v1682
    %v1783 = vadd.f32 %v1141, %v1684
    %v1784 = vadd.f32 %v1143, %v1686
    %v1785 = vadd.f32 %v1145, %v1688
    %s1786 = scalar_lea.vmem %s0, 24
    %v1787 = vld [vmem:[%s1786] sm:$0xf]
    %v1788 = vld [vmem:[%s1786 + $0x4] sm:$0xf]
    %v1789 = vld [vmem:[%s1786 + $0x8] sm:$0xf]
    %v1790 = vld [vmem:[%s1786 + $0xc] sm:$0xf]
    %v1791 = vld [vmem:[%s1786 + $0x10] sm:$0xf]
    %v1792 = vld [vmem:[%s1786 + $0x14] sm:$0xf]
    %v1793 = vld [vmem:[%s1786 + $0x18] sm:$0xf]
    %v1794 = vld [vmem:[%s1786 + $0x1c] sm:$0xf]
    %v1795 = vld [vmem:[%s1786 + $0x20] sm:$0xf]
    %v1796 = vld [vmem:[%s1786 + $0x24] sm:$0xf]
    %v1797 = vld [vmem:[%s1786 + $0x28] sm:$0xf]
    %v1798 = vld [vmem:[%s1786 + $0x2c] sm:$0xf]
    %v1799 = vld [vmem:[%s1786 + $0x30] sm:$0xf]
    %v1800 = vld [vmem:[%s1786 + $0x34] sm:$0xf]
    %v1801 = vld [vmem:[%s1786 + $0x38] sm:$0xf]
    %v1802 = vld [vmem:[%s1786 + $0x3c] sm:$0xf]
    %v1803 = vld [vmem:[%s1786 + $0x40] sm:$0xf]
    %v1804 = vld [vmem:[%s1786 + $0x44] sm:$0xf]
    %v1805 = vld [vmem:[%s1786 + $0x48] sm:$0xf]
    %v1806 = vld [vmem:[%s1786 + $0x4c] sm:$0xf]
    %v1807 = vld [vmem:[%s1786 + $0x50] sm:$0xf]
    %v1808 = vld [vmem:[%s1786 + $0x54] sm:$0xf]
    %v1809 = vld [vmem:[%s1786 + $0x58] sm:$0xf]
    %v1810 = vld [vmem:[%s1786 + $0x5c] sm:$0xf]
    %v1811 = vld [vmem:[%s1786 + $0x60] sm:$0xf]
    %v1812 = vld [vmem:[%s1786 + $0x64] sm:$0xf]
    %v1813 = vld [vmem:[%s1786 + $0x68] sm:$0xf]
    %v1814 = vld [vmem:[%s1786 + $0x6c] sm:$0xf]
    %v1815 = vld [vmem:[%s1786 + $0x70] sm:$0xf]
    %v1816 = vld [vmem:[%s1786 + $0x74] sm:$0xf]
    %v1817 = vld [vmem:[%s1786 + $0x78] sm:$0xf]
    %v1818 = vld [vmem:[%s1786 + $0x7c] sm:$0xf]
    %v1819 = vld [vmem:[%s1786 + $0x80] sm:$0xf]
    %v1820 = vld [vmem:[%s1786 + $0x84] sm:$0xf]
    %v1821 = vld [vmem:[%s1786 + $0x88] sm:$0xf]
    %v1822 = vld [vmem:[%s1786 + $0x8c] sm:$0xf]
    %v1823 = vld [vmem:[%s1786 + $0x90] sm:$0xf]
    %v1824 = vld [vmem:[%s1786 + $0x94] sm:$0xf]
    %v1825 = vld [vmem:[%s1786 + $0x98] sm:$0xf]
    %v1826 = vld [vmem:[%s1786 + $0x9c] sm:$0xf]
    %v1827 = vld [vmem:[%s1786 + $0xa0] sm:$0xf]
    %v1828 = vld [vmem:[%s1786 + $0xa4] sm:$0xf]
    %v1829 = vld [vmem:[%s1786 + $0xa8] sm:$0xf]
    %v1830 = vld [vmem:[%s1786 + $0xac] sm:$0xf]
    %v1831 = vld [vmem:[%s1786 + $0xb0] sm:$0xf]
    %v1832 = vld [vmem:[%s1786 + $0xb4] sm:$0xf]
    %v1833 = vld [vmem:[%s1786 + $0xb8] sm:$0xf]
    %v1834 = vld [vmem:[%s1786 + $0xbc] sm:$0xf]
    %s1835 = scalar_lea.vmem [#allocation2], 96
    %v1836 = vld [vmem:[%s1835] sm:$0xff]
    %v1837 = vld [vmem:[%s1835 + $0x8] sm:$0xff]
    %v1838 = vld [vmem:[%s1835 + $0x10] sm:$0xff]
    %v1839 = vld [vmem:[%s1835 + $0x18] sm:$0x33]
    %v1888 = vunpack.c.l.b16 %v1787
    %v1889 = vunpack.c.l.b16 %v1788
    %v1890 = vunpack.c.l.b16 %v1789
    %v1891 = vunpack.c.l.b16 %v1790
    %v1892 = vunpack.c.l.b16 %v1791
    %v1893 = vunpack.c.l.b16 %v1792
    %v1894 = vunpack.c.l.b16 %v1793
    %v1895 = vunpack.c.l.b16 %v1794
    %v1896 = vunpack.c.l.b16 %v1795
    %v1897 = vunpack.c.l.b16 %v1796
    %v1898 = vunpack.c.l.b16 %v1797
    %v1899 = vunpack.c.l.b16 %v1798
    %v1900 = vunpack.c.l.b16 %v1799
    %v1901 = vunpack.c.l.b16 %v1800
    %v1902 = vunpack.c.l.b16 %v1801
    %v1903 = vunpack.c.l.b16 %v1802
    %v1904 = vunpack.c.l.b16 %v1803
    %v1905 = vunpack.c.l.b16 %v1804
    %v1906 = vunpack.c.l.b16 %v1805
    %v1907 = vunpack.c.l.b16 %v1806
    %v1908 = vunpack.c.l.b16 %v1807
    %v1909 = vunpack.c.l.b16 %v1808
    %v1910 = vunpack.c.l.b16 %v1809
    %v1911 = vunpack.c.l.b16 %v1810
    %v1912 = vunpack.c.l.b16 %v1811
    %v1913 = vunpack.c.l.b16 %v1812
    %v1914 = vunpack.c.l.b16 %v1813
    %v1915 = vunpack.c.l.b16 %v1814
    %v1916 = vunpack.c.l.b16 %v1815
    %v1917 = vunpack.c.l.b16 %v1816
    %v1918 = vunpack.c.l.b16 %v1817
    %v1919 = vunpack.c.l.b16 %v1818
    %v1920 = vunpack.c.l.b16 %v1819
    %v1921 = vunpack.c.l.b16 %v1820
    %v1922 = vunpack.c.l.b16 %v1821
    %v1923 = vunpack.c.l.b16 %v1822
    %v1924 = vunpack.c.l.b16 %v1823
    %v1925 = vunpack.c.l.b16 %v1824
    %v1926 = vunpack.c.l.b16 %v1825
    %v1927 = vunpack.c.l.b16 %v1826
    %v1928 = vunpack.c.l.b16 %v1827
    %v1929 = vunpack.c.l.b16 %v1828
    %v1930 = vunpack.c.l.b16 %v1829
    %v1931 = vunpack.c.l.b16 %v1830
    %v1932 = vunpack.c.l.b16 %v1831
    %v1933 = vunpack.c.l.b16 %v1832
    %v1934 = vunpack.c.l.b16 %v1833
    %v1935 = vunpack.c.l.b16 %v1834
    %v1936 = vpack.c.b16 %v1889, %v1888
    %v1937 = vpack.c.b16 %v1891, %v1890
    %v1938 = vpack.c.b16 %v1893, %v1892
    %v1939 = vpack.c.b16 %v1895, %v1894
    %v1940 = vpack.c.b16 %v1897, %v1896
    %v1941 = vpack.c.b16 %v1899, %v1898
    %v1942 = vpack.c.b16 %v1901, %v1900
    %v1943 = vpack.c.b16 %v1903, %v1902
    %v1944 = vpack.c.b16 %v1905, %v1904
    %v1945 = vpack.c.b16 %v1907, %v1906
    %v1946 = vpack.c.b16 %v1909, %v1908
    %v1947 = vpack.c.b16 %v1911, %v1910
    %v1948 = vpack.c.b16 %v1913, %v1912
    %v1949 = vpack.c.b16 %v1915, %v1914
    %v1950 = vpack.c.b16 %v1917, %v1916
    %v1951 = vpack.c.b16 %v1919, %v1918
    %v1952 = vpack.c.b16 %v1921, %v1920
    %v1953 = vpack.c.b16 %v1923, %v1922
    %v1954 = vpack.c.b16 %v1925, %v1924
    %v1955 = vpack.c.b16 %v1927, %v1926
    %v1956 = vpack.c.b16 %v1929, %v1928
    %v1957 = vpack.c.b16 %v1931, %v1930
    %v1958 = vpack.c.b16 %v1933, %v1932
    %v1959 = vpack.c.b16 %v1935, %v1934
    %v1964 = vunpack.c.l.b16 %v1836
    %v1965 = vunpack.c.h.b16 %v1836
    %v1966 = vunpack.c.l.b16 %v1837
    %v1967 = vunpack.c.h.b16 %v1837
    %v1968 = vunpack.c.l.b16 %v1838
    %v1969 = vunpack.c.h.b16 %v1838
    %v1970 = vunpack.c.l.b16 %v1839
    %v1971 = vunpack.c.h.b16 %v1839
    %v1972 = vpack.c.b16 %v1966, %v1964
    %v1973 = vpack.c.b16 %v1967, %v1965
    %v1974 = vpack.c.b16 %v1970, %v1968
    %v1975 = vpack.c.b16 %v1971, %v1969
    %v1979 = vsel %vm305, %v1936, 0
    %v1982 = vsel %vm305, %v1937, 0
    %v1985 = vsel %vm305, %v1938, 0
    %v1988 = vsel %vm305, %v1939, 0
    %v1991 = vsel %vm305, %v1940, 0
    %v1994 = vsel %vm305, %v1941, 0
    %v1997 = vsel %vm305, %v1942, 0
    %v2000 = vsel %vm305, %v1943, 0
    %v2003 = vsel %vm305, %v1944, 0
    %v2006 = vsel %vm305, %v1945, 0
    %v2009 = vsel %vm305, %v1946, 0
    %v2012 = vsel %vm305, %v1947, 0
    %v2015 = vsel %vm305, %v1948, 0
    %v2018 = vsel %vm305, %v1949, 0
    %v2021 = vsel %vm305, %v1950, 0
    %v2024 = vsel %vm305, %v1951, 0
    %v2027 = vsel %vm305, %v1952, 0
    %v2030 = vsel %vm305, %v1953, 0
    %v2033 = vsel %vm305, %v1954, 0
    %v2036 = vsel %vm305, %v1955, 0
    %v2039 = vsel %vm305, %v1956, 0
    %v2042 = vsel %vm305, %v1957, 0
    %v2045 = vsel %vm305, %v1958, 0
    %v2048 = vsel %vm305, %v1959, 0
    %v2051 = vsel %vm378, %v1974, 0
    %v2054 = vsel %vm378, %v1975, 0
    %2056 = vmatprep.subr.bf16.mxu0 %v1973
    %2057 = vmatpush1.bf16.msra.mxu0 %v1972
    %2058 = vmatprep.subr.bf16.mxu0 %v2054
    %2059 = vmatpush1.bf16.msra.mxu0 %v2051
    %2060 = vmatprep.subr.bf16.mxu0 0
    %2061 = vmatpush1.bf16.msra.mxu0 0
    %2062 = vmatprep.subr.bf16.mxu0 0
    %2063 = vmatpush1.bf16.msra.mxu0 0
    %2064 = vmatprep.subr.bf16.mxu0 0
    %2065 = vmatpush1.bf16.msra.mxu0 0
    %2066 = vmatprep.subr.bf16.mxu0 0
    %2067 = vmatpush1.bf16.msra.mxu0 0
    %2068 = vmatprep.subr.bf16.mxu0 0
    %2069 = vmatpush1.bf16.msra.mxu0 0
    %2070 = vmatprep.subr.bf16.mxu0 0
    %2071 = vmatpush1.bf16.msra.mxu0 0
    %2072 = vmatprep.subr.bf16.mxu0 0
    %2073 = vmatpush1.bf16.msra.mxu0 0
    %2074 = vmatprep.subr.bf16.mxu0 0
    %2075 = vmatpush1.bf16.msra.mxu0 0
    %2076 = vmatprep.subr.bf16.mxu0 0
    %2077 = vmatpush1.bf16.msra.mxu0 0
    %2078 = vmatprep.subr.bf16.mxu0 0
    %2079 = vmatpush1.bf16.msra.mxu0 0
    %2080 = vmatprep.subr.bf16.mxu0 0
    %2081 = vmatpush1.bf16.msra.mxu0 0
    %2082 = vmatprep.subr.bf16.mxu0 0
    %2083 = vmatpush1.bf16.msra.mxu0 0
    %2084 = vmatprep.subr.bf16.mxu0 0
    %2085 = vmatpush1.bf16.msra.mxu0 0
    %2086 = vmatprep.subr.bf16.mxu0 0
    %2087 = vmatpush1.bf16.msra.mxu0 0
    %2088 = vmatprep.mubr.bf16.mxu0 0
    %2089 = vmatmul.mubr.bf16.gmra.mrb[0].mxu0 %v1979
    %v2090 = vpop.f32.mrb[0].mxu0
    %v2091 = vadd.f32 0.0, %v2090
    %v2092 = vpop.f32.mrb[0].mxu0
    %v2093 = vadd.f32 0.0, %v2092
    %v2094 = vpop.f32.mrb[0].mxu0
    %v2095 = vadd.f32 0.0, %v2094
    %v2096 = vpop.f32.mrb[0].mxu0
    %v2097 = vadd.f32 0.0, %v2096
    %2098 = vmatprep.mubr.bf16.mxu0 0
    %2099 = vmatmul.mubr.bf16.gmra.mrb[0].mxu0 %v1982
    %v2100 = vpop.f32.mrb[0].mxu0
    %v2101 = vadd.f32 0.0, %v2100
    %v2102 = vpop.f32.mrb[0].mxu0
    %v2103 = vadd.f32 0.0, %v2102
    %v2104 = vpop.f32.mrb[0].mxu0
    %v2105 = vadd.f32 0.0, %v2104
    %v2106 = vpop.f32.mrb[0].mxu0
    %v2107 = vadd.f32 0.0, %v2106
    %2108 = vmatprep.mubr.bf16.mxu0 0
    %2109 = vmatmul.mubr.bf16.gmra.mrb[0].mxu0 %v1985
    %v2110 = vpop.f32.mrb[0].mxu0
    %v2111 = vadd.f32 0.0, %v2110
    %v2112 = vpop.f32.mrb[0].mxu0
    %v2113 = vadd.f32 0.0, %v2112
    %v2114 = vpop.f32.mrb[0].mxu0
    %v2115 = vadd.f32 0.0, %v2114
    %v2116 = vpop.f32.mrb[0].mxu0
    %v2117 = vadd.f32 0.0, %v2116
    %2118 = vmatprep.mubr.bf16.mxu0 0
    %2119 = vmatmul.mubr.bf16.gmra.mrb[0].mxu0 %v1988
    %v2120 = vpop.f32.mrb[0].mxu0
    %v2121 = vadd.f32 0.0, %v2120
    %v2122 = vpop.f32.mrb[0].mxu0
    %v2123 = vadd.f32 0.0, %v2122
    %v2124 = vpop.f32.mrb[0].mxu0
    %v2125 = vadd.f32 0.0, %v2124
    %v2126 = vpop.f32.mrb[0].mxu0
    %v2127 = vadd.f32 0.0, %v2126
    %2128 = vmatprep.mubr.bf16.mxu0 0
    %2129 = vmatmul.mubr.bf16.gmra.mrb[0].mxu0 %v1991
    %v2130 = vpop.f32.mrb[0].mxu0
    %v2131 = vadd.f32 0.0, %v2130
    %v2132 = vpop.f32.mrb[0].mxu0
    %v2133 = vadd.f32 0.0, %v2132
    %v2134 = vpop.f32.mrb[0].mxu0
    %v2135 = vadd.f32 0.0, %v2134
    %v2136 = vpop.f32.mrb[0].mxu0
    %v2137 = vadd.f32 0.0, %v2136
    %2138 = vmatprep.mubr.bf16.mxu0 0
    %2139 = vmatmul.mubr.bf16.gmra.mrb[0].mxu0 %v1994
    %v2140 = vpop.f32.mrb[0].mxu0
    %v2141 = vadd.f32 0.0, %v2140
    %v2142 = vpop.f32.mrb[0].mxu0
    %v2143 = vadd.f32 0.0, %v2142
    %v2144 = vpop.f32.mrb[0].mxu0
    %v2145 = vadd.f32 0.0, %v2144
    %v2146 = vpop.f32.mrb[0].mxu0
    %v2147 = vadd.f32 0.0, %v2146
    %2148 = vmatprep.mubr.bf16.mxu0 0
    %2149 = vmatmul.mubr.bf16.gmra.mrb[0].mxu0 %v1997
    %v2150 = vpop.f32.mrb[0].mxu0
    %v2151 = vadd.f32 0.0, %v2150
    %v2152 = vpop.f32.mrb[0].mxu0
    %v2153 = vadd.f32 0.0, %v2152
    %v2154 = vpop.f32.mrb[0].mxu0
    %v2155 = vadd.f32 0.0, %v2154
    %v2156 = vpop.f32.mrb[0].mxu0
    %v2157 = vadd.f32 0.0, %v2156
    %2158 = vmatprep.mubr.bf16.mxu0 0
    %2159 = vmatmul.mubr.bf16.gmra.mrb[0].mxu0 %v2000
    %v2160 = vpop.f32.mrb[0].mxu0
    %v2161 = vadd.f32 0.0, %v2160
    %v2162 = vpop.f32.mrb[0].mxu0
    %v2163 = vadd.f32 0.0, %v2162
    %v2164 = vpop.f32.mrb[0].mxu0
    %v2165 = vadd.f32 0.0, %v2164
    %v2166 = vpop.f32.mrb[0].mxu0
    %v2167 = vadd.f32 0.0, %v2166
    %2168 = vmatprep.mubr.bf16.mxu0 0
    %2169 = vmatmul.mubr.bf16.gmra.mrb[0].mxu0 %v2003
    %v2170 = vpop.f32.mrb[0].mxu0
    %v2171 = vadd.f32 0.0, %v2170
    %v2172 = vpop.f32.mrb[0].mxu0
    %v2173 = vadd.f32 0.0, %v2172
    %v2174 = vpop.f32.mrb[0].mxu0
    %v2175 = vadd.f32 0.0, %v2174
    %v2176 = vpop.f32.mrb[0].mxu0
    %v2177 = vadd.f32 0.0, %v2176
    %2178 = vmatprep.mubr.bf16.mxu0 0
    %2179 = vmatmul.mubr.bf16.gmra.mrb[0].mxu0 %v2006
    %v2180 = vpop.f32.mrb[0].mxu0
    %v2181 = vadd.f32 0.0, %v2180
    %v2182 = vpop.f32.mrb[0].mxu0
    %v2183 = vadd.f32 0.0, %v2182
    %v2184 = vpop.f32.mrb[0].mxu0
    %v2185 = vadd.f32 0.0, %v2184
    %v2186 = vpop.f32.mrb[0].mxu0
    %v2187 = vadd.f32 0.0, %v2186
    %2188 = vmatprep.mubr.bf16.mxu0 0
    %2189 = vmatmul.mubr.bf16.gmra.mrb[0].mxu0 %v2009
    %v2190 = vpop.f32.mrb[0].mxu0
    %v2191 = vadd.f32 0.0, %v2190
    %v2192 = vpop.f32.mrb[0].mxu0
    %v2193 = vadd.f32 0.0, %v2192
    %v2194 = vpop.f32.mrb[0].mxu0
    %v2195 = vadd.f32 0.0, %v2194
    %v2196 = vpop.f32.mrb[0].mxu0
    %v2197 = vadd.f32 0.0, %v2196
    %2198 = vmatprep.mubr.bf16.mxu0 0
    %2199 = vmatmul.mubr.bf16.gmra.mrb[0].mxu0 %v2012
    %v2200 = vpop.f32.mrb[0].mxu0
    %v2201 = vadd.f32 0.0, %v2200
    %v2202 = vpop.f32.mrb[0].mxu0
    %v2203 = vadd.f32 0.0, %v2202
    %v2204 = vpop.f32.mrb[0].mxu0
    %v2205 = vadd.f32 0.0, %v2204
    %v2206 = vpop.f32.mrb[0].mxu0
    %v2207 = vadd.f32 0.0, %v2206
    %2208 = vmatprep.mubr.bf16.mxu0 0
    %2209 = vmatmul.mubr.bf16.gmra.mrb[0].mxu0 %v2015
    %v2210 = vpop.f32.mrb[0].mxu0
    %v2211 = vadd.f32 0.0, %v2210
    %v2212 = vpop.f32.mrb[0].mxu0
    %v2213 = vadd.f32 0.0, %v2212
    %v2214 = vpop.f32.mrb[0].mxu0
    %v2215 = vadd.f32 0.0, %v2214
    %v2216 = vpop.f32.mrb[0].mxu0
    %v2217 = vadd.f32 0.0, %v2216
    %2218 = vmatprep.mubr.bf16.mxu0 0
    %2219 = vmatmul.mubr.bf16.gmra.mrb[0].mxu0 %v2018
    %v2220 = vpop.f32.mrb[0].mxu0
    %v2221 = vadd.f32 0.0, %v2220
    %v2222 = vpop.f32.mrb[0].mxu0
    %v2223 = vadd.f32 0.0, %v2222
    %v2224 = vpop.f32.mrb[0].mxu0
    %v2225 = vadd.f32 0.0, %v2224
    %v2226 = vpop.f32.mrb[0].mxu0
    %v2227 = vadd.f32 0.0, %v2226
    %2228 = vmatprep.mubr.bf16.mxu0 0
    %2229 = vmatmul.mubr.bf16.gmra.mrb[0].mxu0 %v2021
    %v2230 = vpop.f32.mrb[0].mxu0
    %v2231 = vadd.f32 0.0, %v2230
    %v2232 = vpop.f32.mrb[0].mxu0
    %v2233 = vadd.f32 0.0, %v2232
    %v2234 = vpop.f32.mrb[0].mxu0
    %v2235 = vadd.f32 0.0, %v2234
    %v2236 = vpop.f32.mrb[0].mxu0
    %v2237 = vadd.f32 0.0, %v2236
    %2238 = vmatprep.mubr.bf16.mxu0 0
    %2239 = vmatmul.mubr.bf16.gmra.mrb[0].mxu0 %v2024
    %v2240 = vpop.f32.mrb[0].mxu0
    %v2241 = vadd.f32 0.0, %v2240
    %v2242 = vpop.f32.mrb[0].mxu0
    %v2243 = vadd.f32 0.0, %v2242
    %v2244 = vpop.f32.mrb[0].mxu0
    %v2245 = vadd.f32 0.0, %v2244
    %v2246 = vpop.f32.mrb[0].mxu0
    %v2247 = vadd.f32 0.0, %v2246
    %2248 = vmatprep.mubr.bf16.mxu0 0
    %2249 = vmatmul.mubr.bf16.gmra.mrb[0].mxu0 %v2027
    %v2250 = vpop.f32.mrb[0].mxu0
    %v2251 = vadd.f32 0.0, %v2250
    %v2252 = vpop.f32.mrb[0].mxu0
    %v2253 = vadd.f32 0.0, %v2252
    %v2254 = vpop.f32.mrb[0].mxu0
    %v2255 = vadd.f32 0.0, %v2254
    %v2256 = vpop.f32.mrb[0].mxu0
    %v2257 = vadd.f32 0.0, %v2256
    %2258 = vmatprep.mubr.bf16.mxu0 0
    %2259 = vmatmul.mubr.bf16.gmra.mrb[0].mxu0 %v2030
    %v2260 = vpop.f32.mrb[0].mxu0
    %v2261 = vadd.f32 0.0, %v2260
    %v2262 = vpop.f32.mrb[0].mxu0
    %v2263 = vadd.f32 0.0, %v2262
    %v2264 = vpop.f32.mrb[0].mxu0
    %v2265 = vadd.f32 0.0, %v2264
    %v2266 = vpop.f32.mrb[0].mxu0
    %v2267 = vadd.f32 0.0, %v2266
    %2268 = vmatprep.mubr.bf16.mxu0 0
    %2269 = vmatmul.mubr.bf16.gmra.mrb[0].mxu0 %v2033
    %v2270 = vpop.f32.mrb[0].mxu0
    %v2271 = vadd.f32 0.0, %v2270
    %v2272 = vpop.f32.mrb[0].mxu0
    %v2273 = vadd.f32 0.0, %v2272
    %v2274 = vpop.f32.mrb[0].mxu0
    %v2275 = vadd.f32 0.0, %v2274
    %v2276 = vpop.f32.mrb[0].mxu0
    %v2277 = vadd.f32 0.0, %v2276
    %2278 = vmatprep.mubr.bf16.mxu0 0
    %2279 = vmatmul.mubr.bf16.gmra.mrb[0].mxu0 %v2036
    %v2280 = vpop.f32.mrb[0].mxu0
    %v2281 = vadd.f32 0.0, %v2280
    %v2282 = vpop.f32.mrb[0].mxu0
    %v2283 = vadd.f32 0.0, %v2282
    %v2284 = vpop.f32.mrb[0].mxu0
    %v2285 = vadd.f32 0.0, %v2284
    %v2286 = vpop.f32.mrb[0].mxu0
    %v2287 = vadd.f32 0.0, %v2286
    %2288 = vmatprep.mubr.bf16.mxu0 0
    %2289 = vmatmul.mubr.bf16.gmra.mrb[0].mxu0 %v2039
    %v2290 = vpop.f32.mrb[0].mxu0
    %v2291 = vadd.f32 0.0, %v2290
    %v2292 = vpop.f32.mrb[0].mxu0
    %v2293 = vadd.f32 0.0, %v2292
    %v2294 = vpop.f32.mrb[0].mxu0
    %v2295 = vadd.f32 0.0, %v2294
    %v2296 = vpop.f32.mrb[0].mxu0
    %v2297 = vadd.f32 0.0, %v2296
    %2298 = vmatprep.mubr.bf16.mxu0 0
    %2299 = vmatmul.mubr.bf16.gmra.mrb[0].mxu0 %v2042
    %v2300 = vpop.f32.mrb[0].mxu0
    %v2301 = vadd.f32 0.0, %v2300
    %v2302 = vpop.f32.mrb[0].mxu0
    %v2303 = vadd.f32 0.0, %v2302
    %v2304 = vpop.f32.mrb[0].mxu0
    %v2305 = vadd.f32 0.0, %v2304
    %v2306 = vpop.f32.mrb[0].mxu0
    %v2307 = vadd.f32 0.0, %v2306
    %2308 = vmatprep.mubr.bf16.mxu0 0
    %2309 = vmatmul.mubr.bf16.gmra.mrb[0].mxu0 %v2045
    %v2310 = vpop.f32.mrb[0].mxu0
    %v2311 = vadd.f32 0.0, %v2310
    %v2312 = vpop.f32.mrb[0].mxu0
    %v2313 = vadd.f32 0.0, %v2312
    %v2314 = vpop.f32.mrb[0].mxu0
    %v2315 = vadd.f32 0.0, %v2314
    %v2316 = vpop.f32.mrb[0].mxu0
    %v2317 = vadd.f32 0.0, %v2316
    %2318 = vmatprep.mubr.bf16.mxu0 0
    %2319 = vmatmul.mubr.bf16.gmra.mrb[0].mxu0 %v2048
    %v2320 = vpop.f32.mrb[0].mxu0
    %v2321 = vadd.f32 0.0, %v2320
    %v2322 = vpop.f32.mrb[0].mxu0
    %v2323 = vadd.f32 0.0, %v2322
    %v2324 = vpop.f32.mrb[0].mxu0
    %v2325 = vadd.f32 0.0, %v2324
    %v2326 = vpop.f32.mrb[0].mxu0
    %v2327 = vadd.f32 0.0, %v2326
    %2328 = vdwg.mxu0
    %v2329 = vadd.f32 %v1690, %v2091
    %v2330 = vadd.f32 %v1691, %v2093
    %v2331 = vadd.f32 %v1692, %v2095
    %v2332 = vadd.f32 %v1693, %v2097
    %v2333 = vadd.f32 %v1694, %v2101
    %v2334 = vadd.f32 %v1695, %v2103
    %v2335 = vadd.f32 %v1696, %v2105
    %v2336 = vadd.f32 %v1697, %v2107
    %v2337 = vadd.f32 %v1698, %v2111
    %v2338 = vadd.f32 %v1699, %v2113
    %v2339 = vadd.f32 %v1700, %v2115
    %v2340 = vadd.f32 %v1701, %v2117
    %v2341 = vadd.f32 %v1702, %v2121
    %v2342 = vadd.f32 %v1703, %v2123
    %v2343 = vadd.f32 %v1704, %v2125
    %v2344 = vadd.f32 %v1705, %v2127
    %v2345 = vadd.f32 %v1706, %v2131
    %v2346 = vadd.f32 %v1707, %v2133
    %v2347 = vadd.f32 %v1708, %v2135
    %v2348 = vadd.f32 %v1709, %v2137
    %v2349 = vadd.f32 %v1710, %v2141
    %v2350 = vadd.f32 %v1711, %v2143
    %v2351 = vadd.f32 %v1712, %v2145
    %v2352 = vadd.f32 %v1713, %v2147
    %v2353 = vadd.f32 %v1714, %v2151
    %v2354 = vadd.f32 %v1715, %v2153
    %v2355 = vadd.f32 %v1716, %v2155
    %v2356 = vadd.f32 %v1717, %v2157
    %v2357 = vadd.f32 %v1718, %v2161
    %v2358 = vadd.f32 %v1719, %v2163
    %v2359 = vadd.f32 %v1720, %v2165
    %v2360 = vadd.f32 %v1721, %v2167
    %v2361 = vadd.f32 %v1722, %v2171
    %v2362 = vadd.f32 %v1723, %v2173
    %v2363 = vadd.f32 %v1724, %v2175
    %v2364 = vadd.f32 %v1725, %v2177
    %v2365 = vadd.f32 %v1726, %v2181
    %v2366 = vadd.f32 %v1727, %v2183
    %v2367 = vadd.f32 %v1728, %v2185
    %v2368 = vadd.f32 %v1729, %v2187
    %v2369 = vadd.f32 %v1730, %v2191
    %v2370 = vadd.f32 %v1731, %v2193
    %v2371 = vadd.f32 %v1732, %v2195
    %v2372 = vadd.f32 %v1733, %v2197
    %v2373 = vadd.f32 %v1734, %v2201
    %v2374 = vadd.f32 %v1735, %v2203
    %v2375 = vadd.f32 %v1736, %v2205
    %v2376 = vadd.f32 %v1737, %v2207
    %v2377 = vadd.f32 %v1738, %v2211
    %v2378 = vadd.f32 %v1739, %v2213
    %v2379 = vadd.f32 %v1740, %v2215
    %v2380 = vadd.f32 %v1741, %v2217
    %v2381 = vadd.f32 %v1742, %v2221
    %v2382 = vadd.f32 %v1743, %v2223
    %v2383 = vadd.f32 %v1744, %v2225
    %v2384 = vadd.f32 %v1745, %v2227
    %v2385 = vadd.f32 %v1746, %v2231
    %v2386 = vadd.f32 %v1747, %v2233
    %v2387 = vadd.f32 %v1748, %v2235
    %v2388 = vadd.f32 %v1749, %v2237
    %v2389 = vadd.f32 %v1750, %v2241
    %v2390 = vadd.f32 %v1751, %v2243
    %v2391 = vadd.f32 %v1752, %v2245
    %v2392 = vadd.f32 %v1753, %v2247
    %v2393 = vadd.f32 %v1754, %v2251
    %v2394 = vadd.f32 %v1755, %v2253
    %v2395 = vadd.f32 %v1756, %v2255
    %v2396 = vadd.f32 %v1757, %v2257
    %v2397 = vadd.f32 %v1758, %v2261
    %v2398 = vadd.f32 %v1759, %v2263
    %v2399 = vadd.f32 %v1760, %v2265
    %v2400 = vadd.f32 %v1761, %v2267
    %v2401 = vadd.f32 %v1762, %v2271
    %v2402 = vadd.f32 %v1763, %v2273
    %v2403 = vadd.f32 %v1764, %v2275
    %v2404 = vadd.f32 %v1765, %v2277
    %v2405 = vadd.f32 %v1766, %v2281
    %v2406 = vadd.f32 %v1767, %v2283
    %v2407 = vadd.f32 %v1768, %v2285
    %v2408 = vadd.f32 %v1769, %v2287
    %v2409 = vadd.f32 %v1770, %v2291
    %v2410 = vadd.f32 %v1771, %v2293
    %v2411 = vadd.f32 %v1772, %v2295
    %v2412 = vadd.f32 %v1773, %v2297
    %v2413 = vadd.f32 %v1774, %v2301
    %v2414 = vadd.f32 %v1775, %v2303
    %v2415 = vadd.f32 %v1776, %v2305
    %v2416 = vadd.f32 %v1777, %v2307
    %v2417 = vadd.f32 %v1778, %v2311
    %v2418 = vadd.f32 %v1779, %v2313
    %v2419 = vadd.f32 %v1780, %v2315
    %v2420 = vadd.f32 %v1781, %v2317
    %v2421 = vadd.f32 %v1782, %v2321
    %v2422 = vadd.f32 %v1783, %v2323
    %v2423 = vadd.f32 %v1784, %v2325
    %v2424 = vadd.f32 %v1785, %v2327
    %s2425 = scalar_lea.vmem %s0, 32
    %v2426 = vld [vmem:[%s2425] sm:$0xf]
    %v2427 = vld [vmem:[%s2425 + $0x4] sm:$0xf]
    %v2428 = vld [vmem:[%s2425 + $0x8] sm:$0xf]
    %v2429 = vld [vmem:[%s2425 + $0xc] sm:$0xf]
    %v2430 = vld [vmem:[%s2425 + $0x10] sm:$0xf]
    %v2431 = vld [vmem:[%s2425 + $0x14] sm:$0xf]
    %v2432 = vld [vmem:[%s2425 + $0x18] sm:$0xf]
    %v2433 = vld [vmem:[%s2425 + $0x1c] sm:$0xf]
    %v2434 = vld [vmem:[%s2425 + $0x20] sm:$0xf]
    %v2435 = vld [vmem:[%s2425 + $0x24] sm:$0xf]
    %v2436 = vld [vmem:[%s2425 + $0x28] sm:$0xf]
    %v2437 = vld [vmem:[%s2425 + $0x2c] sm:$0xf]
    %v2438 = vld [vmem:[%s2425 + $0x30] sm:$0xf]
    %v2439 = vld [vmem:[%s2425 + $0x34] sm:$0xf]
    %v2440 = vld [vmem:[%s2425 + $0x38] sm:$0xf]
    %v2441 = vld [vmem:[%s2425 + $0x3c] sm:$0xf]
    %v2442 = vld [vmem:[%s2425 + $0x40] sm:$0xf]
    %v2443 = vld [vmem:[%s2425 + $0x44] sm:$0xf]
    %v2444 = vld [vmem:[%s2425 + $0x48] sm:$0xf]
    %v2445 = vld [vmem:[%s2425 + $0x4c] sm:$0xf]
    %v2446 = vld [vmem:[%s2425 + $0x50] sm:$0xf]
    %v2447 = vld [vmem:[%s2425 + $0x54] sm:$0xf]
    %v2448 = vld [vmem:[%s2425 + $0x58] sm:$0xf]
    %v2449 = vld [vmem:[%s2425 + $0x5c] sm:$0xf]
    %v2450 = vld [vmem:[%s2425 + $0x60] sm:$0xf]
    %v2451 = vld [vmem:[%s2425 + $0x64] sm:$0xf]
    %v2452 = vld [vmem:[%s2425 + $0x68] sm:$0xf]
    %v2453 = vld [vmem:[%s2425 + $0x6c] sm:$0xf]
    %v2454 = vld [vmem:[%s2425 + $0x70] sm:$0xf]
    %v2455 = vld [vmem:[%s2425 + $0x74] sm:$0xf]
    %v2456 = vld [vmem:[%s2425 + $0x78] sm:$0xf]
    %v2457 = vld [vmem:[%s2425 + $0x7c] sm:$0xf]
    %v2458 = vld [vmem:[%s2425 + $0x80] sm:$0xf]
    %v2459 = vld [vmem:[%s2425 + $0x84] sm:$0xf]
    %v2460 = vld [vmem:[%s2425 + $0x88] sm:$0xf]
    %v2461 = vld [vmem:[%s2425 + $0x8c] sm:$0xf]
    %v2462 = vld [vmem:[%s2425 + $0x90] sm:$0xf]
    %v2463 = vld [vmem:[%s2425 + $0x94] sm:$0xf]
    %v2464 = vld [vmem:[%s2425 + $0x98] sm:$0xf]
    %v2465 = vld [vmem:[%s2425 + $0x9c] sm:$0xf]
    %v2466 = vld [vmem:[%s2425 + $0xa0] sm:$0xf]
    %v2467 = vld [vmem:[%s2425 + $0xa4] sm:$0xf]
    %v2468 = vld [vmem:[%s2425 + $0xa8] sm:$0xf]
    %v2469 = vld [vmem:[%s2425 + $0xac] sm:$0xf]
    %v2470 = vld [vmem:[%s2425 + $0xb0] sm:$0xf]
    %v2471 = vld [vmem:[%s2425 + $0xb4] sm:$0xf]
    %v2472 = vld [vmem:[%s2425 + $0xb8] sm:$0xf]
    %v2473 = vld [vmem:[%s2425 + $0xbc] sm:$0xf]
    %s2474 = scalar_lea.vmem [#allocation2], 128
    %v2475 = vld [vmem:[%s2474] sm:$0xff]
    %v2476 = vld [vmem:[%s2474 + $0x8] sm:$0xff]
    %v2477 = vld [vmem:[%s2474 + $0x10] sm:$0xff]
    %v2478 = vld [vmem:[%s2474 + $0x18] sm:$0x33]
    %v2527 = vunpack.c.l.b16 %v2426
    %v2528 = vunpack.c.l.b16 %v2427
    %v2529 = vunpack.c.l.b16 %v2428
    %v2530 = vunpack.c.l.b16 %v2429
    %v2531 = vunpack.c.l.b16 %v2430
    %v2532 = vunpack.c.l.b16 %v2431
    %v2533 = vunpack.c.l.b16 %v2432
    %v2534 = vunpack.c.l.b16 %v2433
    %v2535 = vunpack.c.l.b16 %v2434
    %v2536 = vunpack.c.l.b16 %v2435
    %v2537 = vunpack.c.l.b16 %v2436
    %v2538 = vunpack.c.l.b16 %v2437
    %v2539 = vunpack.c.l.b16 %v2438
    %v2540 = vunpack.c.l.b16 %v2439
    %v2541 = vunpack.c.l.b16 %v2440
    %v2542 = vunpack.c.l.b16 %v2441
    %v2543 = vunpack.c.l.b16 %v2442
    %v2544 = vunpack.c.l.b16 %v2443
    %v2545 = vunpack.c.l.b16 %v2444
    %v2546 = vunpack.c.l.b16 %v2445
    %v2547 = vunpack.c.l.b16 %v2446
    %v2548 = vunpack.c.l.b16 %v2447
    %v2549 = vunpack.c.l.b16 %v2448
    %v2550 = vunpack.c.l.b16 %v2449
    %v2551 = vunpack.c.l.b16 %v2450
    %v2552 = vunpack.c.l.b16 %v2451
    %v2553 = vunpack.c.l.b16 %v2452
    %v2554 = vunpack.c.l.b16 %v2453
    %v2555 = vunpack.c.l.b16 %v2454
    %v2556 = vunpack.c.l.b16 %v2455
    %v2557 = vunpack.c.l.b16 %v2456
    %v2558 = vunpack.c.l.b16 %v2457
    %v2559 = vunpack.c.l.b16 %v2458
    %v2560 = vunpack.c.l.b16 %v2459
    %v2561 = vunpack.c.l.b16 %v2460
    %v2562 = vunpack.c.l.b16 %v2461
    %v2563 = vunpack.c.l.b16 %v2462
    %v2564 = vunpack.c.l.b16 %v2463
    %v2565 = vunpack.c.l.b16 %v2464
    %v2566 = vunpack.c.l.b16 %v2465
    %v2567 = vunpack.c.l.b16 %v2466
    %v2568 = vunpack.c.l.b16 %v2467
    %v2569 = vunpack.c.l.b16 %v2468
    %v2570 = vunpack.c.l.b16 %v2469
    %v2571 = vunpack.c.l.b16 %v2470
    %v2572 = vunpack.c.l.b16 %v2471
    %v2573 = vunpack.c.l.b16 %v2472
    %v2574 = vunpack.c.l.b16 %v2473
    %v2575 = vpack.c.b16 %v2528, %v2527
    %v2576 = vpack.c.b16 %v2530, %v2529
    %v2577 = vpack.c.b16 %v2532, %v2531
    %v2578 = vpack.c.b16 %v2534, %v2533
    %v2579 = vpack.c.b16 %v2536, %v2535
    %v2580 = vpack.c.b16 %v2538, %v2537
    %v2581 = vpack.c.b16 %v2540, %v2539
    %v2582 = vpack.c.b16 %v2542, %v2541
    %v2583 = vpack.c.b16 %v2544, %v2543
    %v2584 = vpack.c.b16 %v2546, %v2545
    %v2585 = vpack.c.b16 %v2548, %v2547
    %v2586 = vpack.c.b16 %v2550, %v2549
    %v2587 = vpack.c.b16 %v2552, %v2551
    %v2588 = vpack.c.b16 %v2554, %v2553
    %v2589 = vpack.c.b16 %v2556, %v2555
    %v2590 = vpack.c.b16 %v2558, %v2557
    %v2591 = vpack.c.b16 %v2560, %v2559
    %v2592 = vpack.c.b16 %v2562, %v2561
    %v2593 = vpack.c.b16 %v2564, %v2563
    %v2594 = vpack.c.b16 %v2566, %v2565
    %v2595 = vpack.c.b16 %v2568, %v2567
    %v2596 = vpack.c.b16 %v2570, %v2569
    %v2597 = vpack.c.b16 %v2572, %v2571
    %v2598 = vpack.c.b16 %v2574, %v2573
    %v2603 = vunpack.c.l.b16 %v2475
    %v2604 = vunpack.c.h.b16 %v2475
    %v2605 = vunpack.c.l.b16 %v2476
    %v2606 = vunpack.c.h.b16 %v2476
    %v2607 = vunpack.c.l.b16 %v2477
    %v2608 = vunpack.c.h.b16 %v2477
    %v2609 = vunpack.c.l.b16 %v2478
    %v2610 = vunpack.c.h.b16 %v2478
    %v2611 = vpack.c.b16 %v2605, %v2603
    %v2612 = vpack.c.b16 %v2606, %v2604
    %v2613 = vpack.c.b16 %v2609, %v2607
    %v2614 = vpack.c.b16 %v2610, %v2608
    %v2618 = vsel %vm305, %v2575, 0
    %v2621 = vsel %vm305, %v2576, 0
    %v2624 = vsel %vm305, %v2577, 0
    %v2627 = vsel %vm305, %v2578, 0
    %v2630 = vsel %vm305, %v2579, 0
    %v2633 = vsel %vm305, %v2580, 0
    %v2636 = vsel %vm305, %v2581, 0
    %v2639 = vsel %vm305, %v2582, 0
    %v2642 = vsel %vm305, %v2583, 0
    %v2645 = vsel %vm305, %v2584, 0
    %v2648 = vsel %vm305, %v2585, 0
    %v2651 = vsel %vm305, %v2586, 0
    %v2654 = vsel %vm305, %v2587, 0
    %v2657 = vsel %vm305, %v2588, 0
    %v2660 = vsel %vm305, %v2589, 0
    %v2663 = vsel %vm305, %v2590, 0
    %v2666 = vsel %vm305, %v2591, 0
    %v2669 = vsel %vm305, %v2592, 0
    %v2672 = vsel %vm305, %v2593, 0
    %v2675 = vsel %vm305, %v2594, 0
    %v2678 = vsel %vm305, %v2595, 0
    %v2681 = vsel %vm305, %v2596, 0
    %v2684 = vsel %vm305, %v2597, 0
    %v2687 = vsel %vm305, %v2598, 0
    %v2690 = vsel %vm378, %v2613, 0
    %v2693 = vsel %vm378, %v2614, 0
    %2695 = vmatprep.subr.bf16.mxu0 %v2612
    %2696 = vmatpush1.bf16.msra.mxu0 %v2611
    %2697 = vmatprep.subr.bf16.mxu0 %v2693
    %2698 = vmatpush1.bf16.msra.mxu0 %v2690
    %2699 = vmatprep.subr.bf16.mxu0 0
    %2700 = vmatpush1.bf16.msra.mxu0 0
    %2701 = vmatprep.subr.bf16.mxu0 0
    %2702 = vmatpush1.bf16.msra.mxu0 0
    %2703 = vmatprep.subr.bf16.mxu0 0
    %2704 = vmatpush1.bf16.msra.mxu0 0
    %2705 = vmatprep.subr.bf16.mxu0 0
    %2706 = vmatpush1.bf16.msra.mxu0 0
    %2707 = vmatprep.subr.bf16.mxu0 0
    %2708 = vmatpush1.bf16.msra.mxu0 0
    %2709 = vmatprep.subr.bf16.mxu0 0
    %2710 = vmatpush1.bf16.msra.mxu0 0
    %2711 = vmatprep.subr.bf16.mxu0 0
    %2712 = vmatpush1.bf16.msra.mxu0 0
    %2713 = vmatprep.subr.bf16.mxu0 0
    %2714 = vmatpush1.bf16.msra.mxu0 0
    %2715 = vmatprep.subr.bf16.mxu0 0
    %2716 = vmatpush1.bf16.msra.mxu0 0
    %2717 = vmatprep.subr.bf16.mxu0 0
    %2718 = vmatpush1.bf16.msra.mxu0 0
    %2719 = vmatprep.subr.bf16.mxu0 0
    %2720 = vmatpush1.bf16.msra.mxu0 0
    %2721 = vmatprep.subr.bf16.mxu0 0
    %2722 = vmatpush1.bf16.msra.mxu0 0
    %2723 = vmatprep.subr.bf16.mxu0 0
    %2724 = vmatpush1.bf16.msra.mxu0 0
    %2725 = vmatprep.subr.bf16.mxu0 0
    %2726 = vmatpush1.bf16.msra.mxu0 0
    %2727 = vmatprep.mubr.bf16.mxu0 0
    %2728 = vmatmul.mubr.bf16.gmra.mrb[0].mxu0 %v2618
    %v2729 = vpop.f32.mrb[0].mxu0
    %v2730 = vadd.f32 0.0, %v2729
    %v2731 = vpop.f32.mrb[0].mxu0
    %v2732 = vadd.f32 0.0, %v2731
    %v2733 = vpop.f32.mrb[0].mxu0
    %v2734 = vadd.f32 0.0, %v2733
    %v2735 = vpop.f32.mrb[0].mxu0
    %v2736 = vadd.f32 0.0, %v2735
    %2737 = vmatprep.mubr.bf16.mxu0 0
    %2738 = vmatmul.mubr.bf16.gmra.mrb[0].mxu0 %v2621
    %v2739 = vpop.f32.mrb[0].mxu0
    %v2740 = vadd.f32 0.0, %v2739
    %v2741 = vpop.f32.mrb[0].mxu0
    %v2742 = vadd.f32 0.0, %v2741
    %v2743 = vpop.f32.mrb[0].mxu0
    %v2744 = vadd.f32 0.0, %v2743
    %v2745 = vpop.f32.mrb[0].mxu0
    %v2746 = vadd.f32 0.0, %v2745
    %2747 = vmatprep.mubr.bf16.mxu0 0
    %2748 = vmatmul.mubr.bf16.gmra.mrb[0].mxu0 %v2624
    %v2749 = vpop.f32.mrb[0].mxu0
    %v2750 = vadd.f32 0.0, %v2749
    %v2751 = vpop.f32.mrb[0].mxu0
    %v2752 = vadd.f32 0.0, %v2751
    %v2753 = vpop.f32.mrb[0].mxu0
    %v2754 = vadd.f32 0.0, %v2753
    %v2755 = vpop.f32.mrb[0].mxu0
    %v2756 = vadd.f32 0.0, %v2755
    %2757 = vmatprep.mubr.bf16.mxu0 0
    %2758 = vmatmul.mubr.bf16.gmra.mrb[0].mxu0 %v2627
    %v2759 = vpop.f32.mrb[0].mxu0
    %v2760 = vadd.f32 0.0, %v2759
    %v2761 = vpop.f32.mrb[0].mxu0
    %v2762 = vadd.f32 0.0, %v2761
    %v2763 = vpop.f32.mrb[0].mxu0
    %v2764 = vadd.f32 0.0, %v2763
    %v2765 = vpop.f32.mrb[0].mxu0
    %v2766 = vadd.f32 0.0, %v2765
    %2767 = vmatprep.mubr.bf16.mxu0 0
    %2768 = vmatmul.mubr.bf16.gmra.mrb[0].mxu0 %v2630
    %v2769 = vpop.f32.mrb[0].mxu0
    %v2770 = vadd.f32 0.0, %v2769
    %v2771 = vpop.f32.mrb[0].mxu0
    %v2772 = vadd.f32 0.0, %v2771
    %v2773 = vpop.f32.mrb[0].mxu0
    %v2774 = vadd.f32 0.0, %v2773
    %v2775 = vpop.f32.mrb[0].mxu0
    %v2776 = vadd.f32 0.0, %v2775
    %2777 = vmatprep.mubr.bf16.mxu0 0
    %2778 = vmatmul.mubr.bf16.gmra.mrb[0].mxu0 %v2633
    %v2779 = vpop.f32.mrb[0].mxu0
    %v2780 = vadd.f32 0.0, %v2779
    %v2781 = vpop.f32.mrb[0].mxu0
    %v2782 = vadd.f32 0.0, %v2781
    %v2783 = vpop.f32.mrb[0].mxu0
    %v2784 = vadd.f32 0.0, %v2783
    %v2785 = vpop.f32.mrb[0].mxu0
    %v2786 = vadd.f32 0.0, %v2785
    %2787 = vmatprep.mubr.bf16.mxu0 0
    %2788 = vmatmul.mubr.bf16.gmra.mrb[0].mxu0 %v2636
    %v2789 = vpop.f32.mrb[0].mxu0
    %v2790 = vadd.f32 0.0, %v2789
    %v2791 = vpop.f32.mrb[0].mxu0
    %v2792 = vadd.f32 0.0, %v2791
    %v2793 = vpop.f32.mrb[0].mxu0
    %v2794 = vadd.f32 0.0, %v2793
    %v2795 = vpop.f32.mrb[0].mxu0
    %v2796 = vadd.f32 0.0, %v2795
    %2797 = vmatprep.mubr.bf16.mxu0 0
    %2798 = vmatmul.mubr.bf16.gmra.mrb[0].mxu0 %v2639
    %v2799 = vpop.f32.mrb[0].mxu0
    %v2800 = vadd.f32 0.0, %v2799
    %v2801 = vpop.f32.mrb[0].mxu0
    %v2802 = vadd.f32 0.0, %v2801
    %v2803 = vpop.f32.mrb[0].mxu0
    %v2804 = vadd.f32 0.0, %v2803
    %v2805 = vpop.f32.mrb[0].mxu0
    %v2806 = vadd.f32 0.0, %v2805
    %2807 = vmatprep.mubr.bf16.mxu0 0
    %2808 = vmatmul.mubr.bf16.gmra.mrb[0].mxu0 %v2642
    %v2809 = vpop.f32.mrb[0].mxu0
    %v2810 = vadd.f32 0.0, %v2809
    %v2811 = vpop.f32.mrb[0].mxu0
    %v2812 = vadd.f32 0.0, %v2811
    %v2813 = vpop.f32.mrb[0].mxu0
    %v2814 = vadd.f32 0.0, %v2813
    %v2815 = vpop.f32.mrb[0].mxu0
    %v2816 = vadd.f32 0.0, %v2815
    %2817 = vmatprep.mubr.bf16.mxu0 0
    %2818 = vmatmul.mubr.bf16.gmra.mrb[0].mxu0 %v2645
    %v2819 = vpop.f32.mrb[0].mxu0
    %v2820 = vadd.f32 0.0, %v2819
    %v2821 = vpop.f32.mrb[0].mxu0
    %v2822 = vadd.f32 0.0, %v2821
    %v2823 = vpop.f32.mrb[0].mxu0
    %v2824 = vadd.f32 0.0, %v2823
    %v2825 = vpop.f32.mrb[0].mxu0
    %v2826 = vadd.f32 0.0, %v2825
    %2827 = vmatprep.mubr.bf16.mxu0 0
    %2828 = vmatmul.mubr.bf16.gmra.mrb[0].mxu0 %v2648
    %v2829 = vpop.f32.mrb[0].mxu0
    %v2830 = vadd.f32 0.0, %v2829
    %v2831 = vpop.f32.mrb[0].mxu0
    %v2832 = vadd.f32 0.0, %v2831
    %v2833 = vpop.f32.mrb[0].mxu0
    %v2834 = vadd.f32 0.0, %v2833
    %v2835 = vpop.f32.mrb[0].mxu0
    %v2836 = vadd.f32 0.0, %v2835
    %2837 = vmatprep.mubr.bf16.mxu0 0
    %2838 = vmatmul.mubr.bf16.gmra.mrb[0].mxu0 %v2651
    %v2839 = vpop.f32.mrb[0].mxu0
    %v2840 = vadd.f32 0.0, %v2839
    %v2841 = vpop.f32.mrb[0].mxu0
    %v2842 = vadd.f32 0.0, %v2841
    %v2843 = vpop.f32.mrb[0].mxu0
    %v2844 = vadd.f32 0.0, %v2843
    %v2845 = vpop.f32.mrb[0].mxu0
    %v2846 = vadd.f32 0.0, %v2845
    %2847 = vmatprep.mubr.bf16.mxu0 0
    %2848 = vmatmul.mubr.bf16.gmra.mrb[0].mxu0 %v2654
    %v2849 = vpop.f32.mrb[0].mxu0
    %v2850 = vadd.f32 0.0, %v2849
    %v2851 = vpop.f32.mrb[0].mxu0
    %v2852 = vadd.f32 0.0, %v2851
    %v2853 = vpop.f32.mrb[0].mxu0
    %v2854 = vadd.f32 0.0, %v2853
    %v2855 = vpop.f32.mrb[0].mxu0
    %v2856 = vadd.f32 0.0, %v2855
    %2857 = vmatprep.mubr.bf16.mxu0 0
    %2858 = vmatmul.mubr.bf16.gmra.mrb[0].mxu0 %v2657
    %v2859 = vpop.f32.mrb[0].mxu0
    %v2860 = vadd.f32 0.0, %v2859
    %v2861 = vpop.f32.mrb[0].mxu0
    %v2862 = vadd.f32 0.0, %v2861
    %v2863 = vpop.f32.mrb[0].mxu0
    %v2864 = vadd.f32 0.0, %v2863
    %v2865 = vpop.f32.mrb[0].mxu0
    %v2866 = vadd.f32 0.0, %v2865
    %2867 = vmatprep.mubr.bf16.mxu0 0
    %2868 = vmatmul.mubr.bf16.gmra.mrb[0].mxu0 %v2660
    %v2869 = vpop.f32.mrb[0].mxu0
    %v2870 = vadd.f32 0.0, %v2869
    %v2871 = vpop.f32.mrb[0].mxu0
    %v2872 = vadd.f32 0.0, %v2871
    %v2873 = vpop.f32.mrb[0].mxu0
    %v2874 = vadd.f32 0.0, %v2873
    %v2875 = vpop.f32.mrb[0].mxu0
    %v2876 = vadd.f32 0.0, %v2875
    %2877 = vmatprep.mubr.bf16.mxu0 0
    %2878 = vmatmul.mubr.bf16.gmra.mrb[0].mxu0 %v2663
    %v2879 = vpop.f32.mrb[0].mxu0
    %v2880 = vadd.f32 0.0, %v2879
    %v2881 = vpop.f32.mrb[0].mxu0
    %v2882 = vadd.f32 0.0, %v2881
    %v2883 = vpop.f32.mrb[0].mxu0
    %v2884 = vadd.f32 0.0, %v2883
    %v2885 = vpop.f32.mrb[0].mxu0
    %v2886 = vadd.f32 0.0, %v2885
    %2887 = vmatprep.mubr.bf16.mxu0 0
    %2888 = vmatmul.mubr.bf16.gmra.mrb[0].mxu0 %v2666
    %v2889 = vpop.f32.mrb[0].mxu0
    %v2890 = vadd.f32 0.0, %v2889
    %v2891 = vpop.f32.mrb[0].mxu0
    %v2892 = vadd.f32 0.0, %v2891
    %v2893 = vpop.f32.mrb[0].mxu0
    %v2894 = vadd.f32 0.0, %v2893
    %v2895 = vpop.f32.mrb[0].mxu0
    %v2896 = vadd.f32 0.0, %v2895
    %2897 = vmatprep.mubr.bf16.mxu0 0
    %2898 = vmatmul.mubr.bf16.gmra.mrb[0].mxu0 %v2669
    %v2899 = vpop.f32.mrb[0].mxu0
    %v2900 = vadd.f32 0.0, %v2899
    %v2901 = vpop.f32.mrb[0].mxu0
    %v2902 = vadd.f32 0.0, %v2901
    %v2903 = vpop.f32.mrb[0].mxu0
    %v2904 = vadd.f32 0.0, %v2903
    %v2905 = vpop.f32.mrb[0].mxu0
    %v2906 = vadd.f32 0.0, %v2905
    %2907 = vmatprep.mubr.bf16.mxu0 0
    %2908 = vmatmul.mubr.bf16.gmra.mrb[0].mxu0 %v2672
    %v2909 = vpop.f32.mrb[0].mxu0
    %v2910 = vadd.f32 0.0, %v2909
    %v2911 = vpop.f32.mrb[0].mxu0
    %v2912 = vadd.f32 0.0, %v2911
    %v2913 = vpop.f32.mrb[0].mxu0
    %v2914 = vadd.f32 0.0, %v2913
    %v2915 = vpop.f32.mrb[0].mxu0
    %v2916 = vadd.f32 0.0, %v2915
    %2917 = vmatprep.mubr.bf16.mxu0 0
    %2918 = vmatmul.mubr.bf16.gmra.mrb[0].mxu0 %v2675
    %v2919 = vpop.f32.mrb[0].mxu0
    %v2920 = vadd.f32 0.0, %v2919
    %v2921 = vpop.f32.mrb[0].mxu0
    %v2922 = vadd.f32 0.0, %v2921
    %v2923 = vpop.f32.mrb[0].mxu0
    %v2924 = vadd.f32 0.0, %v2923
    %v2925 = vpop.f32.mrb[0].mxu0
    %v2926 = vadd.f32 0.0, %v2925
    %2927 = vmatprep.mubr.bf16.mxu0 0
    %2928 = vmatmul.mubr.bf16.gmra.mrb[0].mxu0 %v2678
    %v2929 = vpop.f32.mrb[0].mxu0
    %v2930 = vadd.f32 0.0, %v2929
    %v2931 = vpop.f32.mrb[0].mxu0
    %v2932 = vadd.f32 0.0, %v2931
    %v2933 = vpop.f32.mrb[0].mxu0
    %v2934 = vadd.f32 0.0, %v2933
    %v2935 = vpop.f32.mrb[0].mxu0
    %v2936 = vadd.f32 0.0, %v2935
    %2937 = vmatprep.mubr.bf16.mxu0 0
    %2938 = vmatmul.mubr.bf16.gmra.mrb[0].mxu0 %v2681
    %v2939 = vpop.f32.mrb[0].mxu0
    %v2940 = vadd.f32 0.0, %v2939
    %v2941 = vpop.f32.mrb[0].mxu0
    %v2942 = vadd.f32 0.0, %v2941
    %v2943 = vpop.f32.mrb[0].mxu0
    %v2944 = vadd.f32 0.0, %v2943
    %v2945 = vpop.f32.mrb[0].mxu0
    %v2946 = vadd.f32 0.0, %v2945
    %2947 = vmatprep.mubr.bf16.mxu0 0
    %2948 = vmatmul.mubr.bf16.gmra.mrb[0].mxu0 %v2684
    %v2949 = vpop.f32.mrb[0].mxu0
    %v2950 = vadd.f32 0.0, %v2949
    %v2951 = vpop.f32.mrb[0].mxu0
    %v2952 = vadd.f32 0.0, %v2951
    %v2953 = vpop.f32.mrb[0].mxu0
    %v2954 = vadd.f32 0.0, %v2953
    %v2955 = vpop.f32.mrb[0].mxu0
    %v2956 = vadd.f32 0.0, %v2955
    %2957 = vmatprep.mubr.bf16.mxu0 0
    %2958 = vmatmul.mubr.bf16.gmra.mrb[0].mxu0 %v2687
    %v2959 = vpop.f32.mrb[0].mxu0
    %v2960 = vadd.f32 0.0, %v2959
    %v2961 = vpop.f32.mrb[0].mxu0
    %v2962 = vadd.f32 0.0, %v2961
    %v2963 = vpop.f32.mrb[0].mxu0
    %v2964 = vadd.f32 0.0, %v2963
    %v2965 = vpop.f32.mrb[0].mxu0
    %v2966 = vadd.f32 0.0, %v2965
    %2967 = vdwg.mxu0
    %v2968 = vadd.f32 %v2329, %v2730
    %v2969 = vadd.f32 %v2330, %v2732
    %v2970 = vadd.f32 %v2331, %v2734
    %v2971 = vadd.f32 %v2332, %v2736
    %v2972 = vadd.f32 %v2333, %v2740
    %v2973 = vadd.f32 %v2334, %v2742
    %v2974 = vadd.f32 %v2335, %v2744
    %v2975 = vadd.f32 %v2336, %v2746
    %v2976 = vadd.f32 %v2337, %v2750
    %v2977 = vadd.f32 %v2338, %v2752
    %v2978 = vadd.f32 %v2339, %v2754
    %v2979 = vadd.f32 %v2340, %v2756
    %v2980 = vadd.f32 %v2341, %v2760
    %v2981 = vadd.f32 %v2342, %v2762
    %v2982 = vadd.f32 %v2343, %v2764
    %v2983 = vadd.f32 %v2344, %v2766
    %v2984 = vadd.f32 %v2345, %v2770
    %v2985 = vadd.f32 %v2346, %v2772
    %v2986 = vadd.f32 %v2347, %v2774
    %v2987 = vadd.f32 %v2348, %v2776
    %v2988 = vadd.f32 %v2349, %v2780
    %v2989 = vadd.f32 %v2350, %v2782
    %v2990 = vadd.f32 %v2351, %v2784
    %v2991 = vadd.f32 %v2352, %v2786
    %v2992 = vadd.f32 %v2353, %v2790
    %v2993 = vadd.f32 %v2354, %v2792
    %v2994 = vadd.f32 %v2355, %v2794
    %v2995 = vadd.f32 %v2356, %v2796
    %v2996 = vadd.f32 %v2357, %v2800
    %v2997 = vadd.f32 %v2358, %v2802
    %v2998 = vadd.f32 %v2359, %v2804
    %v2999 = vadd.f32 %v2360, %v2806
    %v3000 = vadd.f32 %v2361, %v2810
    %v3001 = vadd.f32 %v2362, %v2812
    %v3002 = vadd.f32 %v2363, %v2814
    %v3003 = vadd.f32 %v2364, %v2816
    %v3004 = vadd.f32 %v2365, %v2820
    %v3005 = vadd.f32 %v2366, %v2822
    %v3006 = vadd.f32 %v2367, %v2824
    %v3007 = vadd.f32 %v2368, %v2826
    %v3008 = vadd.f32 %v2369, %v2830
    %v3009 = vadd.f32 %v2370, %v2832
    %v3010 = vadd.f32 %v2371, %v2834
    %v3011 = vadd.f32 %v2372, %v2836
    %v3012 = vadd.f32 %v2373, %v2840
    %v3013 = vadd.f32 %v2374, %v2842
    %v3014 = vadd.f32 %v2375, %v2844
    %v3015 = vadd.f32 %v2376, %v2846
    %v3016 = vadd.f32 %v2377, %v2850
    %v3017 = vadd.f32 %v2378, %v2852
    %v3018 = vadd.f32 %v2379, %v2854
    %v3019 = vadd.f32 %v2380, %v2856
    %v3020 = vadd.f32 %v2381, %v2860
    %v3021 = vadd.f32 %v2382, %v2862
    %v3022 = vadd.f32 %v2383, %v2864
    %v3023 = vadd.f32 %v2384, %v2866
    %v3024 = vadd.f32 %v2385, %v2870
    %v3025 = vadd.f32 %v2386, %v2872
    %v3026 = vadd.f32 %v2387, %v2874
    %v3027 = vadd.f32 %v2388, %v2876
    %v3028 = vadd.f32 %v2389, %v2880
    %v3029 = vadd.f32 %v2390, %v2882
    %v3030 = vadd.f32 %v2391, %v2884
    %v3031 = vadd.f32 %v2392, %v2886
    %v3032 = vadd.f32 %v2393, %v2890
    %v3033 = vadd.f32 %v2394, %v2892
    %v3034 = vadd.f32 %v2395, %v2894
    %v3035 = vadd.f32 %v2396, %v2896
    %v3036 = vadd.f32 %v2397, %v2900
    %v3037 = vadd.f32 %v2398, %v2902
    %v3038 = vadd.f32 %v2399, %v2904
    %v3039 = vadd.f32 %v2400, %v2906
    %v3040 = vadd.f32 %v2401, %v2910
    %v3041 = vadd.f32 %v2402, %v2912
    %v3042 = vadd.f32 %v2403, %v2914
    %v3043 = vadd.f32 %v2404, %v2916
    %v3044 = vadd.f32 %v2405, %v2920
    %v3045 = vadd.f32 %v2406, %v2922
    %v3046 = vadd.f32 %v2407, %v2924
    %v3047 = vadd.f32 %v2408, %v2926
    %v3048 = vadd.f32 %v2409, %v2930
    %v3049 = vadd.f32 %v2410, %v2932
    %v3050 = vadd.f32 %v2411, %v2934
    %v3051 = vadd.f32 %v2412, %v2936
    %v3052 = vadd.f32 %v2413, %v2940
    %v3053 = vadd.f32 %v2414, %v2942
    %v3054 = vadd.f32 %v2415, %v2944
    %v3055 = vadd.f32 %v2416, %v2946
    %v3056 = vadd.f32 %v2417, %v2950
    %v3057 = vadd.f32 %v2418, %v2952
    %v3058 = vadd.f32 %v2419, %v2954
    %v3059 = vadd.f32 %v2420, %v2956
    %v3060 = vadd.f32 %v2421, %v2960
    %v3061 = vadd.f32 %v2422, %v2962
    %v3062 = vadd.f32 %v2423, %v2964
    %v3063 = vadd.f32 %v2424, %v2966
    %v3064 = vmax.f32 %v2968, %v2972
    %v3065 = vmax.f32 %v2969, %v2973
    %v3066 = vmax.f32 %v2970, %v2974
    %v3067 = vmax.f32 %v2971, %v2975
    %v3068 = vmax.f32 %v2976, %v2980
    %v3069 = vmax.f32 %v2977, %v2981
    %v3070 = vmax.f32 %v2978, %v2982
    %v3071 = vmax.f32 %v2979, %v2983
    %v3072 = vmax.f32 %v2984, %v2988
    %v3073 = vmax.f32 %v2985, %v2989
    %v3074 = vmax.f32 %v2986, %v2990
    %v3075 = vmax.f32 %v2987, %v2991
    %v3076 = vmax.f32 %v2992, %v2996
    %v3077 = vmax.f32 %v2993, %v2997
    %v3078 = vmax.f32 %v2994, %v2998
    %v3079 = vmax.f32 %v2995, %v2999
    %v3080 = vmax.f32 %v3000, %v3004
    %v3081 = vmax.f32 %v3001, %v3005
    %v3082 = vmax.f32 %v3002, %v3006
    %v3083 = vmax.f32 %v3003, %v3007
    %v3084 = vmax.f32 %v3008, %v3012
    %v3085 = vmax.f32 %v3009, %v3013
    %v3086 = vmax.f32 %v3010, %v3014
    %v3087 = vmax.f32 %v3011, %v3015
    %v3088 = vmax.f32 %v3016, %v3020
    %v3089 = vmax.f32 %v3017, %v3021
    %v3090 = vmax.f32 %v3018, %v3022
    %v3091 = vmax.f32 %v3019, %v3023
    %v3092 = vmax.f32 %v3024, %v3028
    %v3093 = vmax.f32 %v3025, %v3029
    %v3094 = vmax.f32 %v3026, %v3030
    %v3095 = vmax.f32 %v3027, %v3031
    %v3096 = vmax.f32 %v3032, %v3036
    %v3097 = vmax.f32 %v3033, %v3037
    %v3098 = vmax.f32 %v3034, %v3038
    %v3099 = vmax.f32 %v3035, %v3039
    %v3100 = vmax.f32 %v3040, %v3044
    %v3101 = vmax.f32 %v3041, %v3045
    %v3102 = vmax.f32 %v3042, %v3046
    %v3103 = vmax.f32 %v3043, %v3047
    %v3104 = vmax.f32 %v3048, %v3052
    %v3105 = vmax.f32 %v3049, %v3053
    %v3106 = vmax.f32 %v3050, %v3054
    %v3107 = vmax.f32 %v3051, %v3055
    %v3108 = vmax.f32 %v3056, %v3060
    %v3109 = vmax.f32 %v3057, %v3061
    %v3110 = vmax.f32 %v3058, %v3062
    %v3111 = vmax.f32 %v3059, %v3063
    %v3112 = vmax.f32 %v3064, %v3065
    %v3113 = vmax.f32 %v3066, %v3067
    %v3114 = vmax.f32 %v3068, %v3069
    %v3115 = vmax.f32 %v3070, %v3071
    %v3116 = vmax.f32 %v3072, %v3073
    %v3117 = vmax.f32 %v3074, %v3075
    %v3118 = vmax.f32 %v3076, %v3077
    %v3119 = vmax.f32 %v3078, %v3079
    %v3120 = vmax.f32 %v3080, %v3081
    %v3121 = vmax.f32 %v3082, %v3083
    %v3122 = vmax.f32 %v3084, %v3085
    %v3123 = vmax.f32 %v3086, %v3087
    %v3124 = vmax.f32 %v3088, %v3089
    %v3125 = vmax.f32 %v3090, %v3091
    %v3126 = vmax.f32 %v3092, %v3093
    %v3127 = vmax.f32 %v3094, %v3095
    %v3128 = vmax.f32 %v3096, %v3097
    %v3129 = vmax.f32 %v3098, %v3099
    %v3130 = vmax.f32 %v3100, %v3101
    %v3131 = vmax.f32 %v3102, %v3103
    %v3132 = vmax.f32 %v3104, %v3105
    %v3133 = vmax.f32 %v3106, %v3107
    %v3134 = vmax.f32 %v3108, %v3109
    %v3135 = vmax.f32 %v3110, %v3111
    %v3136 = vld [vmem:[%s2] sm:$0x1]
    %v3138 = vlaneseq
    %v3139 = vshrl.u32 %v3138, 7
    %v3140 = vsub.s32 0, %v3139
    %v3141 = vrot.slane %v3136, %v3140
    %v3143 = vadd.f32 %v3112, %v3141
    %v3144 = vadd.f32 %v3113, %v3141
    %v3145 = vadd.f32 %v3114, %v3141
    %v3146 = vadd.f32 %v3115, %v3141
    %v3147 = vadd.f32 %v3116, %v3141
    %v3148 = vadd.f32 %v3117, %v3141
    %v3149 = vadd.f32 %v3118, %v3141
    %v3150 = vadd.f32 %v3119, %v3141
    %v3151 = vadd.f32 %v3120, %v3141
    %v3152 = vadd.f32 %v3121, %v3141
    %v3153 = vadd.f32 %v3122, %v3141
    %v3154 = vadd.f32 %v3123, %v3141
    %v3155 = vadd.f32 %v3124, %v3141
    %v3156 = vadd.f32 %v3125, %v3141
    %v3157 = vadd.f32 %v3126, %v3141
    %v3158 = vadd.f32 %v3127, %v3141
    %v3159 = vadd.f32 %v3128, %v3141
    %v3160 = vadd.f32 %v3129, %v3141
    %v3161 = vadd.f32 %v3130, %v3141
    %v3162 = vadd.f32 %v3131, %v3141
    %v3163 = vadd.f32 %v3132, %v3141
    %v3164 = vadd.f32 %v3133, %v3141
    %v3165 = vadd.f32 %v3134, %v3141
    %v3166 = vadd.f32 %v3135, %v3141
    %v3167 = vmax.f32 %v3143, 0.0
    %v3168 = vmax.f32 %v3144, 0.0
    %v3169 = vmax.f32 %v3145, 0.0
    %v3170 = vmax.f32 %v3146, 0.0
    %v3171 = vmax.f32 %v3147, 0.0
    %v3172 = vmax.f32 %v3148, 0.0
    %v3173 = vmax.f32 %v3149, 0.0
    %v3174 = vmax.f32 %v3150, 0.0
    %v3175 = vmax.f32 %v3151, 0.0
    %v3176 = vmax.f32 %v3152, 0.0
    %v3177 = vmax.f32 %v3153, 0.0
    %v3178 = vmax.f32 %v3154, 0.0
    %v3179 = vmax.f32 %v3155, 0.0
    %v3180 = vmax.f32 %v3156, 0.0
    %v3181 = vmax.f32 %v3157, 0.0
    %v3182 = vmax.f32 %v3158, 0.0
    %v3183 = vmax.f32 %v3159, 0.0
    %v3184 = vmax.f32 %v3160, 0.0
    %v3185 = vmax.f32 %v3161, 0.0
    %v3186 = vmax.f32 %v3162, 0.0
    %v3187 = vmax.f32 %v3163, 0.0
    %v3188 = vmax.f32 %v3164, 0.0
    %v3189 = vmax.f32 %v3165, 0.0
    %v3190 = vmax.f32 %v3166, 0.0
    %v3191 = vpack.c.bf16 %v3168, %v3167
    %v3192 = vpack.c.bf16 %v3170, %v3169
    %v3193 = vpack.c.bf16 %v3172, %v3171
    %v3194 = vpack.c.bf16 %v3174, %v3173
    %v3195 = vpack.c.bf16 %v3176, %v3175
    %v3196 = vpack.c.bf16 %v3178, %v3177
    %v3197 = vpack.c.bf16 %v3180, %v3179
    %v3198 = vpack.c.bf16 %v3182, %v3181
    %v3199 = vpack.c.bf16 %v3184, %v3183
    %v3200 = vpack.c.bf16 %v3186, %v3185
    %v3201 = vpack.c.bf16 %v3188, %v3187
    %v3202 = vpack.c.bf16 %v3190, %v3189
    %v3203 = vld [vmem:[#allocation4] sm:$0xff]
    %v3204 = vld [vmem:[#allocation4 + $0x8] sm:$0xff]
    %v3205 = vld [vmem:[#allocation4 + $0x10] sm:$0xff]
    %v3206 = vld [vmem:[#allocation4 + $0x18] sm:$0xff]
    %v3207 = vld [vmem:[#allocation4 + $0x20] sm:$0xff]
    %v3208 = vld [vmem:[#allocation4 + $0x28] sm:$0xff]
    %v3209 = vld [vmem:[#allocation4 + $0x30] sm:$0xff]
    %v3210 = vld [vmem:[#allocation4 + $0x38] sm:$0xff]
    %v3211 = vld [vmem:[#allocation4 + $0x40] sm:$0xff]
    %v3212 = vld [vmem:[#allocation4 + $0x48] sm:$0xff]
    %v3213 = vld [vmem:[#allocation4 + $0x50] sm:$0xff]
    %v3214 = vld [vmem:[#allocation4 + $0x58] sm:$0xff]
    %v3215 = vld [vmem:[#allocation4 + $0x60] sm:$0xff]
    %v3216 = vld [vmem:[#allocation4 + $0x68] sm:$0xff]
    %v3217 = vld [vmem:[#allocation4 + $0x70] sm:$0xff]
    %v3218 = vld [vmem:[#allocation4 + $0x78] sm:$0xff]
    %s3219 = scalar_lea.vmem [#allocation4], 128
    %v3220 = vld [vmem:[%s3219] sm:$0xff]
    %v3221 = vld [vmem:[%s3219 + $0x8] sm:$0xff]
    %v3222 = vld [vmem:[%s3219 + $0x10] sm:$0xff]
    %v3223 = vld [vmem:[%s3219 + $0x18] sm:$0xff]
    %v3224 = vld [vmem:[%s3219 + $0x20] sm:$0xff]
    %v3225 = vld [vmem:[%s3219 + $0x28] sm:$0xff]
    %v3226 = vld [vmem:[%s3219 + $0x30] sm:$0xff]
    %v3227 = vld [vmem:[%s3219 + $0x38] sm:$0xff]
    %v3228 = vld [vmem:[%s3219 + $0x40] sm:$0xff]
    %v3229 = vld [vmem:[%s3219 + $0x48] sm:$0xff]
    %v3230 = vld [vmem:[%s3219 + $0x50] sm:$0xff]
    %v3231 = vld [vmem:[%s3219 + $0x58] sm:$0xff]
    %v3232 = vld [vmem:[%s3219 + $0x60] sm:$0xff]
    %v3233 = vld [vmem:[%s3219 + $0x68] sm:$0xff]
    %v3234 = vld [vmem:[%s3219 + $0x70] sm:$0xff]
    %v3235 = vld [vmem:[%s3219 + $0x78] sm:$0xff]
    %v3252 = vunpack.c.l.b16 %v3220
    %v3253 = vunpack.c.h.b16 %v3220
    %v3254 = vunpack.c.l.b16 %v3221
    %v3255 = vunpack.c.h.b16 %v3221
    %v3256 = vunpack.c.l.b16 %v3222
    %v3257 = vunpack.c.h.b16 %v3222
    %v3258 = vunpack.c.l.b16 %v3223
    %v3259 = vunpack.c.h.b16 %v3223
    %v3260 = vunpack.c.l.b16 %v3224
    %v3261 = vunpack.c.h.b16 %v3224
    %v3262 = vunpack.c.l.b16 %v3225
    %v3263 = vunpack.c.h.b16 %v3225
    %v3264 = vunpack.c.l.b16 %v3226
    %v3265 = vunpack.c.h.b16 %v3226
    %v3266 = vunpack.c.l.b16 %v3227
    %v3267 = vunpack.c.h.b16 %v3227
    %v3268 = vunpack.c.l.b16 %v3228
    %v3269 = vunpack.c.h.b16 %v3228
    %v3270 = vunpack.c.l.b16 %v3229
    %v3271 = vunpack.c.h.b16 %v3229
    %v3272 = vunpack.c.l.b16 %v3230
    %v3273 = vunpack.c.h.b16 %v3230
    %v3274 = vunpack.c.l.b16 %v3231
    %v3275 = vunpack.c.h.b16 %v3231
    %v3276 = vunpack.c.l.b16 %v3232
    %v3277 = vunpack.c.h.b16 %v3232
    %v3278 = vunpack.c.l.b16 %v3233
    %v3279 = vunpack.c.h.b16 %v3233
    %v3280 = vunpack.c.l.b16 %v3234
    %v3281 = vunpack.c.h.b16 %v3234
    %v3282 = vunpack.c.l.b16 %v3235
    %v3283 = vunpack.c.h.b16 %v3235
    %v3284 = vpack.c.b16 %v3254, %v3252
    %v3285 = vpack.c.b16 %v3255, %v3253
    %v3286 = vpack.c.b16 %v3258, %v3256
    %v3287 = vpack.c.b16 %v3259, %v3257
    %v3288 = vpack.c.b16 %v3262, %v3260
    %v3289 = vpack.c.b16 %v3263, %v3261
    %v3290 = vpack.c.b16 %v3266, %v3264
    %v3291 = vpack.c.b16 %v3267, %v3265
    %v3292 = vpack.c.b16 %v3270, %v3268
    %v3293 = vpack.c.b16 %v3271, %v3269
    %v3294 = vpack.c.b16 %v3274, %v3272
    %v3295 = vpack.c.b16 %v3275, %v3273
    %v3296 = vpack.c.b16 %v3278, %v3276
    %v3297 = vpack.c.b16 %v3279, %v3277
    %v3298 = vpack.c.b16 %v3282, %v3280
    %v3299 = vpack.c.b16 %v3283, %v3281
    %3316 = vmatprep.subr.bf16.mxu0 %v3285
    %3317 = vmatpush1.bf16.msra.mxu0 %v3284
    %3318 = vmatprep.subr.bf16.mxu0 %v3287
    %3319 = vmatpush1.bf16.msra.mxu0 %v3286
    %3320 = vmatprep.subr.bf16.mxu0 %v3289
    %3321 = vmatpush1.bf16.msra.mxu0 %v3288
    %3322 = vmatprep.subr.bf16.mxu0 %v3291
    %3323 = vmatpush1.bf16.msra.mxu0 %v3290
    %3324 = vmatprep.subr.bf16.mxu0 %v3293
    %3325 = vmatpush1.bf16.msra.mxu0 %v3292
    %3326 = vmatprep.subr.bf16.mxu0 %v3295
    %3327 = vmatpush1.bf16.msra.mxu0 %v3294
    %3328 = vmatprep.subr.bf16.mxu0 %v3297
    %3329 = vmatpush1.bf16.msra.mxu0 %v3296
    %3330 = vmatprep.subr.bf16.mxu0 %v3299
    %3331 = vmatpush1.bf16.msra.mxu0 %v3298
    %3332 = vmatprep.subr.bf16.mxu0 0
    %3333 = vmatpush1.bf16.msra.mxu0 0
    %3334 = vmatprep.subr.bf16.mxu0 0
    %3335 = vmatpush1.bf16.msra.mxu0 0
    %3336 = vmatprep.subr.bf16.mxu0 0
    %3337 = vmatpush1.bf16.msra.mxu0 0
    %3338 = vmatprep.subr.bf16.mxu0 0
    %3339 = vmatpush1.bf16.msra.mxu0 0
    %3340 = vmatprep.subr.bf16.mxu0 0
    %3341 = vmatpush1.bf16.msra.mxu0 0
    %3342 = vmatprep.subr.bf16.mxu0 0
    %3343 = vmatpush1.bf16.msra.mxu0 0
    %3344 = vmatprep.subr.bf16.mxu0 0
    %3345 = vmatpush1.bf16.msra.mxu0 0
    %3346 = vmatprep.subr.bf16.mxu0 0
    %3347 = vmatpush1.bf16.msra.mxu0 0
    %3348 = vmatprep.mubr.bf16.mxu0 0
    %3349 = vmatmul.mubr.bf16.gmra.mrb[0].mxu0 %v3192
    %v3350 = vpop.f32.mrb[0].mxu0
    %v3351 = vadd.f32 0.0, %v3350
    %v3352 = vpop.f32.mrb[0].mxu0
    %v3353 = vadd.f32 0.0, %v3352
    %v3354 = vpop.f32.mrb[0].mxu0
    %v3355 = vadd.f32 0.0, %v3354
    %v3356 = vpop.f32.mrb[0].mxu0
    %v3357 = vadd.f32 0.0, %v3356
    %3358 = vmatprep.mubr.bf16.mxu0 0
    %3359 = vmatmul.mubr.bf16.gmra.mrb[0].mxu0 %v3193
    %v3360 = vpop.f32.mrb[0].mxu0
    %v3361 = vadd.f32 0.0, %v3360
    %v3362 = vpop.f32.mrb[0].mxu0
    %v3363 = vadd.f32 0.0, %v3362
    %v3364 = vpop.f32.mrb[0].mxu0
    %v3365 = vadd.f32 0.0, %v3364
    %v3366 = vpop.f32.mrb[0].mxu0
    %v3367 = vadd.f32 0.0, %v3366
    %3368 = vmatprep.mubr.bf16.mxu0 0
    %3369 = vmatmul.mubr.bf16.gmra.mrb[0].mxu0 %v3194
    %v3370 = vpop.f32.mrb[0].mxu0
    %v3371 = vadd.f32 0.0, %v3370
    %v3372 = vpop.f32.mrb[0].mxu0
    %v3373 = vadd.f32 0.0, %v3372
    %v3374 = vpop.f32.mrb[0].mxu0
    %v3375 = vadd.f32 0.0, %v3374
    %v3376 = vpop.f32.mrb[0].mxu0
    %v3377 = vadd.f32 0.0, %v3376
    %3378 = vmatprep.mubr.bf16.mxu0 0
    %3379 = vmatmul.mubr.bf16.gmra.mrb[0].mxu0 %v3195
    %v3380 = vpop.f32.mrb[0].mxu0
    %v3381 = vadd.f32 0.0, %v3380
    %v3382 = vpop.f32.mrb[0].mxu0
    %v3383 = vadd.f32 0.0, %v3382
    %v3384 = vpop.f32.mrb[0].mxu0
    %v3385 = vadd.f32 0.0, %v3384
    %v3386 = vpop.f32.mrb[0].mxu0
    %v3387 = vadd.f32 0.0, %v3386
    %3388 = vmatprep.mubr.bf16.mxu0 0
    %3389 = vmatmul.mubr.bf16.gmra.mrb[0].mxu0 %v3196
    %v3390 = vpop.f32.mrb[0].mxu0
    %v3391 = vadd.f32 0.0, %v3390
    %v3392 = vpop.f32.mrb[0].mxu0
    %v3393 = vadd.f32 0.0, %v3392
    %v3394 = vpop.f32.mrb[0].mxu0
    %v3395 = vadd.f32 0.0, %v3394
    %v3396 = vpop.f32.mrb[0].mxu0
    %v3397 = vadd.f32 0.0, %v3396
    %3398 = vmatprep.mubr.bf16.mxu0 0
    %3399 = vmatmul.mubr.bf16.gmra.mrb[0].mxu0 %v3197
    %v3400 = vpop.f32.mrb[0].mxu0
    %v3401 = vadd.f32 0.0, %v3400
    %v3402 = vpop.f32.mrb[0].mxu0
    %v3403 = vadd.f32 0.0, %v3402
    %v3404 = vpop.f32.mrb[0].mxu0
    %v3405 = vadd.f32 0.0, %v3404
    %v3406 = vpop.f32.mrb[0].mxu0
    %v3407 = vadd.f32 0.0, %v3406
    %3408 = vmatprep.mubr.bf16.mxu0 0
    %3409 = vmatmul.mubr.bf16.gmra.mrb[0].mxu0 %v3198
    %v3410 = vpop.f32.mrb[0].mxu0
    %v3411 = vadd.f32 0.0, %v3410
    %v3412 = vpop.f32.mrb[0].mxu0
    %v3413 = vadd.f32 0.0, %v3412
    %v3414 = vpop.f32.mrb[0].mxu0
    %v3415 = vadd.f32 0.0, %v3414
    %v3416 = vpop.f32.mrb[0].mxu0
    %v3417 = vadd.f32 0.0, %v3416
    %3418 = vmatprep.mubr.bf16.mxu0 0
    %3419 = vmatmul.mubr.bf16.gmra.mrb[0].mxu0 %v3199
    %v3420 = vpop.f32.mrb[0].mxu0
    %v3421 = vadd.f32 0.0, %v3420
    %v3422 = vpop.f32.mrb[0].mxu0
    %v3423 = vadd.f32 0.0, %v3422
    %v3424 = vpop.f32.mrb[0].mxu0
    %v3425 = vadd.f32 0.0, %v3424
    %v3426 = vpop.f32.mrb[0].mxu0
    %v3427 = vadd.f32 0.0, %v3426
    %3428 = vdwg.mxu0
    %v3445 = vunpack.c.l.b16 %v3203
    %v3446 = vunpack.c.h.b16 %v3203
    %v3447 = vunpack.c.l.b16 %v3204
    %v3448 = vunpack.c.h.b16 %v3204
    %v3449 = vunpack.c.l.b16 %v3205
    %v3450 = vunpack.c.h.b16 %v3205
    %v3451 = vunpack.c.l.b16 %v3206
    %v3452 = vunpack.c.h.b16 %v3206
    %v3453 = vunpack.c.l.b16 %v3207
    %v3454 = vunpack.c.h.b16 %v3207
    %v3455 = vunpack.c.l.b16 %v3208
    %v3456 = vunpack.c.h.b16 %v3208
    %v3457 = vunpack.c.l.b16 %v3209
    %v3458 = vunpack.c.h.b16 %v3209
    %v3459 = vunpack.c.l.b16 %v3210
    %v3460 = vunpack.c.h.b16 %v3210
    %v3461 = vunpack.c.l.b16 %v3211
    %v3462 = vunpack.c.h.b16 %v3211
    %v3463 = vunpack.c.l.b16 %v3212
    %v3464 = vunpack.c.h.b16 %v3212
    %v3465 = vunpack.c.l.b16 %v3213
    %v3466 = vunpack.c.h.b16 %v3213
    %v3467 = vunpack.c.l.b16 %v3214
    %v3468 = vunpack.c.h.b16 %v3214
    %v3469 = vunpack.c.l.b16 %v3215
    %v3470 = vunpack.c.h.b16 %v3215
    %v3471 = vunpack.c.l.b16 %v3216
    %v3472 = vunpack.c.h.b16 %v3216
    %v3473 = vunpack.c.l.b16 %v3217
    %v3474 = vunpack.c.h.b16 %v3217
    %v3475 = vunpack.c.l.b16 %v3218
    %v3476 = vunpack.c.h.b16 %v3218
    %v3477 = vpack.c.b16 %v3447, %v3445
    %v3478 = vpack.c.b16 %v3448, %v3446
    %v3479 = vpack.c.b16 %v3451, %v3449
    %v3480 = vpack.c.b16 %v3452, %v3450
    %v3481 = vpack.c.b16 %v3455, %v3453
    %v3482 = vpack.c.b16 %v3456, %v3454
    %v3483 = vpack.c.b16 %v3459, %v3457
    %v3484 = vpack.c.b16 %v3460, %v3458
    %v3485 = vpack.c.b16 %v3463, %v3461
    %v3486 = vpack.c.b16 %v3464, %v3462
    %v3487 = vpack.c.b16 %v3467, %v3465
    %v3488 = vpack.c.b16 %v3468, %v3466
    %v3489 = vpack.c.b16 %v3471, %v3469
    %v3490 = vpack.c.b16 %v3472, %v3470
    %v3491 = vpack.c.b16 %v3475, %v3473
    %v3492 = vpack.c.b16 %v3476, %v3474
    %3509 = vmatprep.subr.bf16.mxu0 %v3478
    %3510 = vmatpush1.bf16.msra.mxu0 %v3477
    %3511 = vmatprep.subr.bf16.mxu0 %v3480
    %3512 = vmatpush1.bf16.msra.mxu0 %v3479
    %3513 = vmatprep.subr.bf16.mxu0 %v3482
    %3514 = vmatpush1.bf16.msra.mxu0 %v3481
    %3515 = vmatprep.subr.bf16.mxu0 %v3484
    %3516 = vmatpush1.bf16.msra.mxu0 %v3483
    %3517 = vmatprep.subr.bf16.mxu0 %v3486
    %3518 = vmatpush1.bf16.msra.mxu0 %v3485
    %3519 = vmatprep.subr.bf16.mxu0 %v3488
    %3520 = vmatpush1.bf16.msra.mxu0 %v3487
    %3521 = vmatprep.subr.bf16.mxu0 %v3490
    %3522 = vmatpush1.bf16.msra.mxu0 %v3489
    %3523 = vmatprep.subr.bf16.mxu0 %v3492
    %3524 = vmatpush1.bf16.msra.mxu0 %v3491
    %3525 = vmatprep.subr.bf16.mxu0 0
    %3526 = vmatpush1.bf16.msra.mxu0 0
    %3527 = vmatprep.subr.bf16.mxu0 0
    %3528 = vmatpush1.bf16.msra.mxu0 0
    %3529 = vmatprep.subr.bf16.mxu0 0
    %3530 = vmatpush1.bf16.msra.mxu0 0
    %3531 = vmatprep.subr.bf16.mxu0 0
    %3532 = vmatpush1.bf16.msra.mxu0 0
    %3533 = vmatprep.subr.bf16.mxu0 0
    %3534 = vmatpush1.bf16.msra.mxu0 0
    %3535 = vmatprep.subr.bf16.mxu0 0
    %3536 = vmatpush1.bf16.msra.mxu0 0
    %3537 = vmatprep.subr.bf16.mxu0 0
    %3538 = vmatpush1.bf16.msra.mxu0 0
    %3539 = vmatprep.subr.bf16.mxu0 0
    %3540 = vmatpush1.bf16.msra.mxu0 0
    %3541 = vmatprep.mubr.bf16.mxu0 0
    %3542 = vmatmul.mubr.bf16.gmra.mrb[0].mxu0 %v3191
    %v3543 = vpop.f32.mrb[0].mxu0
    %v3544 = vadd.f32 %v3351, %v3543
    %v3545 = vpop.f32.mrb[0].mxu0
    %v3546 = vadd.f32 %v3353, %v3545
    %v3547 = vpop.f32.mrb[0].mxu0
    %v3548 = vadd.f32 %v3355, %v3547
    %v3549 = vpop.f32.mrb[0].mxu0
    %v3550 = vadd.f32 %v3357, %v3549
    %3551 = vmatprep.mubr.bf16.mxu0 0
    %3552 = vmatmul.mubr.bf16.gmra.mrb[0].mxu0 %v3192
    %v3553 = vpop.f32.mrb[0].mxu0
    %v3554 = vadd.f32 %v3361, %v3553
    %v3555 = vpop.f32.mrb[0].mxu0
    %v3556 = vadd.f32 %v3363, %v3555
    %v3557 = vpop.f32.mrb[0].mxu0
    %v3558 = vadd.f32 %v3365, %v3557
    %v3559 = vpop.f32.mrb[0].mxu0
    %v3560 = vadd.f32 %v3367, %v3559
    %3561 = vmatprep.mubr.bf16.mxu0 0
    %3562 = vmatmul.mubr.bf16.gmra.mrb[0].mxu0 %v3193
    %v3563 = vpop.f32.mrb[0].mxu0
    %v3564 = vadd.f32 %v3371, %v3563
    %v3565 = vpop.f32.mrb[0].mxu0
    %v3566 = vadd.f32 %v3373, %v3565
    %v3567 = vpop.f32.mrb[0].mxu0
    %v3568 = vadd.f32 %v3375, %v3567
    %v3569 = vpop.f32.mrb[0].mxu0
    %v3570 = vadd.f32 %v3377, %v3569
    %3571 = vmatprep.mubr.bf16.mxu0 0
    %3572 = vmatmul.mubr.bf16.gmra.mrb[0].mxu0 %v3194
    %v3573 = vpop.f32.mrb[0].mxu0
    %v3574 = vadd.f32 %v3381, %v3573
    %v3575 = vpop.f32.mrb[0].mxu0
    %v3576 = vadd.f32 %v3383, %v3575
    %v3577 = vpop.f32.mrb[0].mxu0
    %v3578 = vadd.f32 %v3385, %v3577
    %v3579 = vpop.f32.mrb[0].mxu0
    %v3580 = vadd.f32 %v3387, %v3579
    %3581 = vmatprep.mubr.bf16.mxu0 0
    %3582 = vmatmul.mubr.bf16.gmra.mrb[0].mxu0 %v3195
    %v3583 = vpop.f32.mrb[0].mxu0
    %v3584 = vadd.f32 %v3391, %v3583
    %v3585 = vpop.f32.mrb[0].mxu0
    %v3586 = vadd.f32 %v3393, %v3585
    %v3587 = vpop.f32.mrb[0].mxu0
    %v3588 = vadd.f32 %v3395, %v3587
    %v3589 = vpop.f32.mrb[0].mxu0
    %v3590 = vadd.f32 %v3397, %v3589
    %3591 = vmatprep.mubr.bf16.mxu0 0
    %3592 = vmatmul.mubr.bf16.gmra.mrb[0].mxu0 %v3196
    %v3593 = vpop.f32.mrb[0].mxu0
    %v3594 = vadd.f32 %v3401, %v3593
    %v3595 = vpop.f32.mrb[0].mxu0
    %v3596 = vadd.f32 %v3403, %v3595
    %v3597 = vpop.f32.mrb[0].mxu0
    %v3598 = vadd.f32 %v3405, %v3597
    %v3599 = vpop.f32.mrb[0].mxu0
    %v3600 = vadd.f32 %v3407, %v3599
    %3601 = vmatprep.mubr.bf16.mxu0 0
    %3602 = vmatmul.mubr.bf16.gmra.mrb[0].mxu0 %v3197
    %v3603 = vpop.f32.mrb[0].mxu0
    %v3604 = vadd.f32 %v3411, %v3603
    %v3605 = vpop.f32.mrb[0].mxu0
    %v3606 = vadd.f32 %v3413, %v3605
    %v3607 = vpop.f32.mrb[0].mxu0
    %v3608 = vadd.f32 %v3415, %v3607
    %v3609 = vpop.f32.mrb[0].mxu0
    %v3610 = vadd.f32 %v3417, %v3609
    %3611 = vmatprep.mubr.bf16.mxu0 0
    %3612 = vmatmul.mubr.bf16.gmra.mrb[0].mxu0 %v3198
    %v3613 = vpop.f32.mrb[0].mxu0
    %v3614 = vadd.f32 %v3421, %v3613
    %v3615 = vpop.f32.mrb[0].mxu0
    %v3616 = vadd.f32 %v3423, %v3615
    %v3617 = vpop.f32.mrb[0].mxu0
    %v3618 = vadd.f32 %v3425, %v3617
    %v3619 = vpop.f32.mrb[0].mxu0
    %v3620 = vadd.f32 %v3427, %v3619
    %3621 = vdwg.mxu0
    %s3622 = scalar_lea.vmem [#allocation4], 256
    %v3623 = vld [vmem:[%s3622] sm:$0xff]
    %v3624 = vld [vmem:[%s3622 + $0x8] sm:$0xff]
    %v3625 = vld [vmem:[%s3622 + $0x10] sm:$0xff]
    %v3626 = vld [vmem:[%s3622 + $0x18] sm:$0xff]
    %v3627 = vld [vmem:[%s3622 + $0x20] sm:$0xff]
    %v3628 = vld [vmem:[%s3622 + $0x28] sm:$0xff]
    %v3629 = vld [vmem:[%s3622 + $0x30] sm:$0xff]
    %v3630 = vld [vmem:[%s3622 + $0x38] sm:$0xff]
    %v3631 = vld [vmem:[%s3622 + $0x40] sm:$0xff]
    %v3632 = vld [vmem:[%s3622 + $0x48] sm:$0xff]
    %v3633 = vld [vmem:[%s3622 + $0x50] sm:$0xff]
    %v3634 = vld [vmem:[%s3622 + $0x58] sm:$0xff]
    %v3635 = vld [vmem:[%s3622 + $0x60] sm:$0xff]
    %v3636 = vld [vmem:[%s3622 + $0x68] sm:$0xff]
    %v3637 = vld [vmem:[%s3622 + $0x70] sm:$0xff]
    %v3638 = vld [vmem:[%s3622 + $0x78] sm:$0xff]
    %v3655 = vunpack.c.l.b16 %v3623
    %v3656 = vunpack.c.h.b16 %v3623
    %v3657 = vunpack.c.l.b16 %v3624
    %v3658 = vunpack.c.h.b16 %v3624
    %v3659 = vunpack.c.l.b16 %v3625
    %v3660 = vunpack.c.h.b16 %v3625
    %v3661 = vunpack.c.l.b16 %v3626
    %v3662 = vunpack.c.h.b16 %v3626
    %v3663 = vunpack.c.l.b16 %v3627
    %v3664 = vunpack.c.h.b16 %v3627
    %v3665 = vunpack.c.l.b16 %v3628
    %v3666 = vunpack.c.h.b16 %v3628
    %v3667 = vunpack.c.l.b16 %v3629
    %v3668 = vunpack.c.h.b16 %v3629
    %v3669 = vunpack.c.l.b16 %v3630
    %v3670 = vunpack.c.h.b16 %v3630
    %v3671 = vunpack.c.l.b16 %v3631
    %v3672 = vunpack.c.h.b16 %v3631
    %v3673 = vunpack.c.l.b16 %v3632
    %v3674 = vunpack.c.h.b16 %v3632
    %v3675 = vunpack.c.l.b16 %v3633
    %v3676 = vunpack.c.h.b16 %v3633
    %v3677 = vunpack.c.l.b16 %v3634
    %v3678 = vunpack.c.h.b16 %v3634
    %v3679 = vunpack.c.l.b16 %v3635
    %v3680 = vunpack.c.h.b16 %v3635
    %v3681 = vunpack.c.l.b16 %v3636
    %v3682 = vunpack.c.h.b16 %v3636
    %v3683 = vunpack.c.l.b16 %v3637
    %v3684 = vunpack.c.h.b16 %v3637
    %v3685 = vunpack.c.l.b16 %v3638
    %v3686 = vunpack.c.h.b16 %v3638
    %v3687 = vpack.c.b16 %v3657, %v3655
    %v3688 = vpack.c.b16 %v3658, %v3656
    %v3689 = vpack.c.b16 %v3661, %v3659
    %v3690 = vpack.c.b16 %v3662, %v3660
    %v3691 = vpack.c.b16 %v3665, %v3663
    %v3692 = vpack.c.b16 %v3666, %v3664
    %v3693 = vpack.c.b16 %v3669, %v3667
    %v3694 = vpack.c.b16 %v3670, %v3668
    %v3695 = vpack.c.b16 %v3673, %v3671
    %v3696 = vpack.c.b16 %v3674, %v3672
    %v3697 = vpack.c.b16 %v3677, %v3675
    %v3698 = vpack.c.b16 %v3678, %v3676
    %v3699 = vpack.c.b16 %v3681, %v3679
    %v3700 = vpack.c.b16 %v3682, %v3680
    %v3701 = vpack.c.b16 %v3685, %v3683
    %v3702 = vpack.c.b16 %v3686, %v3684
    %3719 = vmatprep.subr.bf16.mxu0 %v3688
    %3720 = vmatpush1.bf16.msra.mxu0 %v3687
    %3721 = vmatprep.subr.bf16.mxu0 %v3690
    %3722 = vmatpush1.bf16.msra.mxu0 %v3689
    %3723 = vmatprep.subr.bf16.mxu0 %v3692
    %3724 = vmatpush1.bf16.msra.mxu0 %v3691
    %3725 = vmatprep.subr.bf16.mxu0 %v3694
    %3726 = vmatpush1.bf16.msra.mxu0 %v3693
    %3727 = vmatprep.subr.bf16.mxu0 %v3696
    %3728 = vmatpush1.bf16.msra.mxu0 %v3695
    %3729 = vmatprep.subr.bf16.mxu0 %v3698
    %3730 = vmatpush1.bf16.msra.mxu0 %v3697
    %3731 = vmatprep.subr.bf16.mxu0 %v3700
    %3732 = vmatpush1.bf16.msra.mxu0 %v3699
    %3733 = vmatprep.subr.bf16.mxu0 %v3702
    %3734 = vmatpush1.bf16.msra.mxu0 %v3701
    %3735 = vmatprep.subr.bf16.mxu0 0
    %3736 = vmatpush1.bf16.msra.mxu0 0
    %3737 = vmatprep.subr.bf16.mxu0 0
    %3738 = vmatpush1.bf16.msra.mxu0 0
    %3739 = vmatprep.subr.bf16.mxu0 0
    %3740 = vmatpush1.bf16.msra.mxu0 0
    %3741 = vmatprep.subr.bf16.mxu0 0
    %3742 = vmatpush1.bf16.msra.mxu0 0
    %3743 = vmatprep.subr.bf16.mxu0 0
    %3744 = vmatpush1.bf16.msra.mxu0 0
    %3745 = vmatprep.subr.bf16.mxu0 0
    %3746 = vmatpush1.bf16.msra.mxu0 0
    %3747 = vmatprep.subr.bf16.mxu0 0
    %3748 = vmatpush1.bf16.msra.mxu0 0
    %3749 = vmatprep.subr.bf16.mxu0 0
    %3750 = vmatpush1.bf16.msra.mxu0 0
    %3751 = vmatprep.mubr.bf16.mxu0 0
    %3752 = vmatmul.mubr.bf16.gmra.mrb[0].mxu0 %v3193
    %v3753 = vpop.f32.mrb[0].mxu0
    %v3754 = vadd.f32 0.0, %v3753
    %v3755 = vpop.f32.mrb[0].mxu0
    %v3756 = vadd.f32 0.0, %v3755
    %v3757 = vpop.f32.mrb[0].mxu0
    %v3758 = vadd.f32 0.0, %v3757
    %v3759 = vpop.f32.mrb[0].mxu0
    %v3760 = vadd.f32 0.0, %v3759
    %3761 = vmatprep.mubr.bf16.mxu0 0
    %3762 = vmatmul.mubr.bf16.gmra.mrb[0].mxu0 %v3194
    %v3763 = vpop.f32.mrb[0].mxu0
    %v3764 = vadd.f32 0.0, %v3763
    %v3765 = vpop.f32.mrb[0].mxu0
    %v3766 = vadd.f32 0.0, %v3765
    %v3767 = vpop.f32.mrb[0].mxu0
    %v3768 = vadd.f32 0.0, %v3767
    %v3769 = vpop.f32.mrb[0].mxu0
    %v3770 = vadd.f32 0.0, %v3769
    %3771 = vmatprep.mubr.bf16.mxu0 0
    %3772 = vmatmul.mubr.bf16.gmra.mrb[0].mxu0 %v3195
    %v3773 = vpop.f32.mrb[0].mxu0
    %v3774 = vadd.f32 0.0, %v3773
    %v3775 = vpop.f32.mrb[0].mxu0
    %v3776 = vadd.f32 0.0, %v3775
    %v3777 = vpop.f32.mrb[0].mxu0
    %v3778 = vadd.f32 0.0, %v3777
    %v3779 = vpop.f32.mrb[0].mxu0
    %v3780 = vadd.f32 0.0, %v3779
    %3781 = vmatprep.mubr.bf16.mxu0 0
    %3782 = vmatmul.mubr.bf16.gmra.mrb[0].mxu0 %v3196
    %v3783 = vpop.f32.mrb[0].mxu0
    %v3784 = vadd.f32 0.0, %v3783
    %v3785 = vpop.f32.mrb[0].mxu0
    %v3786 = vadd.f32 0.0, %v3785
    %v3787 = vpop.f32.mrb[0].mxu0
    %v3788 = vadd.f32 0.0, %v3787
    %v3789 = vpop.f32.mrb[0].mxu0
    %v3790 = vadd.f32 0.0, %v3789
    %3791 = vmatprep.mubr.bf16.mxu0 0
    %3792 = vmatmul.mubr.bf16.gmra.mrb[0].mxu0 %v3197
    %v3793 = vpop.f32.mrb[0].mxu0
    %v3794 = vadd.f32 0.0, %v3793
    %v3795 = vpop.f32.mrb[0].mxu0
    %v3796 = vadd.f32 0.0, %v3795
    %v3797 = vpop.f32.mrb[0].mxu0
    %v3798 = vadd.f32 0.0, %v3797
    %v3799 = vpop.f32.mrb[0].mxu0
    %v3800 = vadd.f32 0.0, %v3799
    %3801 = vmatprep.mubr.bf16.mxu0 0
    %3802 = vmatmul.mubr.bf16.gmra.mrb[0].mxu0 %v3198
    %v3803 = vpop.f32.mrb[0].mxu0
    %v3804 = vadd.f32 0.0, %v3803
    %v3805 = vpop.f32.mrb[0].mxu0
    %v3806 = vadd.f32 0.0, %v3805
    %v3807 = vpop.f32.mrb[0].mxu0
    %v3808 = vadd.f32 0.0, %v3807
    %v3809 = vpop.f32.mrb[0].mxu0
    %v3810 = vadd.f32 0.0, %v3809
    %3811 = vmatprep.mubr.bf16.mxu0 0
    %3812 = vmatmul.mubr.bf16.gmra.mrb[0].mxu0 %v3199
    %v3813 = vpop.f32.mrb[0].mxu0
    %v3814 = vadd.f32 0.0, %v3813
    %v3815 = vpop.f32.mrb[0].mxu0
    %v3816 = vadd.f32 0.0, %v3815
    %v3817 = vpop.f32.mrb[0].mxu0
    %v3818 = vadd.f32 0.0, %v3817
    %v3819 = vpop.f32.mrb[0].mxu0
    %v3820 = vadd.f32 0.0, %v3819
    %3821 = vmatprep.mubr.bf16.mxu0 0
    %3822 = vmatmul.mubr.bf16.gmra.mrb[0].mxu0 %v3200
    %v3823 = vpop.f32.mrb[0].mxu0
    %v3824 = vadd.f32 0.0, %v3823
    %v3825 = vpop.f32.mrb[0].mxu0
    %v3826 = vadd.f32 0.0, %v3825
    %v3827 = vpop.f32.mrb[0].mxu0
    %v3828 = vadd.f32 0.0, %v3827
    %v3829 = vpop.f32.mrb[0].mxu0
    %v3830 = vadd.f32 0.0, %v3829
    %3831 = vdwg.mxu0
    %v3832 = vadd.f32 %v3544, %v3754
    %v3833 = vadd.f32 %v3546, %v3756
    %v3834 = vadd.f32 %v3548, %v3758
    %v3835 = vadd.f32 %v3550, %v3760
    %v3836 = vadd.f32 %v3554, %v3764
    %v3837 = vadd.f32 %v3556, %v3766
    %v3838 = vadd.f32 %v3558, %v3768
    %v3839 = vadd.f32 %v3560, %v3770
    %v3840 = vadd.f32 %v3564, %v3774
    %v3841 = vadd.f32 %v3566, %v3776
    %v3842 = vadd.f32 %v3568, %v3778
    %v3843 = vadd.f32 %v3570, %v3780
    %v3844 = vadd.f32 %v3574, %v3784
    %v3845 = vadd.f32 %v3576, %v3786
    %v3846 = vadd.f32 %v3578, %v3788
    %v3847 = vadd.f32 %v3580, %v3790
    %v3848 = vadd.f32 %v3584, %v3794
    %v3849 = vadd.f32 %v3586, %v3796
    %v3850 = vadd.f32 %v3588, %v3798
    %v3851 = vadd.f32 %v3590, %v3800
    %v3852 = vadd.f32 %v3594, %v3804
    %v3853 = vadd.f32 %v3596, %v3806
    %v3854 = vadd.f32 %v3598, %v3808
    %v3855 = vadd.f32 %v3600, %v3810
    %v3856 = vadd.f32 %v3604, %v3814
    %v3857 = vadd.f32 %v3606, %v3816
    %v3858 = vadd.f32 %v3608, %v3818
    %v3859 = vadd.f32 %v3610, %v3820
    %v3860 = vadd.f32 %v3614, %v3824
    %v3861 = vadd.f32 %v3616, %v3826
    %v3862 = vadd.f32 %v3618, %v3828
    %v3863 = vadd.f32 %v3620, %v3830
    %s3864 = scalar_lea.vmem [#allocation4], 384
    %v3865 = vld [vmem:[%s3864] sm:$0xff]
    %v3866 = vld [vmem:[%s3864 + $0x8] sm:$0xff]
    %v3867 = vld [vmem:[%s3864 + $0x10] sm:$0xff]
    %v3868 = vld [vmem:[%s3864 + $0x18] sm:$0xff]
    %v3869 = vld [vmem:[%s3864 + $0x20] sm:$0xff]
    %v3870 = vld [vmem:[%s3864 + $0x28] sm:$0xff]
    %v3871 = vld [vmem:[%s3864 + $0x30] sm:$0xff]
    %v3872 = vld [vmem:[%s3864 + $0x38] sm:$0xff]
    %v3873 = vld [vmem:[%s3864 + $0x40] sm:$0xff]
    %v3874 = vld [vmem:[%s3864 + $0x48] sm:$0xff]
    %v3875 = vld [vmem:[%s3864 + $0x50] sm:$0xff]
    %v3876 = vld [vmem:[%s3864 + $0x58] sm:$0xff]
    %v3877 = vld [vmem:[%s3864 + $0x60] sm:$0xff]
    %v3878 = vld [vmem:[%s3864 + $0x68] sm:$0xff]
    %v3879 = vld [vmem:[%s3864 + $0x70] sm:$0xff]
    %v3880 = vld [vmem:[%s3864 + $0x78] sm:$0xff]
    %v3897 = vunpack.c.l.b16 %v3865
    %v3898 = vunpack.c.h.b16 %v3865
    %v3899 = vunpack.c.l.b16 %v3866
    %v3900 = vunpack.c.h.b16 %v3866
    %v3901 = vunpack.c.l.b16 %v3867
    %v3902 = vunpack.c.h.b16 %v3867
    %v3903 = vunpack.c.l.b16 %v3868
    %v3904 = vunpack.c.h.b16 %v3868
    %v3905 = vunpack.c.l.b16 %v3869
    %v3906 = vunpack.c.h.b16 %v3869
    %v3907 = vunpack.c.l.b16 %v3870
    %v3908 = vunpack.c.h.b16 %v3870
    %v3909 = vunpack.c.l.b16 %v3871
    %v3910 = vunpack.c.h.b16 %v3871
    %v3911 = vunpack.c.l.b16 %v3872
    %v3912 = vunpack.c.h.b16 %v3872
    %v3913 = vunpack.c.l.b16 %v3873
    %v3914 = vunpack.c.h.b16 %v3873
    %v3915 = vunpack.c.l.b16 %v3874
    %v3916 = vunpack.c.h.b16 %v3874
    %v3917 = vunpack.c.l.b16 %v3875
    %v3918 = vunpack.c.h.b16 %v3875
    %v3919 = vunpack.c.l.b16 %v3876
    %v3920 = vunpack.c.h.b16 %v3876
    %v3921 = vunpack.c.l.b16 %v3877
    %v3922 = vunpack.c.h.b16 %v3877
    %v3923 = vunpack.c.l.b16 %v3878
    %v3924 = vunpack.c.h.b16 %v3878
    %v3925 = vunpack.c.l.b16 %v3879
    %v3926 = vunpack.c.h.b16 %v3879
    %v3927 = vunpack.c.l.b16 %v3880
    %v3928 = vunpack.c.h.b16 %v3880
    %v3929 = vpack.c.b16 %v3899, %v3897
    %v3930 = vpack.c.b16 %v3900, %v3898
    %v3931 = vpack.c.b16 %v3903, %v3901
    %v3932 = vpack.c.b16 %v3904, %v3902
    %v3933 = vpack.c.b16 %v3907, %v3905
    %v3934 = vpack.c.b16 %v3908, %v3906
    %v3935 = vpack.c.b16 %v3911, %v3909
    %v3936 = vpack.c.b16 %v3912, %v3910
    %v3937 = vpack.c.b16 %v3915, %v3913
    %v3938 = vpack.c.b16 %v3916, %v3914
    %v3939 = vpack.c.b16 %v3919, %v3917
    %v3940 = vpack.c.b16 %v3920, %v3918
    %v3941 = vpack.c.b16 %v3923, %v3921
    %v3942 = vpack.c.b16 %v3924, %v3922
    %v3943 = vpack.c.b16 %v3927, %v3925
    %v3944 = vpack.c.b16 %v3928, %v3926
    %3961 = vmatprep.subr.bf16.mxu0 %v3930
    %3962 = vmatpush1.bf16.msra.mxu0 %v3929
    %3963 = vmatprep.subr.bf16.mxu0 %v3932
    %3964 = vmatpush1.bf16.msra.mxu0 %v3931
    %3965 = vmatprep.subr.bf16.mxu0 %v3934
    %3966 = vmatpush1.bf16.msra.mxu0 %v3933
    %3967 = vmatprep.subr.bf16.mxu0 %v3936
    %3968 = vmatpush1.bf16.msra.mxu0 %v3935
    %3969 = vmatprep.subr.bf16.mxu0 %v3938
    %3970 = vmatpush1.bf16.msra.mxu0 %v3937
    %3971 = vmatprep.subr.bf16.mxu0 %v3940
    %3972 = vmatpush1.bf16.msra.mxu0 %v3939
    %3973 = vmatprep.subr.bf16.mxu0 %v3942
    %3974 = vmatpush1.bf16.msra.mxu0 %v3941
    %3975 = vmatprep.subr.bf16.mxu0 %v3944
    %3976 = vmatpush1.bf16.msra.mxu0 %v3943
    %3977 = vmatprep.subr.bf16.mxu0 0
    %3978 = vmatpush1.bf16.msra.mxu0 0
    %3979 = vmatprep.subr.bf16.mxu0 0
    %3980 = vmatpush1.bf16.msra.mxu0 0
    %3981 = vmatprep.subr.bf16.mxu0 0
    %3982 = vmatpush1.bf16.msra.mxu0 0
    %3983 = vmatprep.subr.bf16.mxu0 0
    %3984 = vmatpush1.bf16.msra.mxu0 0
    %3985 = vmatprep.subr.bf16.mxu0 0
    %3986 = vmatpush1.bf16.msra.mxu0 0
    %3987 = vmatprep.subr.bf16.mxu0 0
    %3988 = vmatpush1.bf16.msra.mxu0 0
    %3989 = vmatprep.subr.bf16.mxu0 0
    %3990 = vmatpush1.bf16.msra.mxu0 0
    %3991 = vmatprep.subr.bf16.mxu0 0
    %3992 = vmatpush1.bf16.msra.mxu0 0
    %3993 = vmatprep.mubr.bf16.mxu0 0
    %3994 = vmatmul.mubr.bf16.gmra.mrb[0].mxu0 %v3194
    %v3995 = vpop.f32.mrb[0].mxu0
    %v3996 = vadd.f32 0.0, %v3995
    %v3997 = vpop.f32.mrb[0].mxu0
    %v3998 = vadd.f32 0.0, %v3997
    %v3999 = vpop.f32.mrb[0].mxu0
    %v4000 = vadd.f32 0.0, %v3999
    %v4001 = vpop.f32.mrb[0].mxu0
    %v4002 = vadd.f32 0.0, %v4001
    %4003 = vmatprep.mubr.bf16.mxu0 0
    %4004 = vmatmul.mubr.bf16.gmra.mrb[0].mxu0 %v3195
    %v4005 = vpop.f32.mrb[0].mxu0
    %v4006 = vadd.f32 0.0, %v4005
    %v4007 = vpop.f32.mrb[0].mxu0
    %v4008 = vadd.f32 0.0, %v4007
    %v4009 = vpop.f32.mrb[0].mxu0
    %v4010 = vadd.f32 0.0, %v4009
    %v4011 = vpop.f32.mrb[0].mxu0
    %v4012 = vadd.f32 0.0, %v4011
    %4013 = vmatprep.mubr.bf16.mxu0 0
    %4014 = vmatmul.mubr.bf16.gmra.mrb[0].mxu0 %v3196
    %v4015 = vpop.f32.mrb[0].mxu0
    %v4016 = vadd.f32 0.0, %v4015
    %v4017 = vpop.f32.mrb[0].mxu0
    %v4018 = vadd.f32 0.0, %v4017
    %v4019 = vpop.f32.mrb[0].mxu0
    %v4020 = vadd.f32 0.0, %v4019
    %v4021 = vpop.f32.mrb[0].mxu0
    %v4022 = vadd.f32 0.0, %v4021
    %4023 = vmatprep.mubr.bf16.mxu0 0
    %4024 = vmatmul.mubr.bf16.gmra.mrb[0].mxu0 %v3197
    %v4025 = vpop.f32.mrb[0].mxu0
    %v4026 = vadd.f32 0.0, %v4025
    %v4027 = vpop.f32.mrb[0].mxu0
    %v4028 = vadd.f32 0.0, %v4027
    %v4029 = vpop.f32.mrb[0].mxu0
    %v4030 = vadd.f32 0.0, %v4029
    %v4031 = vpop.f32.mrb[0].mxu0
    %v4032 = vadd.f32 0.0, %v4031
    %4033 = vmatprep.mubr.bf16.mxu0 0
    %4034 = vmatmul.mubr.bf16.gmra.mrb[0].mxu0 %v3198
    %v4035 = vpop.f32.mrb[0].mxu0
    %v4036 = vadd.f32 0.0, %v4035
    %v4037 = vpop.f32.mrb[0].mxu0
    %v4038 = vadd.f32 0.0, %v4037
    %v4039 = vpop.f32.mrb[0].mxu0
    %v4040 = vadd.f32 0.0, %v4039
    %v4041 = vpop.f32.mrb[0].mxu0
    %v4042 = vadd.f32 0.0, %v4041
    %4043 = vmatprep.mubr.bf16.mxu0 0
    %4044 = vmatmul.mubr.bf16.gmra.mrb[0].mxu0 %v3199
    %v4045 = vpop.f32.mrb[0].mxu0
    %v4046 = vadd.f32 0.0, %v4045
    %v4047 = vpop.f32.mrb[0].mxu0
    %v4048 = vadd.f32 0.0, %v4047
    %v4049 = vpop.f32.mrb[0].mxu0
    %v4050 = vadd.f32 0.0, %v4049
    %v4051 = vpop.f32.mrb[0].mxu0
    %v4052 = vadd.f32 0.0, %v4051
    %4053 = vmatprep.mubr.bf16.mxu0 0
    %4054 = vmatmul.mubr.bf16.gmra.mrb[0].mxu0 %v3200
    %v4055 = vpop.f32.mrb[0].mxu0
    %v4056 = vadd.f32 0.0, %v4055
    %v4057 = vpop.f32.mrb[0].mxu0
    %v4058 = vadd.f32 0.0, %v4057
    %v4059 = vpop.f32.mrb[0].mxu0
    %v4060 = vadd.f32 0.0, %v4059
    %v4061 = vpop.f32.mrb[0].mxu0
    %v4062 = vadd.f32 0.0, %v4061
    %4063 = vmatprep.mubr.bf16.mxu0 0
    %4064 = vmatmul.mubr.bf16.gmra.mrb[0].mxu0 %v3201
    %v4065 = vpop.f32.mrb[0].mxu0
    %v4066 = vadd.f32 0.0, %v4065
    %v4067 = vpop.f32.mrb[0].mxu0
    %v4068 = vadd.f32 0.0, %v4067
    %v4069 = vpop.f32.mrb[0].mxu0
    %v4070 = vadd.f32 0.0, %v4069
    %v4071 = vpop.f32.mrb[0].mxu0
    %v4072 = vadd.f32 0.0, %v4071
    %4073 = vdwg.mxu0
    %v4074 = vadd.f32 %v3832, %v3996
    %v4075 = vadd.f32 %v3833, %v3998
    %v4076 = vadd.f32 %v3834, %v4000
    %v4077 = vadd.f32 %v3835, %v4002
    %v4078 = vadd.f32 %v3836, %v4006
    %v4079 = vadd.f32 %v3837, %v4008
    %v4080 = vadd.f32 %v3838, %v4010
    %v4081 = vadd.f32 %v3839, %v4012
    %v4082 = vadd.f32 %v3840, %v4016
    %v4083 = vadd.f32 %v3841, %v4018
    %v4084 = vadd.f32 %v3842, %v4020
    %v4085 = vadd.f32 %v3843, %v4022
    %v4086 = vadd.f32 %v3844, %v4026
    %v4087 = vadd.f32 %v3845, %v4028
    %v4088 = vadd.f32 %v3846, %v4030
    %v4089 = vadd.f32 %v3847, %v4032
    %v4090 = vadd.f32 %v3848, %v4036
    %v4091 = vadd.f32 %v3849, %v4038
    %v4092 = vadd.f32 %v3850, %v4040
    %v4093 = vadd.f32 %v3851, %v4042
    %v4094 = vadd.f32 %v3852, %v4046
    %v4095 = vadd.f32 %v3853, %v4048
    %v4096 = vadd.f32 %v3854, %v4050
    %v4097 = vadd.f32 %v3855, %v4052
    %v4098 = vadd.f32 %v3856, %v4056
    %v4099 = vadd.f32 %v3857, %v4058
    %v4100 = vadd.f32 %v3858, %v4060
    %v4101 = vadd.f32 %v3859, %v4062
    %v4102 = vadd.f32 %v3860, %v4066
    %v4103 = vadd.f32 %v3861, %v4068
    %v4104 = vadd.f32 %v3862, %v4070
    %v4105 = vadd.f32 %v3863, %v4072
    %s4106 = scalar_lea.vmem [#allocation4], 512
    %v4107 = vld [vmem:[%s4106] sm:$0xff]
    %v4108 = vld [vmem:[%s4106 + $0x8] sm:$0xff]
    %v4109 = vld [vmem:[%s4106 + $0x10] sm:$0xff]
    %v4110 = vld [vmem:[%s4106 + $0x18] sm:$0xff]
    %v4111 = vld [vmem:[%s4106 + $0x20] sm:$0xff]
    %v4112 = vld [vmem:[%s4106 + $0x28] sm:$0xff]
    %v4113 = vld [vmem:[%s4106 + $0x30] sm:$0xff]
    %v4114 = vld [vmem:[%s4106 + $0x38] sm:$0xff]
    %v4115 = vld [vmem:[%s4106 + $0x40] sm:$0xff]
    %v4116 = vld [vmem:[%s4106 + $0x48] sm:$0xff]
    %v4117 = vld [vmem:[%s4106 + $0x50] sm:$0xff]
    %v4118 = vld [vmem:[%s4106 + $0x58] sm:$0xff]
    %v4119 = vld [vmem:[%s4106 + $0x60] sm:$0xff]
    %v4120 = vld [vmem:[%s4106 + $0x68] sm:$0xff]
    %v4121 = vld [vmem:[%s4106 + $0x70] sm:$0xff]
    %v4122 = vld [vmem:[%s4106 + $0x78] sm:$0xff]
    %v4139 = vunpack.c.l.b16 %v4107
    %v4140 = vunpack.c.h.b16 %v4107
    %v4141 = vunpack.c.l.b16 %v4108
    %v4142 = vunpack.c.h.b16 %v4108
    %v4143 = vunpack.c.l.b16 %v4109
    %v4144 = vunpack.c.h.b16 %v4109
    %v4145 = vunpack.c.l.b16 %v4110
    %v4146 = vunpack.c.h.b16 %v4110
    %v4147 = vunpack.c.l.b16 %v4111
    %v4148 = vunpack.c.h.b16 %v4111
    %v4149 = vunpack.c.l.b16 %v4112
    %v4150 = vunpack.c.h.b16 %v4112
    %v4151 = vunpack.c.l.b16 %v4113
    %v4152 = vunpack.c.h.b16 %v4113
    %v4153 = vunpack.c.l.b16 %v4114
    %v4154 = vunpack.c.h.b16 %v4114
    %v4155 = vunpack.c.l.b16 %v4115
    %v4156 = vunpack.c.h.b16 %v4115
    %v4157 = vunpack.c.l.b16 %v4116
    %v4158 = vunpack.c.h.b16 %v4116
    %v4159 = vunpack.c.l.b16 %v4117
    %v4160 = vunpack.c.h.b16 %v4117
    %v4161 = vunpack.c.l.b16 %v4118
    %v4162 = vunpack.c.h.b16 %v4118
    %v4163 = vunpack.c.l.b16 %v4119
    %v4164 = vunpack.c.h.b16 %v4119
    %v4165 = vunpack.c.l.b16 %v4120
    %v4166 = vunpack.c.h.b16 %v4120
    %v4167 = vunpack.c.l.b16 %v4121
    %v4168 = vunpack.c.h.b16 %v4121
    %v4169 = vunpack.c.l.b16 %v4122
    %v4170 = vunpack.c.h.b16 %v4122
    %v4171 = vpack.c.b16 %v4141, %v4139
    %v4172 = vpack.c.b16 %v4142, %v4140
    %v4173 = vpack.c.b16 %v4145, %v4143
    %v4174 = vpack.c.b16 %v4146, %v4144
    %v4175 = vpack.c.b16 %v4149, %v4147
    %v4176 = vpack.c.b16 %v4150, %v4148
    %v4177 = vpack.c.b16 %v4153, %v4151
    %v4178 = vpack.c.b16 %v4154, %v4152
    %v4179 = vpack.c.b16 %v4157, %v4155
    %v4180 = vpack.c.b16 %v4158, %v4156
    %v4181 = vpack.c.b16 %v4161, %v4159
    %v4182 = vpack.c.b16 %v4162, %v4160
    %v4183 = vpack.c.b16 %v4165, %v4163
    %v4184 = vpack.c.b16 %v4166, %v4164
    %v4185 = vpack.c.b16 %v4169, %v4167
    %v4186 = vpack.c.b16 %v4170, %v4168
    %4203 = vmatprep.subr.bf16.mxu0 %v4172
    %4204 = vmatpush1.bf16.msra.mxu0 %v4171
    %4205 = vmatprep.subr.bf16.mxu0 %v4174
    %4206 = vmatpush1.bf16.msra.mxu0 %v4173
    %4207 = vmatprep.subr.bf16.mxu0 %v4176
    %4208 = vmatpush1.bf16.msra.mxu0 %v4175
    %4209 = vmatprep.subr.bf16.mxu0 %v4178
    %4210 = vmatpush1.bf16.msra.mxu0 %v4177
    %4211 = vmatprep.subr.bf16.mxu0 %v4180
    %4212 = vmatpush1.bf16.msra.mxu0 %v4179
    %4213 = vmatprep.subr.bf16.mxu0 %v4182
    %4214 = vmatpush1.bf16.msra.mxu0 %v4181
    %4215 = vmatprep.subr.bf16.mxu0 %v4184
    %4216 = vmatpush1.bf16.msra.mxu0 %v4183
    %4217 = vmatprep.subr.bf16.mxu0 %v4186
    %4218 = vmatpush1.bf16.msra.mxu0 %v4185
    %4219 = vmatprep.subr.bf16.mxu0 0
    %4220 = vmatpush1.bf16.msra.mxu0 0
    %4221 = vmatprep.subr.bf16.mxu0 0
    %4222 = vmatpush1.bf16.msra.mxu0 0
    %4223 = vmatprep.subr.bf16.mxu0 0
    %4224 = vmatpush1.bf16.msra.mxu0 0
    %4225 = vmatprep.subr.bf16.mxu0 0
    %4226 = vmatpush1.bf16.msra.mxu0 0
    %4227 = vmatprep.subr.bf16.mxu0 0
    %4228 = vmatpush1.bf16.msra.mxu0 0
    %4229 = vmatprep.subr.bf16.mxu0 0
    %4230 = vmatpush1.bf16.msra.mxu0 0
    %4231 = vmatprep.subr.bf16.mxu0 0
    %4232 = vmatpush1.bf16.msra.mxu0 0
    %4233 = vmatprep.subr.bf16.mxu0 0
    %4234 = vmatpush1.bf16.msra.mxu0 0
    %4235 = vmatprep.mubr.bf16.mxu0 0
    %4236 = vmatmul.mubr.bf16.gmra.mrb[0].mxu0 %v3195
    %v4237 = vpop.f32.mrb[0].mxu0
    %v4238 = vadd.f32 0.0, %v4237
    %v4239 = vpop.f32.mrb[0].mxu0
    %v4240 = vadd.f32 0.0, %v4239
    %v4241 = vpop.f32.mrb[0].mxu0
    %v4242 = vadd.f32 0.0, %v4241
    %v4243 = vpop.f32.mrb[0].mxu0
    %v4244 = vadd.f32 0.0, %v4243
    %4245 = vmatprep.mubr.bf16.mxu0 0
    %4246 = vmatmul.mubr.bf16.gmra.mrb[0].mxu0 %v3196
    %v4247 = vpop.f32.mrb[0].mxu0
    %v4248 = vadd.f32 0.0, %v4247
    %v4249 = vpop.f32.mrb[0].mxu0
    %v4250 = vadd.f32 0.0, %v4249
    %v4251 = vpop.f32.mrb[0].mxu0
    %v4252 = vadd.f32 0.0, %v4251
    %v4253 = vpop.f32.mrb[0].mxu0
    %v4254 = vadd.f32 0.0, %v4253
    %4255 = vmatprep.mubr.bf16.mxu0 0
    %4256 = vmatmul.mubr.bf16.gmra.mrb[0].mxu0 %v3197
    %v4257 = vpop.f32.mrb[0].mxu0
    %v4258 = vadd.f32 0.0, %v4257
    %v4259 = vpop.f32.mrb[0].mxu0
    %v4260 = vadd.f32 0.0, %v4259
    %v4261 = vpop.f32.mrb[0].mxu0
    %v4262 = vadd.f32 0.0, %v4261
    %v4263 = vpop.f32.mrb[0].mxu0
    %v4264 = vadd.f32 0.0, %v4263
    %4265 = vmatprep.mubr.bf16.mxu0 0
    %4266 = vmatmul.mubr.bf16.gmra.mrb[0].mxu0 %v3198
    %v4267 = vpop.f32.mrb[0].mxu0
    %v4268 = vadd.f32 0.0, %v4267
    %v4269 = vpop.f32.mrb[0].mxu0
    %v4270 = vadd.f32 0.0, %v4269
    %v4271 = vpop.f32.mrb[0].mxu0
    %v4272 = vadd.f32 0.0, %v4271
    %v4273 = vpop.f32.mrb[0].mxu0
    %v4274 = vadd.f32 0.0, %v4273
    %4275 = vmatprep.mubr.bf16.mxu0 0
    %4276 = vmatmul.mubr.bf16.gmra.mrb[0].mxu0 %v3199
    %v4277 = vpop.f32.mrb[0].mxu0
    %v4278 = vadd.f32 0.0, %v4277
    %v4279 = vpop.f32.mrb[0].mxu0
    %v4280 = vadd.f32 0.0, %v4279
    %v4281 = vpop.f32.mrb[0].mxu0
    %v4282 = vadd.f32 0.0, %v4281
    %v4283 = vpop.f32.mrb[0].mxu0
    %v4284 = vadd.f32 0.0, %v4283
    %4285 = vmatprep.mubr.bf16.mxu0 0
    %4286 = vmatmul.mubr.bf16.gmra.mrb[0].mxu0 %v3200
    %v4287 = vpop.f32.mrb[0].mxu0
    %v4288 = vadd.f32 0.0, %v4287
    %v4289 = vpop.f32.mrb[0].mxu0
    %v4290 = vadd.f32 0.0, %v4289
    %v4291 = vpop.f32.mrb[0].mxu0
    %v4292 = vadd.f32 0.0, %v4291
    %v4293 = vpop.f32.mrb[0].mxu0
    %v4294 = vadd.f32 0.0, %v4293
    %4295 = vmatprep.mubr.bf16.mxu0 0
    %4296 = vmatmul.mubr.bf16.gmra.mrb[0].mxu0 %v3201
    %v4297 = vpop.f32.mrb[0].mxu0
    %v4298 = vadd.f32 0.0, %v4297
    %v4299 = vpop.f32.mrb[0].mxu0
    %v4300 = vadd.f32 0.0, %v4299
    %v4301 = vpop.f32.mrb[0].mxu0
    %v4302 = vadd.f32 0.0, %v4301
    %v4303 = vpop.f32.mrb[0].mxu0
    %v4304 = vadd.f32 0.0, %v4303
    %4305 = vmatprep.mubr.bf16.mxu0 0
    %4306 = vmatmul.mubr.bf16.gmra.mrb[0].mxu0 %v3202
    %v4307 = vpop.f32.mrb[0].mxu0
    %v4308 = vadd.f32 0.0, %v4307
    %v4309 = vpop.f32.mrb[0].mxu0
    %v4310 = vadd.f32 0.0, %v4309
    %v4311 = vpop.f32.mrb[0].mxu0
    %v4312 = vadd.f32 0.0, %v4311
    %v4313 = vpop.f32.mrb[0].mxu0
    %v4314 = vadd.f32 0.0, %v4313
    %4315 = vdwg.mxu0
    %v4316 = vadd.f32 %v4074, %v4238
    %v4317 = vadd.f32 %v4075, %v4240
    %v4318 = vadd.f32 %v4076, %v4242
    %v4319 = vadd.f32 %v4077, %v4244
    %v4320 = vadd.f32 %v4078, %v4248
    %v4321 = vadd.f32 %v4079, %v4250
    %v4322 = vadd.f32 %v4080, %v4252
    %v4323 = vadd.f32 %v4081, %v4254
    %v4324 = vadd.f32 %v4082, %v4258
    %v4325 = vadd.f32 %v4083, %v4260
    %v4326 = vadd.f32 %v4084, %v4262
    %v4327 = vadd.f32 %v4085, %v4264
    %v4328 = vadd.f32 %v4086, %v4268
    %v4329 = vadd.f32 %v4087, %v4270
    %v4330 = vadd.f32 %v4088, %v4272
    %v4331 = vadd.f32 %v4089, %v4274
    %v4332 = vadd.f32 %v4090, %v4278
    %v4333 = vadd.f32 %v4091, %v4280
    %v4334 = vadd.f32 %v4092, %v4282
    %v4335 = vadd.f32 %v4093, %v4284
    %v4336 = vadd.f32 %v4094, %v4288
    %v4337 = vadd.f32 %v4095, %v4290
    %v4338 = vadd.f32 %v4096, %v4292
    %v4339 = vadd.f32 %v4097, %v4294
    %v4340 = vadd.f32 %v4098, %v4298
    %v4341 = vadd.f32 %v4099, %v4300
    %v4342 = vadd.f32 %v4100, %v4302
    %v4343 = vadd.f32 %v4101, %v4304
    %v4344 = vadd.f32 %v4102, %v4308
    %v4345 = vadd.f32 %v4103, %v4310
    %v4346 = vadd.f32 %v4104, %v4312
    %v4347 = vadd.f32 %v4105, %v4314
    %v4348 = vmax.f32 %v4316, %v4320
    %v4349 = vmax.f32 %v4317, %v4321
    %v4350 = vmax.f32 %v4318, %v4322
    %v4351 = vmax.f32 %v4319, %v4323
    %v4352 = vmax.f32 %v4324, %v4328
    %v4353 = vmax.f32 %v4325, %v4329
    %v4354 = vmax.f32 %v4326, %v4330
    %v4355 = vmax.f32 %v4327, %v4331
    %v4356 = vmax.f32 %v4332, %v4336
    %v4357 = vmax.f32 %v4333, %v4337
    %v4358 = vmax.f32 %v4334, %v4338
    %v4359 = vmax.f32 %v4335, %v4339
    %v4360 = vmax.f32 %v4340, %v4344
    %v4361 = vmax.f32 %v4341, %v4345
    %v4362 = vmax.f32 %v4342, %v4346
    %v4363 = vmax.f32 %v4343, %v4347
    %v4364 = vmax.f32 %v4348, %v4349
    %v4365 = vmax.f32 %v4350, %v4351
    %v4366 = vmax.f32 %v4352, %v4353
    %v4367 = vmax.f32 %v4354, %v4355
    %v4368 = vmax.f32 %v4356, %v4357
    %v4369 = vmax.f32 %v4358, %v4359
    %v4370 = vmax.f32 %v4360, %v4361
    %v4371 = vmax.f32 %v4362, %v4363
    %v4372 = vld [vmem:[%s4] sm:$0x1]
    %v4374 = vlaneseq
    %v4375 = vshrl.u32 %v4374, 7
    %v4376 = vsub.s32 0, %v4375
    %v4377 = vrot.slane %v4372, %v4376
    %v4379 = vadd.f32 %v4364, %v4377
    %v4380 = vadd.f32 %v4365, %v4377
    %v4381 = vadd.f32 %v4366, %v4377
    %v4382 = vadd.f32 %v4367, %v4377
    %v4383 = vadd.f32 %v4368, %v4377
    %v4384 = vadd.f32 %v4369, %v4377
    %v4385 = vadd.f32 %v4370, %v4377
    %v4386 = vadd.f32 %v4371, %v4377
    %v4387 = vmax.f32 %v4379, 0.0
    %v4388 = vmax.f32 %v4380, 0.0
    %v4389 = vmax.f32 %v4381, 0.0
    %v4390 = vmax.f32 %v4382, 0.0
    %v4391 = vmax.f32 %v4383, 0.0
    %v4392 = vmax.f32 %v4384, 0.0
    %v4393 = vmax.f32 %v4385, 0.0
    %v4394 = vmax.f32 %v4386, 0.0
    %v4395 = vpack.c.bf16 %v4388, %v4387
    %v4396 = vpack.c.bf16 %v4390, %v4389
    %v4397 = vpack.c.bf16 %v4392, %v4391
    %v4398 = vpack.c.bf16 %v4394, %v4393
    %v4399 = vld [vmem:[%s5] sm:$0xf]
    %v4400 = vld [vmem:[%s5 + $0x4] sm:$0xf]
    %v4401 = vld [vmem:[%s5 + $0x8] sm:$0xf]
    %v4402 = vld [vmem:[%s5 + $0xc] sm:$0xf]
    %v4403 = vld [vmem:[%s5 + $0x10] sm:$0xf]
    %v4404 = vld [vmem:[%s5 + $0x14] sm:$0xf]
    %v4405 = vld [vmem:[%s5 + $0x18] sm:$0xf]
    %v4406 = vld [vmem:[%s5 + $0x1c] sm:$0xf]
    %v4407 = vld [vmem:[%s5 + $0x20] sm:$0xf]
    %v4408 = vld [vmem:[%s5 + $0x24] sm:$0xf]
    %v4409 = vld [vmem:[%s5 + $0x28] sm:$0xf]
    %v4410 = vld [vmem:[%s5 + $0x2c] sm:$0xf]
    %v4411 = vld [vmem:[%s5 + $0x30] sm:$0xf]
    %v4412 = vld [vmem:[%s5 + $0x34] sm:$0xf]
    %v4413 = vld [vmem:[%s5 + $0x38] sm:$0xf]
    %v4414 = vld [vmem:[%s5 + $0x3c] sm:$0xf]
    %s4415 = scalar_lea.vmem %s5, 64
    %v4416 = vld [vmem:[%s4415] sm:$0xf]
    %v4417 = vld [vmem:[%s4415 + $0x4] sm:$0xf]
    %v4418 = vld [vmem:[%s4415 + $0x8] sm:$0xf]
    %v4419 = vld [vmem:[%s4415 + $0xc] sm:$0xf]
    %v4420 = vld [vmem:[%s4415 + $0x10] sm:$0xf]
    %v4421 = vld [vmem:[%s4415 + $0x14] sm:$0xf]
    %v4422 = vld [vmem:[%s4415 + $0x18] sm:$0xf]
    %v4423 = vld [vmem:[%s4415 + $0x1c] sm:$0xf]
    %v4424 = vld [vmem:[%s4415 + $0x20] sm:$0xf]
    %v4425 = vld [vmem:[%s4415 + $0x24] sm:$0xf]
    %v4426 = vld [vmem:[%s4415 + $0x28] sm:$0xf]
    %v4427 = vld [vmem:[%s4415 + $0x2c] sm:$0xf]
    %v4428 = vld [vmem:[%s4415 + $0x30] sm:$0xf]
    %v4429 = vld [vmem:[%s4415 + $0x34] sm:$0xf]
    %v4430 = vld [vmem:[%s4415 + $0x38] sm:$0xf]
    %v4431 = vld [vmem:[%s4415 + $0x3c] sm:$0xf]
    %v4448 = vunpack.c.l.b16 %v4416
    %v4449 = vunpack.c.l.b16 %v4417
    %v4450 = vunpack.c.l.b16 %v4418
    %v4451 = vunpack.c.l.b16 %v4419
    %v4452 = vunpack.c.l.b16 %v4420
    %v4453 = vunpack.c.l.b16 %v4421
    %v4454 = vunpack.c.l.b16 %v4422
    %v4455 = vunpack.c.l.b16 %v4423
    %v4456 = vunpack.c.l.b16 %v4424
    %v4457 = vunpack.c.l.b16 %v4425
    %v4458 = vunpack.c.l.b16 %v4426
    %v4459 = vunpack.c.l.b16 %v4427
    %v4460 = vunpack.c.l.b16 %v4428
    %v4461 = vunpack.c.l.b16 %v4429
    %v4462 = vunpack.c.l.b16 %v4430
    %v4463 = vunpack.c.l.b16 %v4431
    %v4464 = vpack.c.b16 %v4449, %v4448
    %v4465 = vpack.c.b16 %v4451, %v4450
    %v4466 = vpack.c.b16 %v4453, %v4452
    %v4467 = vpack.c.b16 %v4455, %v4454
    %v4468 = vpack.c.b16 %v4457, %v4456
    %v4469 = vpack.c.b16 %v4459, %v4458
    %v4470 = vpack.c.b16 %v4461, %v4460
    %v4471 = vpack.c.b16 %v4463, %v4462
    %4480 = vmatprep.subr.bf16.mxu0 0
    %4481 = vmatpush1.bf16.msra.mxu0 %v4464
    %4482 = vmatprep.subr.bf16.mxu0 0
    %4483 = vmatpush1.bf16.msra.mxu0 %v4465
    %4484 = vmatprep.subr.bf16.mxu0 0
    %4485 = vmatpush1.bf16.msra.mxu0 %v4466
    %4486 = vmatprep.subr.bf16.mxu0 0
    %4487 = vmatpush1.bf16.msra.mxu0 %v4467
    %4488 = vmatprep.subr.bf16.mxu0 0
    %4489 = vmatpush1.bf16.msra.mxu0 %v4468
    %4490 = vmatprep.subr.bf16.mxu0 0
    %4491 = vmatpush1.bf16.msra.mxu0 %v4469
    %4492 = vmatprep.subr.bf16.mxu0 0
    %4493 = vmatpush1.bf16.msra.mxu0 %v4470
    %4494 = vmatprep.subr.bf16.mxu0 0
    %4495 = vmatpush1.bf16.msra.mxu0 %v4471
    %4496 = vmatprep.subr.bf16.mxu0 0
    %4497 = vmatpush1.bf16.msra.mxu0 0
    %4498 = vmatprep.subr.bf16.mxu0 0
    %4499 = vmatpush1.bf16.msra.mxu0 0
    %4500 = vmatprep.subr.bf16.mxu0 0
    %4501 = vmatpush1.bf16.msra.mxu0 0
    %4502 = vmatprep.subr.bf16.mxu0 0
    %4503 = vmatpush1.bf16.msra.mxu0 0
    %4504 = vmatprep.subr.bf16.mxu0 0
    %4505 = vmatpush1.bf16.msra.mxu0 0
    %4506 = vmatprep.subr.bf16.mxu0 0
    %4507 = vmatpush1.bf16.msra.mxu0 0
    %4508 = vmatprep.subr.bf16.mxu0 0
    %4509 = vmatpush1.bf16.msra.mxu0 0
    %4510 = vmatprep.subr.bf16.mxu0 0
    %4511 = vmatpush1.bf16.msra.mxu0 0
    %4512 = vmatprep.mubr.bf16.mxu0 0
    %4513 = vmatmul.mubr.bf16.gmra.mrb[0].mxu0 %v4396
    %v4514 = vpop.f32.mrb[0].mxu0
    %v4515 = vadd.f32 0.0, %v4514
    %v4516 = vpop.f32.mrb[0].mxu0
    %v4517 = vpop.f32.mrb[0].mxu0
    %v4518 = vadd.f32 0.0, %v4517
    %v4519 = vpop.f32.mrb[0].mxu0
    %4520 = vdwg.mxu0
    %v4537 = vunpack.c.l.b16 %v4399
    %v4538 = vunpack.c.l.b16 %v4400
    %v4539 = vunpack.c.l.b16 %v4401
    %v4540 = vunpack.c.l.b16 %v4402
    %v4541 = vunpack.c.l.b16 %v4403
    %v4542 = vunpack.c.l.b16 %v4404
    %v4543 = vunpack.c.l.b16 %v4405
    %v4544 = vunpack.c.l.b16 %v4406
    %v4545 = vunpack.c.l.b16 %v4407
    %v4546 = vunpack.c.l.b16 %v4408
    %v4547 = vunpack.c.l.b16 %v4409
    %v4548 = vunpack.c.l.b16 %v4410
    %v4549 = vunpack.c.l.b16 %v4411
    %v4550 = vunpack.c.l.b16 %v4412
    %v4551 = vunpack.c.l.b16 %v4413
    %v4552 = vunpack.c.l.b16 %v4414
    %v4553 = vpack.c.b16 %v4538, %v4537
    %v4554 = vpack.c.b16 %v4540, %v4539
    %v4555 = vpack.c.b16 %v4542, %v4541
    %v4556 = vpack.c.b16 %v4544, %v4543
    %v4557 = vpack.c.b16 %v4546, %v4545
    %v4558 = vpack.c.b16 %v4548, %v4547
    %v4559 = vpack.c.b16 %v4550, %v4549
    %v4560 = vpack.c.b16 %v4552, %v4551
    %4569 = vmatprep.subr.bf16.mxu0 0
    %4570 = vmatpush1.bf16.msra.mxu0 %v4553
    %4571 = vmatprep.subr.bf16.mxu0 0
    %4572 = vmatpush1.bf16.msra.mxu0 %v4554
    %4573 = vmatprep.subr.bf16.mxu0 0
    %4574 = vmatpush1.bf16.msra.mxu0 %v4555
    %4575 = vmatprep.subr.bf16.mxu0 0
    %4576 = vmatpush1.bf16.msra.mxu0 %v4556
    %4577 = vmatprep.subr.bf16.mxu0 0
    %4578 = vmatpush1.bf16.msra.mxu0 %v4557
    %4579 = vmatprep.subr.bf16.mxu0 0
    %4580 = vmatpush1.bf16.msra.mxu0 %v4558
    %4581 = vmatprep.subr.bf16.mxu0 0
    %4582 = vmatpush1.bf16.msra.mxu0 %v4559
    %4583 = vmatprep.subr.bf16.mxu0 0
    %4584 = vmatpush1.bf16.msra.mxu0 %v4560
    %4585 = vmatprep.subr.bf16.mxu0 0
    %4586 = vmatpush1.bf16.msra.mxu0 0
    %4587 = vmatprep.subr.bf16.mxu0 0
    %4588 = vmatpush1.bf16.msra.mxu0 0
    %4589 = vmatprep.subr.bf16.mxu0 0
    %4590 = vmatpush1.bf16.msra.mxu0 0
    %4591 = vmatprep.subr.bf16.mxu0 0
    %4592 = vmatpush1.bf16.msra.mxu0 0
    %4593 = vmatprep.subr.bf16.mxu0 0
    %4594 = vmatpush1.bf16.msra.mxu0 0
    %4595 = vmatprep.subr.bf16.mxu0 0
    %4596 = vmatpush1.bf16.msra.mxu0 0
    %4597 = vmatprep.subr.bf16.mxu0 0
    %4598 = vmatpush1.bf16.msra.mxu0 0
    %4599 = vmatprep.subr.bf16.mxu0 0
    %4600 = vmatpush1.bf16.msra.mxu0 0
    %4601 = vmatprep.mubr.bf16.mxu0 0
    %4602 = vmatmul.mubr.bf16.gmra.mrb[0].mxu0 %v4395
    %v4603 = vpop.f32.mrb[0].mxu0
    %v4604 = vadd.f32 %v4515, %v4603
    %v4605 = vpop.f32.mrb[0].mxu0
    %v4606 = vpop.f32.mrb[0].mxu0
    %v4607 = vadd.f32 %v4518, %v4606
    %v4608 = vpop.f32.mrb[0].mxu0
    %4609 = vdwg.mxu0
    %s4610 = scalar_lea.vmem %s5, 128
    %v4611 = vld [vmem:[%s4610] sm:$0xf]
    %v4612 = vld [vmem:[%s4610 + $0x4] sm:$0xf]
    %v4613 = vld [vmem:[%s4610 + $0x8] sm:$0xf]
    %v4614 = vld [vmem:[%s4610 + $0xc] sm:$0xf]
    %v4615 = vld [vmem:[%s4610 + $0x10] sm:$0xf]
    %v4616 = vld [vmem:[%s4610 + $0x14] sm:$0xf]
    %v4617 = vld [vmem:[%s4610 + $0x18] sm:$0xf]
    %v4618 = vld [vmem:[%s4610 + $0x1c] sm:$0xf]
    %v4619 = vld [vmem:[%s4610 + $0x20] sm:$0xf]
    %v4620 = vld [vmem:[%s4610 + $0x24] sm:$0xf]
    %v4621 = vld [vmem:[%s4610 + $0x28] sm:$0xf]
    %v4622 = vld [vmem:[%s4610 + $0x2c] sm:$0xf]
    %v4623 = vld [vmem:[%s4610 + $0x30] sm:$0xf]
    %v4624 = vld [vmem:[%s4610 + $0x34] sm:$0xf]
    %v4625 = vld [vmem:[%s4610 + $0x38] sm:$0xf]
    %v4626 = vld [vmem:[%s4610 + $0x3c] sm:$0xf]
    %v4643 = vunpack.c.l.b16 %v4611
    %v4644 = vunpack.c.l.b16 %v4612
    %v4645 = vunpack.c.l.b16 %v4613
    %v4646 = vunpack.c.l.b16 %v4614
    %v4647 = vunpack.c.l.b16 %v4615
    %v4648 = vunpack.c.l.b16 %v4616
    %v4649 = vunpack.c.l.b16 %v4617
    %v4650 = vunpack.c.l.b16 %v4618
    %v4651 = vunpack.c.l.b16 %v4619
    %v4652 = vunpack.c.l.b16 %v4620
    %v4653 = vunpack.c.l.b16 %v4621
    %v4654 = vunpack.c.l.b16 %v4622
    %v4655 = vunpack.c.l.b16 %v4623
    %v4656 = vunpack.c.l.b16 %v4624
    %v4657 = vunpack.c.l.b16 %v4625
    %v4658 = vunpack.c.l.b16 %v4626
    %v4659 = vpack.c.b16 %v4644, %v4643
    %v4660 = vpack.c.b16 %v4646, %v4645
    %v4661 = vpack.c.b16 %v4648, %v4647
    %v4662 = vpack.c.b16 %v4650, %v4649
    %v4663 = vpack.c.b16 %v4652, %v4651
    %v4664 = vpack.c.b16 %v4654, %v4653
    %v4665 = vpack.c.b16 %v4656, %v4655
    %v4666 = vpack.c.b16 %v4658, %v4657
    %4675 = vmatprep.subr.bf16.mxu0 0
    %4676 = vmatpush1.bf16.msra.mxu0 %v4659
    %4677 = vmatprep.subr.bf16.mxu0 0
    %4678 = vmatpush1.bf16.msra.mxu0 %v4660
    %4679 = vmatprep.subr.bf16.mxu0 0
    %4680 = vmatpush1.bf16.msra.mxu0 %v4661
    %4681 = vmatprep.subr.bf16.mxu0 0
    %4682 = vmatpush1.bf16.msra.mxu0 %v4662
    %4683 = vmatprep.subr.bf16.mxu0 0
    %4684 = vmatpush1.bf16.msra.mxu0 %v4663
    %4685 = vmatprep.subr.bf16.mxu0 0
    %4686 = vmatpush1.bf16.msra.mxu0 %v4664
    %4687 = vmatprep.subr.bf16.mxu0 0
    %4688 = vmatpush1.bf16.msra.mxu0 %v4665
    %4689 = vmatprep.subr.bf16.mxu0 0
    %4690 = vmatpush1.bf16.msra.mxu0 %v4666
    %4691 = vmatprep.subr.bf16.mxu0 0
    %4692 = vmatpush1.bf16.msra.mxu0 0
    %4693 = vmatprep.subr.bf16.mxu0 0
    %4694 = vmatpush1.bf16.msra.mxu0 0
    %4695 = vmatprep.subr.bf16.mxu0 0
    %4696 = vmatpush1.bf16.msra.mxu0 0
    %4697 = vmatprep.subr.bf16.mxu0 0
    %4698 = vmatpush1.bf16.msra.mxu0 0
    %4699 = vmatprep.subr.bf16.mxu0 0
    %4700 = vmatpush1.bf16.msra.mxu0 0
    %4701 = vmatprep.subr.bf16.mxu0 0
    %4702 = vmatpush1.bf16.msra.mxu0 0
    %4703 = vmatprep.subr.bf16.mxu0 0
    %4704 = vmatpush1.bf16.msra.mxu0 0
    %4705 = vmatprep.subr.bf16.mxu0 0
    %4706 = vmatpush1.bf16.msra.mxu0 0
    %4707 = vmatprep.mubr.bf16.mxu0 0
    %4708 = vmatmul.mubr.bf16.gmra.mrb[0].mxu0 %v4397
    %v4709 = vpop.f32.mrb[0].mxu0
    %v4710 = vadd.f32 0.0, %v4709
    %v4711 = vpop.f32.mrb[0].mxu0
    %v4712 = vpop.f32.mrb[0].mxu0
    %v4713 = vadd.f32 0.0, %v4712
    %v4714 = vpop.f32.mrb[0].mxu0
    %4715 = vdwg.mxu0
    %v4716 = vadd.f32 %v4604, %v4710
    %v4717 = vadd.f32 %v4607, %v4713
    %s4718 = scalar_lea.vmem %s5, 192
    %v4719 = vld [vmem:[%s4718] sm:$0xf]
    %v4720 = vld [vmem:[%s4718 + $0x4] sm:$0xf]
    %v4721 = vld [vmem:[%s4718 + $0x8] sm:$0xf]
    %v4722 = vld [vmem:[%s4718 + $0xc] sm:$0xf]
    %v4723 = vld [vmem:[%s4718 + $0x10] sm:$0xf]
    %v4724 = vld [vmem:[%s4718 + $0x14] sm:$0xf]
    %v4725 = vld [vmem:[%s4718 + $0x18] sm:$0xf]
    %v4726 = vld [vmem:[%s4718 + $0x1c] sm:$0xf]
    %v4727 = vld [vmem:[%s4718 + $0x20] sm:$0xf]
    %v4728 = vld [vmem:[%s4718 + $0x24] sm:$0xf]
    %v4729 = vld [vmem:[%s4718 + $0x28] sm:$0xf]
    %v4730 = vld [vmem:[%s4718 + $0x2c] sm:$0xf]
    %v4731 = vld [vmem:[%s4718 + $0x30] sm:$0xf]
    %v4732 = vld [vmem:[%s4718 + $0x34] sm:$0xf]
    %v4733 = vld [vmem:[%s4718 + $0x38] sm:$0xf]
    %v4734 = vld [vmem:[%s4718 + $0x3c] sm:$0xf]
    %v4751 = vunpack.c.l.b16 %v4719
    %v4752 = vunpack.c.l.b16 %v4720
    %v4753 = vunpack.c.l.b16 %v4721
    %v4754 = vunpack.c.l.b16 %v4722
    %v4755 = vunpack.c.l.b16 %v4723
    %v4756 = vunpack.c.l.b16 %v4724
    %v4757 = vunpack.c.l.b16 %v4725
    %v4758 = vunpack.c.l.b16 %v4726
    %v4759 = vunpack.c.l.b16 %v4727
    %v4760 = vunpack.c.l.b16 %v4728
    %v4761 = vunpack.c.l.b16 %v4729
    %v4762 = vunpack.c.l.b16 %v4730
    %v4763 = vunpack.c.l.b16 %v4731
    %v4764 = vunpack.c.l.b16 %v4732
    %v4765 = vunpack.c.l.b16 %v4733
    %v4766 = vunpack.c.l.b16 %v4734
    %v4767 = vpack.c.b16 %v4752, %v4751
    %v4768 = vpack.c.b16 %v4754, %v4753
    %v4769 = vpack.c.b16 %v4756, %v4755
    %v4770 = vpack.c.b16 %v4758, %v4757
    %v4771 = vpack.c.b16 %v4760, %v4759
    %v4772 = vpack.c.b16 %v4762, %v4761
    %v4773 = vpack.c.b16 %v4764, %v4763
    %v4774 = vpack.c.b16 %v4766, %v4765
    %4783 = vmatprep.subr.bf16.mxu0 0
    %4784 = vmatpush1.bf16.msra.mxu0 %v4767
    %4785 = vmatprep.subr.bf16.mxu0 0
    %4786 = vmatpush1.bf16.msra.mxu0 %v4768
    %4787 = vmatprep.subr.bf16.mxu0 0
    %4788 = vmatpush1.bf16.msra.mxu0 %v4769
    %4789 = vmatprep.subr.bf16.mxu0 0
    %4790 = vmatpush1.bf16.msra.mxu0 %v4770
    %4791 = vmatprep.subr.bf16.mxu0 0
    %4792 = vmatpush1.bf16.msra.mxu0 %v4771
    %4793 = vmatprep.subr.bf16.mxu0 0
    %4794 = vmatpush1.bf16.msra.mxu0 %v4772
    %4795 = vmatprep.subr.bf16.mxu0 0
    %4796 = vmatpush1.bf16.msra.mxu0 %v4773
    %4797 = vmatprep.subr.bf16.mxu0 0
    %4798 = vmatpush1.bf16.msra.mxu0 %v4774
    %4799 = vmatprep.subr.bf16.mxu0 0
    %4800 = vmatpush1.bf16.msra.mxu0 0
    %4801 = vmatprep.subr.bf16.mxu0 0
    %4802 = vmatpush1.bf16.msra.mxu0 0
    %4803 = vmatprep.subr.bf16.mxu0 0
    %4804 = vmatpush1.bf16.msra.mxu0 0
    %4805 = vmatprep.subr.bf16.mxu0 0
    %4806 = vmatpush1.bf16.msra.mxu0 0
    %4807 = vmatprep.subr.bf16.mxu0 0
    %4808 = vmatpush1.bf16.msra.mxu0 0
    %4809 = vmatprep.subr.bf16.mxu0 0
    %4810 = vmatpush1.bf16.msra.mxu0 0
    %4811 = vmatprep.subr.bf16.mxu0 0
    %4812 = vmatpush1.bf16.msra.mxu0 0
    %4813 = vmatprep.subr.bf16.mxu0 0
    %4814 = vmatpush1.bf16.msra.mxu0 0
    %4815 = vmatprep.mubr.bf16.mxu0 0
    %4816 = vmatmul.mubr.bf16.gmra.mrb[0].mxu0 %v4398
    %v4817 = vpop.f32.mrb[0].mxu0
    %v4818 = vadd.f32 0.0, %v4817
    %v4819 = vpop.f32.mrb[0].mxu0
    %v4820 = vpop.f32.mrb[0].mxu0
    %v4821 = vadd.f32 0.0, %v4820
    %v4822 = vpop.f32.mrb[0].mxu0
    %4823 = vdwg.mxu0
    %v4824 = vadd.f32 %v4716, %v4818
    %v4825 = vadd.f32 %v4717, %v4821
    %v4826 = vld [vmem:[%s6] sm:$0x1]
    %v4828 = vlaneseq
    %v4829 = vshrl.u32 %v4828, 7
    %v4830 = vsub.s32 0, %v4829
    %v4831 = vrot.slane %v4826, %v4830
    %v4833 = vadd.f32 %v4824, %v4831
    %v4834 = vadd.f32 %v4825, %v4831
    %v4835 = vmax.f32 %v4833, 0.0
    %v4836 = vmax.f32 %v4834, 0.0
    %v4837 = vpack.c.bf16 %v4836, %v4835
    %v4838 = vld [vmem:[%s7] sm:$0xf]
    %v4839 = vld [vmem:[%s7 + $0x4] sm:$0xf]
    %v4840 = vld [vmem:[%s7 + $0x8] sm:$0xf]
    %v4841 = vld [vmem:[%s7 + $0xc] sm:$0xf]
    %v4842 = vld [vmem:[%s7 + $0x10] sm:$0xf]
    %v4843 = vld [vmem:[%s7 + $0x14] sm:$0xf]
    %v4844 = vld [vmem:[%s7 + $0x18] sm:$0xf]
    %v4845 = vld [vmem:[%s7 + $0x1c] sm:$0xf]
    %v4846 = vld [vmem:[%s7 + $0x20] sm:$0xf]
    %v4847 = vld [vmem:[%s7 + $0x24] sm:$0xf]
    %v4848 = vld [vmem:[%s7 + $0x28] sm:$0xf]
    %v4849 = vld [vmem:[%s7 + $0x2c] sm:$0xf]
    %v4850 = vld [vmem:[%s7 + $0x30] sm:$0xf]
    %v4851 = vld [vmem:[%s7 + $0x34] sm:$0xf]
    %v4852 = vld [vmem:[%s7 + $0x38] sm:$0xf]
    %v4853 = vld [vmem:[%s7 + $0x3c] sm:$0xf]
    %v4854 = vld [vmem:[%s8] sm:$0x1]
    %v4856 = vlaneseq
    %v4857 = vshrl.u32 %v4856, 7
    %v4858 = vsub.s32 0, %v4857
    %v4859 = vrot.slane %v4854, %v4858
    %v4877 = vunpack.c.l.b16 %v4838
    %v4878 = vunpack.c.l.b16 %v4839
    %v4879 = vunpack.c.l.b16 %v4840
    %v4880 = vunpack.c.l.b16 %v4841
    %v4881 = vunpack.c.l.b16 %v4842
    %v4882 = vunpack.c.l.b16 %v4843
    %v4883 = vunpack.c.l.b16 %v4844
    %v4884 = vunpack.c.l.b16 %v4845
    %v4885 = vunpack.c.l.b16 %v4846
    %v4886 = vunpack.c.l.b16 %v4847
    %v4887 = vunpack.c.l.b16 %v4848
    %v4888 = vunpack.c.l.b16 %v4849
    %v4889 = vunpack.c.l.b16 %v4850
    %v4890 = vunpack.c.l.b16 %v4851
    %v4891 = vunpack.c.l.b16 %v4852
    %v4892 = vunpack.c.l.b16 %v4853
    %v4893 = vpack.c.b16 %v4878, %v4877
    %v4894 = vpack.c.b16 %v4880, %v4879
    %v4895 = vpack.c.b16 %v4882, %v4881
    %v4896 = vpack.c.b16 %v4884, %v4883
    %v4897 = vpack.c.b16 %v4886, %v4885
    %v4898 = vpack.c.b16 %v4888, %v4887
    %v4899 = vpack.c.b16 %v4890, %v4889
    %v4900 = vpack.c.b16 %v4892, %v4891
    %4909 = vmatprep.subr.bf16.mxu0 0
    %4910 = vmatpush1.bf16.msra.mxu0 %v4893
    %4911 = vmatprep.subr.bf16.mxu0 0
    %4912 = vmatpush1.bf16.msra.mxu0 %v4894
    %4913 = vmatprep.subr.bf16.mxu0 0
    %4914 = vmatpush1.bf16.msra.mxu0 %v4895
    %4915 = vmatprep.subr.bf16.mxu0 0
    %4916 = vmatpush1.bf16.msra.mxu0 %v4896
    %4917 = vmatprep.subr.bf16.mxu0 0
    %4918 = vmatpush1.bf16.msra.mxu0 %v4897
    %4919 = vmatprep.subr.bf16.mxu0 0
    %4920 = vmatpush1.bf16.msra.mxu0 %v4898
    %4921 = vmatprep.subr.bf16.mxu0 0
    %4922 = vmatpush1.bf16.msra.mxu0 %v4899
    %4923 = vmatprep.subr.bf16.mxu0 0
    %4924 = vmatpush1.bf16.msra.mxu0 %v4900
    %4925 = vmatprep.subr.bf16.mxu0 0
    %4926 = vmatpush1.bf16.msra.mxu0 0
    %4927 = vmatprep.subr.bf16.mxu0 0
    %4928 = vmatpush1.bf16.msra.mxu0 0
    %4929 = vmatprep.subr.bf16.mxu0 0
    %4930 = vmatpush1.bf16.msra.mxu0 0
    %4931 = vmatprep.subr.bf16.mxu0 0
    %4932 = vmatpush1.bf16.msra.mxu0 0
    %4933 = vmatprep.subr.bf16.mxu0 0
    %4934 = vmatpush1.bf16.msra.mxu0 0
    %4935 = vmatprep.subr.bf16.mxu0 0
    %4936 = vmatpush1.bf16.msra.mxu0 0
    %4937 = vmatprep.subr.bf16.mxu0 0
    %4938 = vmatpush1.bf16.msra.mxu0 0
    %4939 = vmatprep.subr.bf16.mxu0 0
    %4940 = vmatpush1.bf16.msra.mxu0 0
    %4941 = vmatprep.mubr.bf16.mxu0 0
    %4942 = vmatmul.mubr.bf16.gmra.mrb[0].mxu0 %v4837
    %v4943 = vpop.f32.mrb[0].mxu0
    %v4944 = vadd.f32 %v4859, %v4943
    %v4945 = vpop.f32.mrb[0].mxu0
    %v4946 = vpop.f32.mrb[0].mxu0
    %v4947 = vadd.f32 %v4859, %v4946
    %v4948 = vpop.f32.mrb[0].mxu0
    %4949 = vdwg.mxu0
    %4950 = vmax.xlane.f32.xlu0 %v4944
    %v4951 = vpop.xlane.xlu0 %4950
    %4952 = vmax.xlane.f32.xlu0 %v4947
    %v4953 = vpop.xlane.xlu0 %4952
    %v4954 = vsub.f32 %v4944, %v4951
    %v4955 = vsub.f32 %v4947, %v4953
    %v4956 = vmul.f32 %v4954, 1.442695
    %v4957 = vpow.pop %v4956
    %v4958 = vmul.f32 %v4955, 1.442695
    %v4959 = vpow.pop %v4958
    %4960 = vadd.xlane.f32.xlu0 %v4957
    %v4961 = vpop.xlane.xlu0 %4960
    %4962 = vadd.xlane.f32.xlu0 %v4959
    %v4963 = vpop.xlane.xlu0 %4962
    %v4964 = vlog2.pop %v4961
    %v4965 = vmul.f32 %v4964, 0.6931472
    %v4966 = vlog2.pop %v4963
    %v4967 = vmul.f32 %v4966, 0.6931472
    %v4968 = vsub.f32 %v4954, %v4965
    %v4969 = vsub.f32 %v4955, %v4967
    %4970 = vst [vmem:[%s9] sm:$0xff] %v4968
    %4971 = vst [vmem:[%s9 + $0x8] sm:$0xff] %v4969
    // Predicated region
    $region46: #{cnn_forward.1} parent=1 // pred_check
      _
    $region47: #{cnn_forward.1} parent=1 // pred_check_branch
      %4973 = sbr.rel (0) target = $region49
    $region48: #{cnn_forward.1} parent=1 // pred_region
      _
    $region49: #{cnn_forward.1} parent=1 // pred_fallthru
      _
    // Predicated region
    $region50: #{cnn_forward.1} parent=1 // pred_check
      _
    $region51: #{cnn_forward.1} parent=1 // pred_check_branch
      %4975 = sbr.rel (0) target = $region53
    $region52: #{cnn_forward.1} parent=1 // pred_region
      _
    $region53: #{cnn_forward.1} parent=1 // pred_fallthru
      _
    %4976 = vsyncpa [#allocation3], 1
    %4977 = vsyncpa [#allocation5], 1

</llo_original>
